<compile_context>
chip_gen: v7x
topology: tpu7x:2x2x1
jax: 0.10.0
libtpu: 0.0.40
codegen_flags: <defaults>
</compile_context>

<pallas_src>
import functools

import jax
import jax.numpy as jnp
from jax.experimental import pallas as pl
from jax.experimental.pallas import tpu as pltpu


_BATCH_BLOCK = 8   # batch elements per grid step (one full sublane tile)
_DP = 128          # lane-dense padded head output width


# ----------------------------------------------------------------------------
# Fused kernel: 3x3-conv (im2col matmul) + bias + ReLU
#               -> combined global pooling ((avg+max)/2)
#               -> fused per-defect linear heads
# One grid step == a block of _BATCH_BLOCK batch elements. No intermediate HBM.
# ----------------------------------------------------------------------------
def _fused_kernel(p_ref, wc_ref, bc_ref, wh_ref, bh_ref, o_ref):
    # p_ref : (BB, HW, K)   bf16  im2col patch rows for BB batch elements
    # wc_ref: (K, Cout)     bf16  conv weights, (kh, kw, cin) x cout
    # bc_ref: (1, Cout)     f32   conv bias
    # wh_ref: (Cout, Dp)    f32   fused head weights, lane-padded to Dp=128
    # bh_ref: (1, Dp)       f32   fused head bias, lane-padded
    # o_ref : (BB, Dp)      f32   logits (lane-padded, full (8,128) tile)
    bb, hw, k = p_ref.shape
    cout = wc_ref.shape[1]

    # Conv as one long-M im2col matmul: (BB*HW, K) x (K, Cout), f32 accumulate.
    patches = p_ref[...].reshape(bb * hw, k)
    feat = jnp.dot(patches, wc_ref[...], preferred_element_type=jnp.float32)
    feat = jnp.maximum(feat + bc_ref[...], 0.0)                    # bias + ReLU
    feat = feat.reshape(bb, hw, cout)

    # 'combined' global pooling: (adaptive_avg_pool + adaptive_max_pool) / 2.
    # HW is exactly H*W (never padded), so the mean denominator is correct.
    pooled = 0.5 * (jnp.mean(feat, axis=1) + jnp.max(feat, axis=1))  # (BB, Cout)

    # SeparatedHead of D Linear(Cout, 1) heads, fused column-wise (lane-padded).
    o_ref[...] = (jnp.dot(pooled, wh_ref[...],
                          preferred_element_type=jnp.float32)
                  + bh_ref[...])


# ----------------------------------------------------------------------------
# One-time weight packing (hoisted out of the per-call path).
# ----------------------------------------------------------------------------
def pack_params(params, dp=_DP):
    cout, cin = params["conv_w"].shape[0], params["conv_w"].shape[1]
    d = params["head_w"].shape[1]
    k = 9 * cin
    wc = jnp.transpose(params["conv_w"], (2, 3, 1, 0)).reshape(k, cout)
    wc = wc.astype(jnp.bfloat16)                                   # (K, Cout)
    bc = params["conv_b"].reshape(1, cout).astype(jnp.float32)     # (1, Cout)
    wh = jnp.zeros((cout, dp), jnp.float32).at[:, :d].set(
        params["head_w"].astype(jnp.float32))                      # (Cout, Dp)
    bh = jnp.zeros((1, dp), jnp.float32).at[0, :d].set(
        params["head_b"].astype(jnp.float32))                      # (1, Dp)
    return {"wc": wc, "bc": bc, "wh": wh, "bh": bh}


# ----------------------------------------------------------------------------
# Forward pass.
# ----------------------------------------------------------------------------
@functools.partial(jax.jit, static_argnames=("num_defects",))
def network_forward(x_nchw, packed, num_defects):
    """x_nchw: (B, Cin, H, W) f32 -> logits (B, num_defects) f32."""
    B, Cin, H, W = x_nchw.shape
    K, Cout = packed["wc"].shape
    Dp = packed["wh"].shape[1]
    HW = H * W

    BB = _BATCH_BLOCK
    n_blocks = pl.cdiv(B, BB)
    B_pad = n_blocks * BB

    # --- glue (plain JAX): NCHW -> NHWC, pad, im2col, bf16 cast ---
    x = jnp.transpose(x_nchw, (0, 2, 3, 1))                        # (B, H, W, Cin)
    xp = jnp.pad(x, ((0, 0), (1, 1), (1, 1), (0, 0)))
    patches = jnp.concatenate(
        [xp[:, dh:dh + H, dw:dw + W, :] for dh in range(3) for dw in range(3)],
        axis=-1,
    ).reshape(B, HW, K).astype(jnp.bfloat16)                       # (kh,kw,cin) order
    if B_pad != B:
        patches = jnp.pad(patches, ((0, B_pad - B), (0, 0), (0, 0)))

    flops = 2 * B_pad * HW * K * Cout + 2 * B_pad * Cout * Dp
    bytes_accessed = (patches.size * 2 + packed["wc"].size * 2
                      + packed["bc"].size * 4 + packed["wh"].size * 4
                      + packed["bh"].size * 4 + B_pad * Dp * 4)
    cost = pl.CostEstimate(flops=flops, transcendentals=0,
                           bytes_accessed=bytes_accessed)

    out = pl.pallas_call(
        _fused_kernel,
        out_shape=jax.ShapeDtypeStruct((B_pad, Dp), jnp.float32),
        grid_spec=pl.GridSpec(
            grid=(n_blocks,),
            in_specs=[
                pl.BlockSpec((BB, HW, K), lambda i: (i, 0, 0)),    # patch block
                pl.BlockSpec((K, Cout), lambda i: (0, 0)),         # conv W (resident)
                pl.BlockSpec((1, Cout), lambda i: (0, 0)),         # conv b
                pl.BlockSpec((Cout, Dp), lambda i: (0, 0)),        # head W (resident)
                pl.BlockSpec((1, Dp), lambda i: (0, 0)),           # head b
            ],
            out_specs=pl.BlockSpec((BB, Dp), lambda i: (i, 0)),    # full (8,128) tile
        ),
        compiler_params=pltpu.CompilerParams(
            dimension_semantics=("parallel",)),
        cost_estimate=cost,
    )(patches, packed["wc"], packed["bc"], packed["wh"], packed["bh"])

    return out[:B, :num_defects]


def init_params(key, cin=4, cfeat=32, num_defects=3):
    k1, k2, k3, k4 = jax.random.split(key, 4)
    return {
        "conv_w": 0.1 * jax.random.normal(k1, (cfeat, cin, 3, 3), jnp.float32),
        "conv_b": 0.05 * jax.random.normal(k2, (cfeat,), jnp.float32),
        # D separate Linear(cfeat, 1) SimpleLinearHeads fused column-wise.
        "head_w": 0.1 * jax.random.normal(k3, (cfeat, num_defects), jnp.float32),
        "head_b": 0.05 * jax.random.normal(k4, (num_defects,), jnp.float32),
    }


def _reference_forward(x_nchw, params):
    """Plain-JAX reference mirroring the torch forward (bf16 conv operands)."""
    B, Cin, H, W = x_nchw.shape
    x = jnp.transpose(x_nchw, (0, 2, 3, 1))
    xp = jnp.pad(x, ((0, 0), (1, 1), (1, 1), (0, 0)))
    patches = jnp.concatenate(
        [xp[:, dh:dh + H, dw:dw + W, :] for dh in range(3) for dw in range(3)],
        axis=-1,
    ).reshape(B, H * W, 9 * Cin).astype(jnp.bfloat16)
    wm = jnp.transpose(params["conv_w"], (2, 3, 1, 0)).reshape(9 * Cin, -1)
    wm = wm.astype(jnp.bfloat16)
    feat = jnp.einsum("bmk,kc->bmc", patches, wm,
                      preferred_element_type=jnp.float32)
    feat = jnp.maximum(feat + params["conv_b"], 0.0)
    pooled = 0.5 * (jnp.mean(feat, axis=1) + jnp.max(feat, axis=1))
    return pooled @ params["head_w"] + params["head_b"]


if __name__ == "__main__":
    key = jax.random.PRNGKey(0)
    kx, kp = jax.random.split(key)

    B, Cin, H, W = 2, 4, 16, 16
    num_defects = 3
    x = jax.random.normal(kx, (B, Cin, H, W), jnp.float32)
    params = init_params(kp, cin=Cin, cfeat=32, num_defects=num_defects)

    # Weight packing happens once, outside the per-call path.
    packed = jax.tree_util.tree_map(jax.block_until_ready, pack_params(params))

    out = network_forward(x, packed, num_defects)
    out = jax.block_until_ready(out)

    ref = _reference_forward(x, params)
    assert out.shape == (B, num_defects)
    assert jnp.allclose(out, ref, atol=5e-3, rtol=5e-3)

    print("KERNEL_OK")
</pallas_src>

<mosaic_0001>
module attributes {stable_mosaic.version = 11 : i64} {
  func.func @_fused_kernel(%arg0: i32, %arg1: memref<8x256x36xbf16, #tpu.memory_space<vmem>>, %arg2: memref<36x32xbf16, #tpu.memory_space<vmem>>, %arg3: memref<1x32xf32, #tpu.memory_space<vmem>>, %arg4: memref<32x128xf32, #tpu.memory_space<vmem>>, %arg5: memref<1x128xf32, #tpu.memory_space<vmem>>, %arg6: memref<8x128xf32, #tpu.memory_space<vmem>>) attributes {dimension_semantics = [#tpu.dimension_semantics<parallel>], iteration_bounds = array<i64: 1>, scalar_prefetch = 0 : i64, scratch_operands = 0 : i64, tpu.core_type = #tpu.core_type<tc>, window_params = [{transform_indices = @transform_0, window_bounds = array<i64: 8, 256, 36>}, {pipeline_mode = #tpu.pipeline_mode<synchronous>, transform_indices = @transform_1, window_bounds = array<i64: 36, 32>}, {pipeline_mode = #tpu.pipeline_mode<synchronous>, transform_indices = @transform_2, window_bounds = array<i64: 1, 32>}, {pipeline_mode = #tpu.pipeline_mode<synchronous>, transform_indices = @transform_3, window_bounds = array<i64: 32, 128>}, {pipeline_mode = #tpu.pipeline_mode<synchronous>, transform_indices = @transform_4, window_bounds = array<i64: 1, 128>}, {transform_indices = @transform_5, window_bounds = array<i64: 8, 128>}]} {
    %c0 = arith.constant 0 : index
    %c0_0 = arith.constant 0 : index
    %c0_1 = arith.constant 0 : index
    %0 = vector.load %arg1[%c0, %c0_0, %c0_1] : memref<8x256x36xbf16, #tpu.memory_space<vmem>>, vector<8x256x36xbf16>
    %1 = vector.shape_cast %0 : vector<8x256x36xbf16> to vector<2048x36xbf16>
    %c0_2 = arith.constant 0 : index
    %c0_3 = arith.constant 0 : index
    %2 = vector.load %arg2[%c0_2, %c0_3] : memref<36x32xbf16, #tpu.memory_space<vmem>>, vector<36x32xbf16>
    %cst = arith.constant dense<0.000000e+00> : vector<2048x32xf32>
    %3 = tpu.matmul %1, %2, %cst {dimension_numbers = #tpu.dot_dimension_numbers<[1], [0], [0], [1], [0, 0, 1, 1], [], []>} : vector<2048x36xbf16>, vector<36x32xbf16>, vector<2048x32xf32> -> vector<2048x32xf32>
    %c0_4 = arith.constant 0 : index
    %c0_5 = arith.constant 0 : index
    %4 = vector.load %arg3[%c0_4, %c0_5] : memref<1x32xf32, #tpu.memory_space<vmem>>, vector<1x32xf32>
    %5 = vector.broadcast %4 : vector<1x32xf32> to vector<2048x32xf32>
    %6 = arith.addf %3, %5 : vector<2048x32xf32>
    %cst_6 = arith.constant 0.000000e+00 : f32
    %7 = vector.broadcast %cst_6 : f32 to vector<2048x32xf32>
    %8 = arith.maximumf %6, %7 : vector<2048x32xf32>
    %9 = vector.shape_cast %8 : vector<2048x32xf32> to vector<8x256x32xf32>
    %cst_7 = arith.constant dense<0.000000e+00> : vector<8x32xf32>
    %10 = vector.multi_reduction <add>, %9, %cst_7 [1] : vector<8x256x32xf32> to vector<8x32xf32>
    %cst_8 = arith.constant 2.560000e+02 : f32
    %11 = vector.broadcast %cst_8 : f32 to vector<8x32xf32>
    %12 = arith.divf %10, %11 : vector<8x32xf32>
    %cst_9 = arith.constant dense<0xFF800000> : vector<8x32xf32>
    %13 = vector.multi_reduction <maximumf>, %9, %cst_9 [1] : vector<8x256x32xf32> to vector<8x32xf32>
    %14 = arith.addf %12, %13 : vector<8x32xf32>
    %cst_10 = arith.constant 5.000000e-01 : f32
    %15 = vector.broadcast %cst_10 : f32 to vector<8x32xf32>
    %16 = arith.mulf %15, %14 : vector<8x32xf32>
    %c0_11 = arith.constant 0 : index
    %c0_12 = arith.constant 0 : index
    %17 = vector.load %arg4[%c0_11, %c0_12] : memref<32x128xf32, #tpu.memory_space<vmem>>, vector<32x128xf32>
    %cst_13 = arith.constant dense<0.000000e+00> : vector<8x128xf32>
    %18 = tpu.matmul %16, %17, %cst_13 {dimension_numbers = #tpu.dot_dimension_numbers<[1], [0], [0], [1], [0, 0, 1, 1], [], []>} : vector<8x32xf32>, vector<32x128xf32>, vector<8x128xf32> -> vector<8x128xf32>
    %c0_14 = arith.constant 0 : index
    %c0_15 = arith.constant 0 : index
    %19 = vector.load %arg5[%c0_14, %c0_15] : memref<1x128xf32, #tpu.memory_space<vmem>>, vector<1x128xf32>
    %20 = vector.broadcast %19 : vector<1x128xf32> to vector<8x128xf32>
    %21 = arith.addf %18, %20 : vector<8x128xf32>
    %c0_16 = arith.constant 0 : index
    %c0_17 = arith.constant 0 : index
    %22 = vector.load %arg6[%c0_16, %c0_17] : memref<8x128xf32, #tpu.memory_space<vmem>>, vector<8x128xf32>
    tpu.vector_store %arg6[%c0_16, %c0_17], %21 {strides = array<i32>} : memref<8x128xf32, #tpu.memory_space<vmem>>, vector<8x128xf32>,
    return
  }
  func.func @transform_0(%arg0: i32) -> (i32, i32, i32) {
    %c0_i32 = arith.constant 0 : i32
    %c0_i32_0 = arith.constant 0 : i32
    %c0_i32_1 = arith.constant 0 : i32
    return %arg0, %c0_i32, %c0_i32_0 : i32, i32, i32
  }
  func.func @transform_1(%arg0: i32) -> (i32, i32) {
    %c0_i32 = arith.constant 0 : i32
    %c0_i32_0 = arith.constant 0 : i32
    %c0_i32_1 = arith.constant 0 : i32
    return %c0_i32, %c0_i32_0 : i32, i32
  }
  func.func @transform_2(%arg0: i32) -> (i32, i32) {
    %c0_i32 = arith.constant 0 : i32
    %c0_i32_0 = arith.constant 0 : i32
    %c0_i32_1 = arith.constant 0 : i32
    return %c0_i32, %c0_i32_0 : i32, i32
  }
  func.func @transform_3(%arg0: i32) -> (i32, i32) {
    %c0_i32 = arith.constant 0 : i32
    %c0_i32_0 = arith.constant 0 : i32
    %c0_i32_1 = arith.constant 0 : i32
    return %c0_i32, %c0_i32_0 : i32, i32
  }
  func.func @transform_4(%arg0: i32) -> (i32, i32) {
    %c0_i32 = arith.constant 0 : i32
    %c0_i32_0 = arith.constant 0 : i32
    %c0_i32_1 = arith.constant 0 : i32
    return %c0_i32, %c0_i32_0 : i32, i32
  }
  func.func @transform_5(%arg0: i32) -> (i32, i32) {
    %c0_i32 = arith.constant 0 : i32
    %c0_i32_0 = arith.constant 0 : i32
    return %arg0, %c0_i32 : i32, i32
  }
}

</mosaic_0001>

<llo_original>
// kernel: network_forward.1
$region0: #{network_forward.1}
  #allocation0 [shape = 'u32[]', space=smem, size = 0x4, offset = 0x4, fixed_abs, tag = 'smem constant byte address 0x4 - core index']
  #allocation1 [shape = 'u32[144,128]{1,0:T(1,128)}', space=vmem, size = 0x12000, scoped, tag = 'internal scratch']
  %s0 = inlined_call_operand.vmem [shape: bf16[8,256,36], index: 0, kind: input, shape index: {}]
  %s1 = inlined_call_operand.vmem [shape: bf16[36,32], index: 1, kind: input, shape index: {}]
  %s2 = inlined_call_operand.vmem [shape: f32[1,32], index: 2, kind: input, shape index: {}]
  %s3 = inlined_call_operand.vmem [shape: f32[32,128], index: 3, kind: input, shape index: {}]
  %s4 = inlined_call_operand.vmem [shape: f32[1,128], index: 4, kind: input, shape index: {}]
  %s5 = inlined_call_operand.vmem [shape: f32[8,128], index: 5, kind: output, shape index: {}]
  %s6 = sld [smem:[#allocation0]]
  $region30: #{network_forward.1} parent=0
    _
  %s8 = ssub.s32 1, %s6
  %s9 = scalar_select 0, %s8, %s6
  // Predicated region
  $region2: #{network_forward.1} parent=0 // pred_check
    _
  $region3: #{network_forward.1} parent=0 // pred_check_branch
    %11 = sbr.rel (0) target = $region5
  $region4: #{network_forward.1} parent=0 // pred_region
    _
  $region5: #{network_forward.1} parent=0 // pred_fallthru
    _
  // Predicated region
  $region6: #{network_forward.1} parent=0 // pred_check
    _
  $region7: #{network_forward.1} parent=0 // pred_check_branch
    %13 = sbr.rel (0) target = $region9
  $region8: #{network_forward.1} parent=0 // pred_region
    _
  $region9: #{network_forward.1} parent=0 // pred_fallthru
    _
  // Predicated region
  $region10: #{network_forward.1} parent=0 // pred_check
    _
  $region11: #{network_forward.1} parent=0 // pred_check_branch
    %15 = sbr.rel (0) target = $region13
  $region12: #{network_forward.1} parent=0 // pred_region
    _
  $region13: #{network_forward.1} parent=0 // pred_fallthru
    _
  // Predicated region
  $region14: #{network_forward.1} parent=0 // pred_check
    _
  $region15: #{network_forward.1} parent=0 // pred_check_branch
    %17 = sbr.rel (0) target = $region17
  $region16: #{network_forward.1} parent=0 // pred_region
    _
  $region17: #{network_forward.1} parent=0 // pred_fallthru
    _
  // Predicated region
  $region18: #{network_forward.1} parent=0 // pred_check
    _
  $region19: #{network_forward.1} parent=0 // pred_check_branch
    %19 = sbr.rel (0) target = $region21
  $region20: #{network_forward.1} parent=0 // pred_region
    _
  $region21: #{network_forward.1} parent=0 // pred_fallthru
    _
  %v21 = vld [vmem:[%s0] sm:$0xf]
  %v22 = vld [vmem:[%s0 + $0x4] sm:$0xf]
  %v23 = vld [vmem:[%s0 + $0x8] sm:$0xf]
  %v24 = vld [vmem:[%s0 + $0xc] sm:$0xf]
  %v25 = vld [vmem:[%s0 + $0x10] sm:$0xf]
  %v26 = vld [vmem:[%s0 + $0x14] sm:$0xf]
  %v27 = vld [vmem:[%s0 + $0x18] sm:$0xf]
  %v28 = vld [vmem:[%s0 + $0x1c] sm:$0xf]
  %v29 = vld [vmem:[%s0 + $0x20] sm:$0xf]
  %v30 = vld [vmem:[%s0 + $0x24] sm:$0xf]
  %v31 = vld [vmem:[%s0 + $0x28] sm:$0xf]
  %v32 = vld [vmem:[%s0 + $0x2c] sm:$0xf]
  %v33 = vld [vmem:[%s0 + $0x30] sm:$0xf]
  %v34 = vld [vmem:[%s0 + $0x34] sm:$0xf]
  %v35 = vld [vmem:[%s0 + $0x38] sm:$0xf]
  %v36 = vld [vmem:[%s0 + $0x3c] sm:$0xf]
  %v37 = vld [vmem:[%s0 + $0x40] sm:$0xf]
  %v38 = vld [vmem:[%s0 + $0x44] sm:$0xf]
  %v39 = vld [vmem:[%s0 + $0x48] sm:$0xf]
  %v40 = vld [vmem:[%s0 + $0x4c] sm:$0xf]
  %v41 = vld [vmem:[%s0 + $0x50] sm:$0xf]
  %v42 = vld [vmem:[%s0 + $0x54] sm:$0xf]
  %v43 = vld [vmem:[%s0 + $0x58] sm:$0xf]
  %v44 = vld [vmem:[%s0 + $0x5c] sm:$0xf]
  %v45 = vld [vmem:[%s0 + $0x60] sm:$0xf]
  %v46 = vld [vmem:[%s0 + $0x64] sm:$0xf]
  %v47 = vld [vmem:[%s0 + $0x68] sm:$0xf]
  %v48 = vld [vmem:[%s0 + $0x6c] sm:$0xf]
  %v49 = vld [vmem:[%s0 + $0x70] sm:$0xf]
  %v50 = vld [vmem:[%s0 + $0x74] sm:$0xf]
  %v51 = vld [vmem:[%s0 + $0x78] sm:$0xf]
  %v52 = vld [vmem:[%s0 + $0x7c] sm:$0xf]
  %v53 = vld [vmem:[%s0 + $0x80] sm:$0xf]
  %v54 = vld [vmem:[%s0 + $0x84] sm:$0xf]
  %v55 = vld [vmem:[%s0 + $0x88] sm:$0xf]
  %v56 = vld [vmem:[%s0 + $0x8c] sm:$0xf]
  %v57 = vld [vmem:[%s0 + $0x90] sm:$0xf]
  %v58 = vld [vmem:[%s0 + $0x94] sm:$0xf]
  %v59 = vld [vmem:[%s0 + $0x98] sm:$0xf]
  %v60 = vld [vmem:[%s0 + $0x9c] sm:$0xf]
  %v61 = vld [vmem:[%s0 + $0xa0] sm:$0xf]
  %v62 = vld [vmem:[%s0 + $0xa4] sm:$0xf]
  %v63 = vld [vmem:[%s0 + $0xa8] sm:$0xf]
  %v64 = vld [vmem:[%s0 + $0xac] sm:$0xf]
  %v65 = vld [vmem:[%s0 + $0xb0] sm:$0xf]
  %v66 = vld [vmem:[%s0 + $0xb4] sm:$0xf]
  %v67 = vld [vmem:[%s0 + $0xb8] sm:$0xf]
  %v68 = vld [vmem:[%s0 + $0xbc] sm:$0xf]
  %v69 = vld [vmem:[%s0 + $0xc0] sm:$0xf]
  %v70 = vld [vmem:[%s0 + $0xc4] sm:$0xf]
  %v71 = vld [vmem:[%s0 + $0xc8] sm:$0xf]
  %v72 = vld [vmem:[%s0 + $0xcc] sm:$0xf]
  %v73 = vld [vmem:[%s0 + $0xd0] sm:$0xf]
  %v74 = vld [vmem:[%s0 + $0xd4] sm:$0xf]
  %v75 = vld [vmem:[%s0 + $0xd8] sm:$0xf]
  %v76 = vld [vmem:[%s0 + $0xdc] sm:$0xf]
  %v77 = vld [vmem:[%s0 + $0xe0] sm:$0xf]
  %v78 = vld [vmem:[%s0 + $0xe4] sm:$0xf]
  %v79 = vld [vmem:[%s0 + $0xe8] sm:$0xf]
  %v80 = vld [vmem:[%s0 + $0xec] sm:$0xf]
  %v81 = vld [vmem:[%s0 + $0xf0] sm:$0xf]
  %v82 = vld [vmem:[%s0 + $0xf4] sm:$0xf]
  %v83 = vld [vmem:[%s0 + $0xf8] sm:$0xf]
  %v84 = vld [vmem:[%s0 + $0xfc] sm:$0xf]
  %v85 = vld [vmem:[%s0 + $0x100] sm:$0xf]
  %v86 = vld [vmem:[%s0 + $0x104] sm:$0xf]
  %v87 = vld [vmem:[%s0 + $0x108] sm:$0xf]
  %v88 = vld [vmem:[%s0 + $0x10c] sm:$0xf]
  %v89 = vld [vmem:[%s0 + $0x110] sm:$0xf]
  %v90 = vld [vmem:[%s0 + $0x114] sm:$0xf]
  %v91 = vld [vmem:[%s0 + $0x118] sm:$0xf]
  %v92 = vld [vmem:[%s0 + $0x11c] sm:$0xf]
  %v93 = vld [vmem:[%s0 + $0x120] sm:$0xf]
  %v94 = vld [vmem:[%s0 + $0x124] sm:$0xf]
  %v95 = vld [vmem:[%s0 + $0x128] sm:$0xf]
  %v96 = vld [vmem:[%s0 + $0x12c] sm:$0xf]
  %v97 = vld [vmem:[%s0 + $0x130] sm:$0xf]
  %v98 = vld [vmem:[%s0 + $0x134] sm:$0xf]
  %v99 = vld [vmem:[%s0 + $0x138] sm:$0xf]
  %v100 = vld [vmem:[%s0 + $0x13c] sm:$0xf]
  %v101 = vld [vmem:[%s0 + $0x140] sm:$0xf]
  %v102 = vld [vmem:[%s0 + $0x144] sm:$0xf]
  %v103 = vld [vmem:[%s0 + $0x148] sm:$0xf]
  %v104 = vld [vmem:[%s0 + $0x14c] sm:$0xf]
  %v105 = vld [vmem:[%s0 + $0x150] sm:$0xf]
  %v106 = vld [vmem:[%s0 + $0x154] sm:$0xf]
  %v107 = vld [vmem:[%s0 + $0x158] sm:$0xf]
  %v108 = vld [vmem:[%s0 + $0x15c] sm:$0xf]
  %v109 = vld [vmem:[%s0 + $0x160] sm:$0xf]
  %v110 = vld [vmem:[%s0 + $0x164] sm:$0xf]
  %v111 = vld [vmem:[%s0 + $0x168] sm:$0xf]
  %v112 = vld [vmem:[%s0 + $0x16c] sm:$0xf]
  %v113 = vld [vmem:[%s0 + $0x170] sm:$0xf]
  %v114 = vld [vmem:[%s0 + $0x174] sm:$0xf]
  %v115 = vld [vmem:[%s0 + $0x178] sm:$0xf]
  %v116 = vld [vmem:[%s0 + $0x17c] sm:$0xf]
  %v117 = vld [vmem:[%s0 + $0x180] sm:$0xf]
  %v118 = vld [vmem:[%s0 + $0x184] sm:$0xf]
  %v119 = vld [vmem:[%s0 + $0x188] sm:$0xf]
  %v120 = vld [vmem:[%s0 + $0x18c] sm:$0xf]
  %v121 = vld [vmem:[%s0 + $0x190] sm:$0xf]
  %v122 = vld [vmem:[%s0 + $0x194] sm:$0xf]
  %v123 = vld [vmem:[%s0 + $0x198] sm:$0xf]
  %v124 = vld [vmem:[%s0 + $0x19c] sm:$0xf]
  %v125 = vld [vmem:[%s0 + $0x1a0] sm:$0xf]
  %v126 = vld [vmem:[%s0 + $0x1a4] sm:$0xf]
  %v127 = vld [vmem:[%s0 + $0x1a8] sm:$0xf]
  %v128 = vld [vmem:[%s0 + $0x1ac] sm:$0xf]
  %v129 = vld [vmem:[%s0 + $0x1b0] sm:$0xf]
  %v130 = vld [vmem:[%s0 + $0x1b4] sm:$0xf]
  %v131 = vld [vmem:[%s0 + $0x1b8] sm:$0xf]
  %v132 = vld [vmem:[%s0 + $0x1bc] sm:$0xf]
  %v133 = vld [vmem:[%s0 + $0x1c0] sm:$0xf]
  %v134 = vld [vmem:[%s0 + $0x1c4] sm:$0xf]
  %v135 = vld [vmem:[%s0 + $0x1c8] sm:$0xf]
  %v136 = vld [vmem:[%s0 + $0x1cc] sm:$0xf]
  %v137 = vld [vmem:[%s0 + $0x1d0] sm:$0xf]
  %v138 = vld [vmem:[%s0 + $0x1d4] sm:$0xf]
  %v139 = vld [vmem:[%s0 + $0x1d8] sm:$0xf]
  %v140 = vld [vmem:[%s0 + $0x1dc] sm:$0xf]
  %v141 = vld [vmem:[%s0 + $0x1e0] sm:$0xf]
  %v142 = vld [vmem:[%s0 + $0x1e4] sm:$0xf]
  %v143 = vld [vmem:[%s0 + $0x1e8] sm:$0xf]
  %v144 = vld [vmem:[%s0 + $0x1ec] sm:$0xf]
  %v145 = vld [vmem:[%s0 + $0x1f0] sm:$0xf]
  %v146 = vld [vmem:[%s0 + $0x1f4] sm:$0xf]
  %v147 = vld [vmem:[%s0 + $0x1f8] sm:$0xf]
  %v148 = vld [vmem:[%s0 + $0x1fc] sm:$0xf]
  %v149 = vld [vmem:[%s0 + $0x200] sm:$0xf]
  %v150 = vld [vmem:[%s0 + $0x204] sm:$0xf]
  %v151 = vld [vmem:[%s0 + $0x208] sm:$0xf]
  %v152 = vld [vmem:[%s0 + $0x20c] sm:$0xf]
  %v153 = vld [vmem:[%s0 + $0x210] sm:$0xf]
  %v154 = vld [vmem:[%s0 + $0x214] sm:$0xf]
  %v155 = vld [vmem:[%s0 + $0x218] sm:$0xf]
  %v156 = vld [vmem:[%s0 + $0x21c] sm:$0xf]
  %v157 = vld [vmem:[%s0 + $0x220] sm:$0xf]
  %v158 = vld [vmem:[%s0 + $0x224] sm:$0xf]
  %v159 = vld [vmem:[%s0 + $0x228] sm:$0xf]
  %v160 = vld [vmem:[%s0 + $0x22c] sm:$0xf]
  %v161 = vld [vmem:[%s0 + $0x230] sm:$0xf]
  %v162 = vld [vmem:[%s0 + $0x234] sm:$0xf]
  %v163 = vld [vmem:[%s0 + $0x238] sm:$0xf]
  %v164 = vld [vmem:[%s0 + $0x23c] sm:$0xf]
  %v165 = vld [vmem:[%s0 + $0x240] sm:$0xf]
  %v166 = vld [vmem:[%s0 + $0x244] sm:$0xf]
  %v167 = vld [vmem:[%s0 + $0x248] sm:$0xf]
  %v168 = vld [vmem:[%s0 + $0x24c] sm:$0xf]
  %v169 = vld [vmem:[%s0 + $0x250] sm:$0xf]
  %v170 = vld [vmem:[%s0 + $0x254] sm:$0xf]
  %v171 = vld [vmem:[%s0 + $0x258] sm:$0xf]
  %v172 = vld [vmem:[%s0 + $0x25c] sm:$0xf]
  %v173 = vld [vmem:[%s0 + $0x260] sm:$0xf]
  %v174 = vld [vmem:[%s0 + $0x264] sm:$0xf]
  %v175 = vld [vmem:[%s0 + $0x268] sm:$0xf]
  %v176 = vld [vmem:[%s0 + $0x26c] sm:$0xf]
  %v177 = vld [vmem:[%s0 + $0x270] sm:$0xf]
  %v178 = vld [vmem:[%s0 + $0x274] sm:$0xf]
  %v179 = vld [vmem:[%s0 + $0x278] sm:$0xf]
  %v180 = vld [vmem:[%s0 + $0x27c] sm:$0xf]
  %v181 = vld [vmem:[%s0 + $0x280] sm:$0xf]
  %v182 = vld [vmem:[%s0 + $0x284] sm:$0xf]
  %v183 = vld [vmem:[%s0 + $0x288] sm:$0xf]
  %v184 = vld [vmem:[%s0 + $0x28c] sm:$0xf]
  %v185 = vld [vmem:[%s0 + $0x290] sm:$0xf]
  %v186 = vld [vmem:[%s0 + $0x294] sm:$0xf]
  %v187 = vld [vmem:[%s0 + $0x298] sm:$0xf]
  %v188 = vld [vmem:[%s0 + $0x29c] sm:$0xf]
  %v189 = vld [vmem:[%s0 + $0x2a0] sm:$0xf]
  %v190 = vld [vmem:[%s0 + $0x2a4] sm:$0xf]
  %v191 = vld [vmem:[%s0 + $0x2a8] sm:$0xf]
  %v192 = vld [vmem:[%s0 + $0x2ac] sm:$0xf]
  %v193 = vld [vmem:[%s0 + $0x2b0] sm:$0xf]
  %v194 = vld [vmem:[%s0 + $0x2b4] sm:$0xf]
  %v195 = vld [vmem:[%s0 + $0x2b8] sm:$0xf]
  %v196 = vld [vmem:[%s0 + $0x2bc] sm:$0xf]
  %v197 = vld [vmem:[%s0 + $0x2c0] sm:$0xf]
  %v198 = vld [vmem:[%s0 + $0x2c4] sm:$0xf]
  %v199 = vld [vmem:[%s0 + $0x2c8] sm:$0xf]
  %v200 = vld [vmem:[%s0 + $0x2cc] sm:$0xf]
  %v201 = vld [vmem:[%s0 + $0x2d0] sm:$0xf]
  %v202 = vld [vmem:[%s0 + $0x2d4] sm:$0xf]
  %v203 = vld [vmem:[%s0 + $0x2d8] sm:$0xf]
  %v204 = vld [vmem:[%s0 + $0x2dc] sm:$0xf]
  %v205 = vld [vmem:[%s0 + $0x2e0] sm:$0xf]
  %v206 = vld [vmem:[%s0 + $0x2e4] sm:$0xf]
  %v207 = vld [vmem:[%s0 + $0x2e8] sm:$0xf]
  %v208 = vld [vmem:[%s0 + $0x2ec] sm:$0xf]
  %v209 = vld [vmem:[%s0 + $0x2f0] sm:$0xf]
  %v210 = vld [vmem:[%s0 + $0x2f4] sm:$0xf]
  %v211 = vld [vmem:[%s0 + $0x2f8] sm:$0xf]
  %v212 = vld [vmem:[%s0 + $0x2fc] sm:$0xf]
  %v213 = vld [vmem:[%s0 + $0x300] sm:$0xf]
  %v214 = vld [vmem:[%s0 + $0x304] sm:$0xf]
  %v215 = vld [vmem:[%s0 + $0x308] sm:$0xf]
  %v216 = vld [vmem:[%s0 + $0x30c] sm:$0xf]
  %v217 = vld [vmem:[%s0 + $0x310] sm:$0xf]
  %v218 = vld [vmem:[%s0 + $0x314] sm:$0xf]
  %v219 = vld [vmem:[%s0 + $0x318] sm:$0xf]
  %v220 = vld [vmem:[%s0 + $0x31c] sm:$0xf]
  %v221 = vld [vmem:[%s0 + $0x320] sm:$0xf]
  %v222 = vld [vmem:[%s0 + $0x324] sm:$0xf]
  %v223 = vld [vmem:[%s0 + $0x328] sm:$0xf]
  %v224 = vld [vmem:[%s0 + $0x32c] sm:$0xf]
  %v225 = vld [vmem:[%s0 + $0x330] sm:$0xf]
  %v226 = vld [vmem:[%s0 + $0x334] sm:$0xf]
  %v227 = vld [vmem:[%s0 + $0x338] sm:$0xf]
  %v228 = vld [vmem:[%s0 + $0x33c] sm:$0xf]
  %v229 = vld [vmem:[%s0 + $0x340] sm:$0xf]
  %v230 = vld [vmem:[%s0 + $0x344] sm:$0xf]
  %v231 = vld [vmem:[%s0 + $0x348] sm:$0xf]
  %v232 = vld [vmem:[%s0 + $0x34c] sm:$0xf]
  %v233 = vld [vmem:[%s0 + $0x350] sm:$0xf]
  %v234 = vld [vmem:[%s0 + $0x354] sm:$0xf]
  %v235 = vld [vmem:[%s0 + $0x358] sm:$0xf]
  %v236 = vld [vmem:[%s0 + $0x35c] sm:$0xf]
  %v237 = vld [vmem:[%s0 + $0x360] sm:$0xf]
  %v238 = vld [vmem:[%s0 + $0x364] sm:$0xf]
  %v239 = vld [vmem:[%s0 + $0x368] sm:$0xf]
  %v240 = vld [vmem:[%s0 + $0x36c] sm:$0xf]
  %v241 = vld [vmem:[%s0 + $0x370] sm:$0xf]
  %v242 = vld [vmem:[%s0 + $0x374] sm:$0xf]
  %v243 = vld [vmem:[%s0 + $0x378] sm:$0xf]
  %v244 = vld [vmem:[%s0 + $0x37c] sm:$0xf]
  %v245 = vld [vmem:[%s0 + $0x380] sm:$0xf]
  %v246 = vld [vmem:[%s0 + $0x384] sm:$0xf]
  %v247 = vld [vmem:[%s0 + $0x388] sm:$0xf]
  %v248 = vld [vmem:[%s0 + $0x38c] sm:$0xf]
  %v249 = vld [vmem:[%s0 + $0x390] sm:$0xf]
  %v250 = vld [vmem:[%s0 + $0x394] sm:$0xf]
  %v251 = vld [vmem:[%s0 + $0x398] sm:$0xf]
  %v252 = vld [vmem:[%s0 + $0x39c] sm:$0xf]
  %v253 = vld [vmem:[%s0 + $0x3a0] sm:$0xf]
  %v254 = vld [vmem:[%s0 + $0x3a4] sm:$0xf]
  %v255 = vld [vmem:[%s0 + $0x3a8] sm:$0xf]
  %v256 = vld [vmem:[%s0 + $0x3ac] sm:$0xf]
  %v257 = vld [vmem:[%s0 + $0x3b0] sm:$0xf]
  %v258 = vld [vmem:[%s0 + $0x3b4] sm:$0xf]
  %v259 = vld [vmem:[%s0 + $0x3b8] sm:$0xf]
  %v260 = vld [vmem:[%s0 + $0x3bc] sm:$0xf]
  %v261 = vld [vmem:[%s0 + $0x3c0] sm:$0xf]
  %v262 = vld [vmem:[%s0 + $0x3c4] sm:$0xf]
  %v263 = vld [vmem:[%s0 + $0x3c8] sm:$0xf]
  %v264 = vld [vmem:[%s0 + $0x3cc] sm:$0xf]
  %v265 = vld [vmem:[%s0 + $0x3d0] sm:$0xf]
  %v266 = vld [vmem:[%s0 + $0x3d4] sm:$0xf]
  %v267 = vld [vmem:[%s0 + $0x3d8] sm:$0xf]
  %v268 = vld [vmem:[%s0 + $0x3dc] sm:$0xf]
  %v269 = vld [vmem:[%s0 + $0x3e0] sm:$0xf]
  %v270 = vld [vmem:[%s0 + $0x3e4] sm:$0xf]
  %v271 = vld [vmem:[%s0 + $0x3e8] sm:$0xf]
  %v272 = vld [vmem:[%s0 + $0x3ec] sm:$0xf]
  %v273 = vld [vmem:[%s0 + $0x3f0] sm:$0xf]
  %v274 = vld [vmem:[%s0 + $0x3f4] sm:$0xf]
  %v275 = vld [vmem:[%s0 + $0x3f8] sm:$0xf]
  %v276 = vld [vmem:[%s0 + $0x3fc] sm:$0xf]
  %v277 = vld [vmem:[%s1] sm:$0xf]
  %v278 = vld [vmem:[%s1 + $0x4] sm:$0xf]
  %v279 = vld [vmem:[%s1 + $0x8] sm:$0xf]
  %v280 = vld [vmem:[%s1 + $0xc] sm:$0xf]
  %v281 = vld [vmem:[%s1 + $0x10] sm:$0x3]
  %v282 = vld [vmem:[%s2] sm:$0x1]
  %v284 = vlaneseq
  %v285 = vshrl.u32 %v284, 7
  %v286 = vsub.s32 0, %v285
  %v287 = vrot.slane %v282, %v286
  %v545 = vunpack.c.l.b16 %v21
  %v546 = vunpack.c.l.b16 %v22
  %v547 = vunpack.c.l.b16 %v23
  %v548 = vunpack.c.l.b16 %v24
  %v549 = vunpack.c.l.b16 %v25
  %v550 = vunpack.c.l.b16 %v26
  %v551 = vunpack.c.l.b16 %v27
  %v552 = vunpack.c.l.b16 %v28
  %v553 = vunpack.c.l.b16 %v29
  %v554 = vunpack.c.l.b16 %v30
  %v555 = vunpack.c.l.b16 %v31
  %v556 = vunpack.c.l.b16 %v32
  %v557 = vunpack.c.l.b16 %v33
  %v558 = vunpack.c.l.b16 %v34
  %v559 = vunpack.c.l.b16 %v35
  %v560 = vunpack.c.l.b16 %v36
  %v561 = vunpack.c.l.b16 %v37
  %v562 = vunpack.c.l.b16 %v38
  %v563 = vunpack.c.l.b16 %v39
  %v564 = vunpack.c.l.b16 %v40
  %v565 = vunpack.c.l.b16 %v41
  %v566 = vunpack.c.l.b16 %v42
  %v567 = vunpack.c.l.b16 %v43
  %v568 = vunpack.c.l.b16 %v44
  %v569 = vunpack.c.l.b16 %v45
  %v570 = vunpack.c.l.b16 %v46
  %v571 = vunpack.c.l.b16 %v47
  %v572 = vunpack.c.l.b16 %v48
  %v573 = vunpack.c.l.b16 %v49
  %v574 = vunpack.c.l.b16 %v50
  %v575 = vunpack.c.l.b16 %v51
  %v576 = vunpack.c.l.b16 %v52
  %v577 = vunpack.c.l.b16 %v53
  %v578 = vunpack.c.l.b16 %v54
  %v579 = vunpack.c.l.b16 %v55
  %v580 = vunpack.c.l.b16 %v56
  %v581 = vunpack.c.l.b16 %v57
  %v582 = vunpack.c.l.b16 %v58
  %v583 = vunpack.c.l.b16 %v59
  %v584 = vunpack.c.l.b16 %v60
  %v585 = vunpack.c.l.b16 %v61
  %v586 = vunpack.c.l.b16 %v62
  %v587 = vunpack.c.l.b16 %v63
  %v588 = vunpack.c.l.b16 %v64
  %v589 = vunpack.c.l.b16 %v65
  %v590 = vunpack.c.l.b16 %v66
  %v591 = vunpack.c.l.b16 %v67
  %v592 = vunpack.c.l.b16 %v68
  %v593 = vunpack.c.l.b16 %v69
  %v594 = vunpack.c.l.b16 %v70
  %v595 = vunpack.c.l.b16 %v71
  %v596 = vunpack.c.l.b16 %v72
  %v597 = vunpack.c.l.b16 %v73
  %v598 = vunpack.c.l.b16 %v74
  %v599 = vunpack.c.l.b16 %v75
  %v600 = vunpack.c.l.b16 %v76
  %v601 = vunpack.c.l.b16 %v77
  %v602 = vunpack.c.l.b16 %v78
  %v603 = vunpack.c.l.b16 %v79
  %v604 = vunpack.c.l.b16 %v80
  %v605 = vunpack.c.l.b16 %v81
  %v606 = vunpack.c.l.b16 %v82
  %v607 = vunpack.c.l.b16 %v83
  %v608 = vunpack.c.l.b16 %v84
  %v609 = vunpack.c.l.b16 %v85
  %v610 = vunpack.c.l.b16 %v86
  %v611 = vunpack.c.l.b16 %v87
  %v612 = vunpack.c.l.b16 %v88
  %v613 = vunpack.c.l.b16 %v89
  %v614 = vunpack.c.l.b16 %v90
  %v615 = vunpack.c.l.b16 %v91
  %v616 = vunpack.c.l.b16 %v92
  %v617 = vunpack.c.l.b16 %v93
  %v618 = vunpack.c.l.b16 %v94
  %v619 = vunpack.c.l.b16 %v95
  %v620 = vunpack.c.l.b16 %v96
  %v621 = vunpack.c.l.b16 %v97
  %v622 = vunpack.c.l.b16 %v98
  %v623 = vunpack.c.l.b16 %v99
  %v624 = vunpack.c.l.b16 %v100
  %v625 = vunpack.c.l.b16 %v101
  %v626 = vunpack.c.l.b16 %v102
  %v627 = vunpack.c.l.b16 %v103
  %v628 = vunpack.c.l.b16 %v104
  %v629 = vunpack.c.l.b16 %v105
  %v630 = vunpack.c.l.b16 %v106
  %v631 = vunpack.c.l.b16 %v107
  %v632 = vunpack.c.l.b16 %v108
  %v633 = vunpack.c.l.b16 %v109
  %v634 = vunpack.c.l.b16 %v110
  %v635 = vunpack.c.l.b16 %v111
  %v636 = vunpack.c.l.b16 %v112
  %v637 = vunpack.c.l.b16 %v113
  %v638 = vunpack.c.l.b16 %v114
  %v639 = vunpack.c.l.b16 %v115
  %v640 = vunpack.c.l.b16 %v116
  %v641 = vunpack.c.l.b16 %v117
  %v642 = vunpack.c.l.b16 %v118
  %v643 = vunpack.c.l.b16 %v119
  %v644 = vunpack.c.l.b16 %v120
  %v645 = vunpack.c.l.b16 %v121
  %v646 = vunpack.c.l.b16 %v122
  %v647 = vunpack.c.l.b16 %v123
  %v648 = vunpack.c.l.b16 %v124
  %v649 = vunpack.c.l.b16 %v125
  %v650 = vunpack.c.l.b16 %v126
  %v651 = vunpack.c.l.b16 %v127
  %v652 = vunpack.c.l.b16 %v128
  %v653 = vunpack.c.l.b16 %v129
  %v654 = vunpack.c.l.b16 %v130
  %v655 = vunpack.c.l.b16 %v131
  %v656 = vunpack.c.l.b16 %v132
  %v657 = vunpack.c.l.b16 %v133
  %v658 = vunpack.c.l.b16 %v134
  %v659 = vunpack.c.l.b16 %v135
  %v660 = vunpack.c.l.b16 %v136
  %v661 = vunpack.c.l.b16 %v137
  %v662 = vunpack.c.l.b16 %v138
  %v663 = vunpack.c.l.b16 %v139
  %v664 = vunpack.c.l.b16 %v140
  %v665 = vunpack.c.l.b16 %v141
  %v666 = vunpack.c.l.b16 %v142
  %v667 = vunpack.c.l.b16 %v143
  %v668 = vunpack.c.l.b16 %v144
  %v669 = vunpack.c.l.b16 %v145
  %v670 = vunpack.c.l.b16 %v146
  %v671 = vunpack.c.l.b16 %v147
  %v672 = vunpack.c.l.b16 %v148
  %v673 = vunpack.c.l.b16 %v149
  %v674 = vunpack.c.l.b16 %v150
  %v675 = vunpack.c.l.b16 %v151
  %v676 = vunpack.c.l.b16 %v152
  %v677 = vunpack.c.l.b16 %v153
  %v678 = vunpack.c.l.b16 %v154
  %v679 = vunpack.c.l.b16 %v155
  %v680 = vunpack.c.l.b16 %v156
  %v681 = vunpack.c.l.b16 %v157
  %v682 = vunpack.c.l.b16 %v158
  %v683 = vunpack.c.l.b16 %v159
  %v684 = vunpack.c.l.b16 %v160
  %v685 = vunpack.c.l.b16 %v161
  %v686 = vunpack.c.l.b16 %v162
  %v687 = vunpack.c.l.b16 %v163
  %v688 = vunpack.c.l.b16 %v164
  %v689 = vunpack.c.l.b16 %v165
  %v690 = vunpack.c.l.b16 %v166
  %v691 = vunpack.c.l.b16 %v167
  %v692 = vunpack.c.l.b16 %v168
  %v693 = vunpack.c.l.b16 %v169
  %v694 = vunpack.c.l.b16 %v170
  %v695 = vunpack.c.l.b16 %v171
  %v696 = vunpack.c.l.b16 %v172
  %v697 = vunpack.c.l.b16 %v173
  %v698 = vunpack.c.l.b16 %v174
  %v699 = vunpack.c.l.b16 %v175
  %v700 = vunpack.c.l.b16 %v176
  %v701 = vunpack.c.l.b16 %v177
  %v702 = vunpack.c.l.b16 %v178
  %v703 = vunpack.c.l.b16 %v179
  %v704 = vunpack.c.l.b16 %v180
  %v705 = vunpack.c.l.b16 %v181
  %v706 = vunpack.c.l.b16 %v182
  %v707 = vunpack.c.l.b16 %v183
  %v708 = vunpack.c.l.b16 %v184
  %v709 = vunpack.c.l.b16 %v185
  %v710 = vunpack.c.l.b16 %v186
  %v711 = vunpack.c.l.b16 %v187
  %v712 = vunpack.c.l.b16 %v188
  %v713 = vunpack.c.l.b16 %v189
  %v714 = vunpack.c.l.b16 %v190
  %v715 = vunpack.c.l.b16 %v191
  %v716 = vunpack.c.l.b16 %v192
  %v717 = vunpack.c.l.b16 %v193
  %v718 = vunpack.c.l.b16 %v194
  %v719 = vunpack.c.l.b16 %v195
  %v720 = vunpack.c.l.b16 %v196
  %v721 = vunpack.c.l.b16 %v197
  %v722 = vunpack.c.l.b16 %v198
  %v723 = vunpack.c.l.b16 %v199
  %v724 = vunpack.c.l.b16 %v200
  %v725 = vunpack.c.l.b16 %v201
  %v726 = vunpack.c.l.b16 %v202
  %v727 = vunpack.c.l.b16 %v203
  %v728 = vunpack.c.l.b16 %v204
  %v729 = vunpack.c.l.b16 %v205
  %v730 = vunpack.c.l.b16 %v206
  %v731 = vunpack.c.l.b16 %v207
  %v732 = vunpack.c.l.b16 %v208
  %v733 = vunpack.c.l.b16 %v209
  %v734 = vunpack.c.l.b16 %v210
  %v735 = vunpack.c.l.b16 %v211
  %v736 = vunpack.c.l.b16 %v212
  %v737 = vunpack.c.l.b16 %v213
  %v738 = vunpack.c.l.b16 %v214
  %v739 = vunpack.c.l.b16 %v215
  %v740 = vunpack.c.l.b16 %v216
  %v741 = vunpack.c.l.b16 %v217
  %v742 = vunpack.c.l.b16 %v218
  %v743 = vunpack.c.l.b16 %v219
  %v744 = vunpack.c.l.b16 %v220
  %v745 = vunpack.c.l.b16 %v221
  %v746 = vunpack.c.l.b16 %v222
  %v747 = vunpack.c.l.b16 %v223
  %v748 = vunpack.c.l.b16 %v224
  %v749 = vunpack.c.l.b16 %v225
  %v750 = vunpack.c.l.b16 %v226
  %v751 = vunpack.c.l.b16 %v227
  %v752 = vunpack.c.l.b16 %v228
  %v753 = vunpack.c.l.b16 %v229
  %v754 = vunpack.c.l.b16 %v230
  %v755 = vunpack.c.l.b16 %v231
  %v756 = vunpack.c.l.b16 %v232
  %v757 = vunpack.c.l.b16 %v233
  %v758 = vunpack.c.l.b16 %v234
  %v759 = vunpack.c.l.b16 %v235
  %v760 = vunpack.c.l.b16 %v236
  %v761 = vunpack.c.l.b16 %v237
  %v762 = vunpack.c.l.b16 %v238
  %v763 = vunpack.c.l.b16 %v239
  %v764 = vunpack.c.l.b16 %v240
  %v765 = vunpack.c.l.b16 %v241
  %v766 = vunpack.c.l.b16 %v242
  %v767 = vunpack.c.l.b16 %v243
  %v768 = vunpack.c.l.b16 %v244
  %v769 = vunpack.c.l.b16 %v245
  %v770 = vunpack.c.l.b16 %v246
  %v771 = vunpack.c.l.b16 %v247
  %v772 = vunpack.c.l.b16 %v248
  %v773 = vunpack.c.l.b16 %v249
  %v774 = vunpack.c.l.b16 %v250
  %v775 = vunpack.c.l.b16 %v251
  %v776 = vunpack.c.l.b16 %v252
  %v777 = vunpack.c.l.b16 %v253
  %v778 = vunpack.c.l.b16 %v254
  %v779 = vunpack.c.l.b16 %v255
  %v780 = vunpack.c.l.b16 %v256
  %v781 = vunpack.c.l.b16 %v257
  %v782 = vunpack.c.l.b16 %v258
  %v783 = vunpack.c.l.b16 %v259
  %v784 = vunpack.c.l.b16 %v260
  %v785 = vunpack.c.l.b16 %v261
  %v786 = vunpack.c.l.b16 %v262
  %v787 = vunpack.c.l.b16 %v263
  %v788 = vunpack.c.l.b16 %v264
  %v789 = vunpack.c.l.b16 %v265
  %v790 = vunpack.c.l.b16 %v266
  %v791 = vunpack.c.l.b16 %v267
  %v792 = vunpack.c.l.b16 %v268
  %v793 = vunpack.c.l.b16 %v269
  %v794 = vunpack.c.l.b16 %v270
  %v795 = vunpack.c.l.b16 %v271
  %v796 = vunpack.c.l.b16 %v272
  %v797 = vunpack.c.l.b16 %v273
  %v798 = vunpack.c.l.b16 %v274
  %v799 = vunpack.c.l.b16 %v275
  %v800 = vunpack.c.l.b16 %v276
  %v801 = vpack.c.b16 %v546, %v545
  %v802 = vpack.c.b16 %v548, %v547
  %v803 = vpack.c.b16 %v550, %v549
  %v804 = vpack.c.b16 %v552, %v551
  %v805 = vpack.c.b16 %v554, %v553
  %v806 = vpack.c.b16 %v556, %v555
  %v807 = vpack.c.b16 %v558, %v557
  %v808 = vpack.c.b16 %v560, %v559
  %v809 = vpack.c.b16 %v562, %v561
  %v810 = vpack.c.b16 %v564, %v563
  %v811 = vpack.c.b16 %v566, %v565
  %v812 = vpack.c.b16 %v568, %v567
  %v813 = vpack.c.b16 %v570, %v569
  %v814 = vpack.c.b16 %v572, %v571
  %v815 = vpack.c.b16 %v574, %v573
  %v816 = vpack.c.b16 %v576, %v575
  %v817 = vpack.c.b16 %v578, %v577
  %v818 = vpack.c.b16 %v580, %v579
  %v819 = vpack.c.b16 %v582, %v581
  %v820 = vpack.c.b16 %v584, %v583
  %v821 = vpack.c.b16 %v586, %v585
  %v822 = vpack.c.b16 %v588, %v587
  %v823 = vpack.c.b16 %v590, %v589
  %v824 = vpack.c.b16 %v592, %v591
  %v825 = vpack.c.b16 %v594, %v593
  %v826 = vpack.c.b16 %v596, %v595
  %v827 = vpack.c.b16 %v598, %v597
  %v828 = vpack.c.b16 %v600, %v599
  %v829 = vpack.c.b16 %v602, %v601
  %v830 = vpack.c.b16 %v604, %v603
  %v831 = vpack.c.b16 %v606, %v605
  %v832 = vpack.c.b16 %v608, %v607
  %v833 = vpack.c.b16 %v610, %v609
  %v834 = vpack.c.b16 %v612, %v611
  %v835 = vpack.c.b16 %v614, %v613
  %v836 = vpack.c.b16 %v616, %v615
  %v837 = vpack.c.b16 %v618, %v617
  %v838 = vpack.c.b16 %v620, %v619
  %v839 = vpack.c.b16 %v622, %v621
  %v840 = vpack.c.b16 %v624, %v623
  %v841 = vpack.c.b16 %v626, %v625
  %v842 = vpack.c.b16 %v628, %v627
  %v843 = vpack.c.b16 %v630, %v629
  %v844 = vpack.c.b16 %v632, %v631
  %v845 = vpack.c.b16 %v634, %v633
  %v846 = vpack.c.b16 %v636, %v635
  %v847 = vpack.c.b16 %v638, %v637
  %v848 = vpack.c.b16 %v640, %v639
  %v849 = vpack.c.b16 %v642, %v641
  %v850 = vpack.c.b16 %v644, %v643
  %v851 = vpack.c.b16 %v646, %v645
  %v852 = vpack.c.b16 %v648, %v647
  %v853 = vpack.c.b16 %v650, %v649
  %v854 = vpack.c.b16 %v652, %v651
  %v855 = vpack.c.b16 %v654, %v653
  %v856 = vpack.c.b16 %v656, %v655
  %v857 = vpack.c.b16 %v658, %v657
  %v858 = vpack.c.b16 %v660, %v659
  %v859 = vpack.c.b16 %v662, %v661
  %v860 = vpack.c.b16 %v664, %v663
  %v861 = vpack.c.b16 %v666, %v665
  %v862 = vpack.c.b16 %v668, %v667
  %v863 = vpack.c.b16 %v670, %v669
  %v864 = vpack.c.b16 %v672, %v671
  %v865 = vpack.c.b16 %v674, %v673
  %v866 = vpack.c.b16 %v676, %v675
  %v867 = vpack.c.b16 %v678, %v677
  %v868 = vpack.c.b16 %v680, %v679
  %v869 = vpack.c.b16 %v682, %v681
  %v870 = vpack.c.b16 %v684, %v683
  %v871 = vpack.c.b16 %v686, %v685
  %v872 = vpack.c.b16 %v688, %v687
  %v873 = vpack.c.b16 %v690, %v689
  %v874 = vpack.c.b16 %v692, %v691
  %v875 = vpack.c.b16 %v694, %v693
  %v876 = vpack.c.b16 %v696, %v695
  %v877 = vpack.c.b16 %v698, %v697
  %v878 = vpack.c.b16 %v700, %v699
  %v879 = vpack.c.b16 %v702, %v701
  %v880 = vpack.c.b16 %v704, %v703
  %v881 = vpack.c.b16 %v706, %v705
  %v882 = vpack.c.b16 %v708, %v707
  %v883 = vpack.c.b16 %v710, %v709
  %v884 = vpack.c.b16 %v712, %v711
  %v885 = vpack.c.b16 %v714, %v713
  %v886 = vpack.c.b16 %v716, %v715
  %v887 = vpack.c.b16 %v718, %v717
  %v888 = vpack.c.b16 %v720, %v719
  %v889 = vpack.c.b16 %v722, %v721
  %v890 = vpack.c.b16 %v724, %v723
  %v891 = vpack.c.b16 %v726, %v725
  %v892 = vpack.c.b16 %v728, %v727
  %v893 = vpack.c.b16 %v730, %v729
  %v894 = vpack.c.b16 %v732, %v731
  %v895 = vpack.c.b16 %v734, %v733
  %v896 = vpack.c.b16 %v736, %v735
  %v897 = vpack.c.b16 %v738, %v737
  %v898 = vpack.c.b16 %v740, %v739
  %v899 = vpack.c.b16 %v742, %v741
  %v900 = vpack.c.b16 %v744, %v743
  %v901 = vpack.c.b16 %v746, %v745
  %v902 = vpack.c.b16 %v748, %v747
  %v903 = vpack.c.b16 %v750, %v749
  %v904 = vpack.c.b16 %v752, %v751
  %v905 = vpack.c.b16 %v754, %v753
  %v906 = vpack.c.b16 %v756, %v755
  %v907 = vpack.c.b16 %v758, %v757
  %v908 = vpack.c.b16 %v760, %v759
  %v909 = vpack.c.b16 %v762, %v761
  %v910 = vpack.c.b16 %v764, %v763
  %v911 = vpack.c.b16 %v766, %v765
  %v912 = vpack.c.b16 %v768, %v767
  %v913 = vpack.c.b16 %v770, %v769
  %v914 = vpack.c.b16 %v772, %v771
  %v915 = vpack.c.b16 %v774, %v773
  %v916 = vpack.c.b16 %v776, %v775
  %v917 = vpack.c.b16 %v778, %v777
  %v918 = vpack.c.b16 %v780, %v779
  %v919 = vpack.c.b16 %v782, %v781
  %v920 = vpack.c.b16 %v784, %v783
  %v921 = vpack.c.b16 %v786, %v785
  %v922 = vpack.c.b16 %v788, %v787
  %v923 = vpack.c.b16 %v790, %v789
  %v924 = vpack.c.b16 %v792, %v791
  %v925 = vpack.c.b16 %v794, %v793
  %v926 = vpack.c.b16 %v796, %v795
  %v927 = vpack.c.b16 %v798, %v797
  %v928 = vpack.c.b16 %v800, %v799
  %v934 = vunpack.c.l.b16 %v277
  %v935 = vunpack.c.l.b16 %v278
  %v936 = vunpack.c.l.b16 %v279
  %v937 = vunpack.c.l.b16 %v280
  %v938 = vunpack.c.l.b16 %v281
  %v939 = vpack.c.b16 %v935, %v934
  %v940 = vpack.c.b16 %v937, %v936
  %v941 = vpack.c.b16 %v938, %v938
  %vm944 = vcmask 293888
  %v946 = vsel %vm944, %v801, 0
  %v949 = vsel %vm944, %v802, 0
  %v952 = vsel %vm944, %v803, 0
  %v955 = vsel %vm944, %v804, 0
  %v958 = vsel %vm944, %v805, 0
  %v961 = vsel %vm944, %v806, 0
  %v964 = vsel %vm944, %v807, 0
  %v967 = vsel %vm944, %v808, 0
  %v970 = vsel %vm944, %v809, 0
  %v973 = vsel %vm944, %v810, 0
  %v976 = vsel %vm944, %v811, 0
  %v979 = vsel %vm944, %v812, 0
  %v982 = vsel %vm944, %v813, 0
  %v985 = vsel %vm944, %v814, 0
  %v988 = vsel %vm944, %v815, 0
  %v991 = vsel %vm944, %v816, 0
  %v994 = vsel %vm944, %v817, 0
  %v997 = vsel %vm944, %v818, 0
  %v1000 = vsel %vm944, %v819, 0
  %v1003 = vsel %vm944, %v820, 0
  %v1006 = vsel %vm944, %v821, 0
  %v1009 = vsel %vm944, %v822, 0
  %v1012 = vsel %vm944, %v823, 0
  %v1015 = vsel %vm944, %v824, 0
  %v1018 = vsel %vm944, %v825, 0
  %v1021 = vsel %vm944, %v826, 0
  %v1024 = vsel %vm944, %v827, 0
  %v1027 = vsel %vm944, %v828, 0
  %v1030 = vsel %vm944, %v829, 0
  %v1033 = vsel %vm944, %v830, 0
  %v1036 = vsel %vm944, %v831, 0
  %v1039 = vsel %vm944, %v832, 0
  %v1042 = vsel %vm944, %v833, 0
  %v1045 = vsel %vm944, %v834, 0
  %v1048 = vsel %vm944, %v835, 0
  %v1051 = vsel %vm944, %v836, 0
  %v1054 = vsel %vm944, %v837, 0
  %v1057 = vsel %vm944, %v838, 0
  %v1060 = vsel %vm944, %v839, 0
  %v1063 = vsel %vm944, %v840, 0
  %v1066 = vsel %vm944, %v841, 0
  %v1069 = vsel %vm944, %v842, 0
  %v1072 = vsel %vm944, %v843, 0
  %v1075 = vsel %vm944, %v844, 0
  %v1078 = vsel %vm944, %v845, 0
  %v1081 = vsel %vm944, %v846, 0
  %v1084 = vsel %vm944, %v847, 0
  %v1087 = vsel %vm944, %v848, 0
  %v1090 = vsel %vm944, %v849, 0
  %v1093 = vsel %vm944, %v850, 0
  %v1096 = vsel %vm944, %v851, 0
  %v1099 = vsel %vm944, %v852, 0
  %v1102 = vsel %vm944, %v853, 0
  %v1105 = vsel %vm944, %v854, 0
  %v1108 = vsel %vm944, %v855, 0
  %v1111 = vsel %vm944, %v856, 0
  %v1114 = vsel %vm944, %v857, 0
  %v1117 = vsel %vm944, %v858, 0
  %v1120 = vsel %vm944, %v859, 0
  %v1123 = vsel %vm944, %v860, 0
  %v1126 = vsel %vm944, %v861, 0
  %v1129 = vsel %vm944, %v862, 0
  %v1132 = vsel %vm944, %v863, 0
  %v1135 = vsel %vm944, %v864, 0
  %v1138 = vsel %vm944, %v865, 0
  %v1141 = vsel %vm944, %v866, 0
  %v1144 = vsel %vm944, %v867, 0
  %v1147 = vsel %vm944, %v868, 0
  %v1150 = vsel %vm944, %v869, 0
  %v1153 = vsel %vm944, %v870, 0
  %v1156 = vsel %vm944, %v871, 0
  %v1159 = vsel %vm944, %v872, 0
  %v1162 = vsel %vm944, %v873, 0
  %v1165 = vsel %vm944, %v874, 0
  %v1168 = vsel %vm944, %v875, 0
  %v1171 = vsel %vm944, %v876, 0
  %v1174 = vsel %vm944, %v877, 0
  %v1177 = vsel %vm944, %v878, 0
  %v1180 = vsel %vm944, %v879, 0
  %v1183 = vsel %vm944, %v880, 0
  %v1186 = vsel %vm944, %v881, 0
  %v1189 = vsel %vm944, %v882, 0
  %v1192 = vsel %vm944, %v883, 0
  %v1195 = vsel %vm944, %v884, 0
  %v1198 = vsel %vm944, %v885, 0
  %v1201 = vsel %vm944, %v886, 0
  %v1204 = vsel %vm944, %v887, 0
  %v1207 = vsel %vm944, %v888, 0
  %v1210 = vsel %vm944, %v889, 0
  %v1213 = vsel %vm944, %v890, 0
  %v1216 = vsel %vm944, %v891, 0
  %v1219 = vsel %vm944, %v892, 0
  %v1222 = vsel %vm944, %v893, 0
  %v1225 = vsel %vm944, %v894, 0
  %v1228 = vsel %vm944, %v895, 0
  %v1231 = vsel %vm944, %v896, 0
  %v1234 = vsel %vm944, %v897, 0
  %v1237 = vsel %vm944, %v898, 0
  %v1240 = vsel %vm944, %v899, 0
  %v1243 = vsel %vm944, %v900, 0
  %v1246 = vsel %vm944, %v901, 0
  %v1249 = vsel %vm944, %v902, 0
  %v1252 = vsel %vm944, %v903, 0
  %v1255 = vsel %vm944, %v904, 0
  %v1258 = vsel %vm944, %v905, 0
  %v1261 = vsel %vm944, %v906, 0
  %v1264 = vsel %vm944, %v907, 0
  %v1267 = vsel %vm944, %v908, 0
  %v1270 = vsel %vm944, %v909, 0
  %v1273 = vsel %vm944, %v910, 0
  %v1276 = vsel %vm944, %v911, 0
  %v1279 = vsel %vm944, %v912, 0
  %v1282 = vsel %vm944, %v913, 0
  %v1285 = vsel %vm944, %v914, 0
  %v1288 = vsel %vm944, %v915, 0
  %v1291 = vsel %vm944, %v916, 0
  %v1294 = vsel %vm944, %v917, 0
  %v1297 = vsel %vm944, %v918, 0
  %v1300 = vsel %vm944, %v919, 0
  %v1303 = vsel %vm944, %v920, 0
  %v1306 = vsel %vm944, %v921, 0
  %v1309 = vsel %vm944, %v922, 0
  %v1312 = vsel %vm944, %v923, 0
  %v1315 = vsel %vm944, %v924, 0
  %v1318 = vsel %vm944, %v925, 0
  %v1321 = vsel %vm944, %v926, 0
  %v1324 = vsel %vm944, %v927, 0
  %v1327 = vsel %vm944, %v928, 0
  %vm1329 = vcmask 1041408
  %v1331 = vsel %vm1329, %v941, 0
  %1333 = vmatprep.subr.bf16.mxu0 0
  %1334 = vmatpush1.bf16.msra.mxu0 %v939
  %1335 = vmatprep.subr.bf16.mxu0 0
  %1336 = vmatpush1.bf16.msra.mxu0 %v940
  %1337 = vmatprep.subr.bf16.mxu0 0
  %1338 = vmatpush1.bf16.msra.mxu0 %v1331
  %1339 = vmatprep.subr.bf16.mxu0 0
  %1340 = vmatpush1.bf16.msra.mxu0 0
  %1341 = vmatprep.subr.bf16.mxu0 0
  %1342 = vmatpush1.bf16.msra.mxu0 0
  %1343 = vmatprep.subr.bf16.mxu0 0
  %1344 = vmatpush1.bf16.msra.mxu0 0
  %1345 = vmatprep.subr.bf16.mxu0 0
  %1346 = vmatpush1.bf16.msra.mxu0 0
  %1347 = vmatprep.subr.bf16.mxu0 0
  %1348 = vmatpush1.bf16.msra.mxu0 0
  %1349 = vmatprep.subr.bf16.mxu0 0
  %1350 = vmatpush1.bf16.msra.mxu0 0
  %1351 = vmatprep.subr.bf16.mxu0 0
  %1352 = vmatpush1.bf16.msra.mxu0 0
  %1353 = vmatprep.subr.bf16.mxu0 0
  %1354 = vmatpush1.bf16.msra.mxu0 0
  %1355 = vmatprep.subr.bf16.mxu0 0
  %1356 = vmatpush1.bf16.msra.mxu0 0
  %1357 = vmatprep.subr.bf16.mxu0 0
  %1358 = vmatpush1.bf16.msra.mxu0 0
  %1359 = vmatprep.subr.bf16.mxu0 0
  %1360 = vmatpush1.bf16.msra.mxu0 0
  %1361 = vmatprep.subr.bf16.mxu0 0
  %1362 = vmatpush1.bf16.msra.mxu0 0
  %1363 = vmatprep.subr.bf16.mxu0 0
  %1364 = vmatpush1.bf16.msra.mxu0 0
  %1365 = vmatprep.mubr.bf16.mxu0 0
  %1366 = vmatmul.mubr.bf16.gmra.mrb[0].mxu0 %v946
  %v1367 = vpop.f32.mrb[0].mxu0
  %v1368 = vadd.f32 %v287, %v1367
  %v1369 = vpop.f32.mrb[0].mxu0
  %v1370 = vpop.f32.mrb[0].mxu0
  %v1371 = vadd.f32 %v287, %v1370
  %v1372 = vpop.f32.mrb[0].mxu0
  %1373 = vmatprep.mubr.bf16.mxu0 0
  %1374 = vmatmul.mubr.bf16.gmra.mrb[0].mxu0 %v949
  %v1375 = vpop.f32.mrb[0].mxu0
  %v1376 = vadd.f32 %v287, %v1375
  %v1377 = vpop.f32.mrb[0].mxu0
  %v1378 = vpop.f32.mrb[0].mxu0
  %v1379 = vadd.f32 %v287, %v1378
  %v1380 = vpop.f32.mrb[0].mxu0
  %1381 = vmatprep.mubr.bf16.mxu0 0
  %1382 = vmatmul.mubr.bf16.gmra.mrb[0].mxu0 %v952
  %v1383 = vpop.f32.mrb[0].mxu0
  %v1384 = vadd.f32 %v287, %v1383
  %v1385 = vpop.f32.mrb[0].mxu0
  %v1386 = vpop.f32.mrb[0].mxu0
  %v1387 = vadd.f32 %v287, %v1386
  %v1388 = vpop.f32.mrb[0].mxu0
  %1389 = vmatprep.mubr.bf16.mxu0 0
  %1390 = vmatmul.mubr.bf16.gmra.mrb[0].mxu0 %v955
  %v1391 = vpop.f32.mrb[0].mxu0
  %v1392 = vadd.f32 %v287, %v1391
  %v1393 = vpop.f32.mrb[0].mxu0
  %v1394 = vpop.f32.mrb[0].mxu0
  %v1395 = vadd.f32 %v287, %v1394
  %v1396 = vpop.f32.mrb[0].mxu0
  %1397 = vmatprep.mubr.bf16.mxu0 0
  %1398 = vmatmul.mubr.bf16.gmra.mrb[0].mxu0 %v958
  %v1399 = vpop.f32.mrb[0].mxu0
  %v1400 = vadd.f32 %v287, %v1399
  %v1401 = vpop.f32.mrb[0].mxu0
  %v1402 = vpop.f32.mrb[0].mxu0
  %v1403 = vadd.f32 %v287, %v1402
  %v1404 = vpop.f32.mrb[0].mxu0
  %1405 = vmatprep.mubr.bf16.mxu0 0
  %1406 = vmatmul.mubr.bf16.gmra.mrb[0].mxu0 %v961
  %v1407 = vpop.f32.mrb[0].mxu0
  %v1408 = vadd.f32 %v287, %v1407
  %v1409 = vpop.f32.mrb[0].mxu0
  %v1410 = vpop.f32.mrb[0].mxu0
  %v1411 = vadd.f32 %v287, %v1410
  %v1412 = vpop.f32.mrb[0].mxu0
  %1413 = vmatprep.mubr.bf16.mxu0 0
  %1414 = vmatmul.mubr.bf16.gmra.mrb[0].mxu0 %v964
  %v1415 = vpop.f32.mrb[0].mxu0
  %v1416 = vadd.f32 %v287, %v1415
  %v1417 = vpop.f32.mrb[0].mxu0
  %v1418 = vpop.f32.mrb[0].mxu0
  %v1419 = vadd.f32 %v287, %v1418
  %v1420 = vpop.f32.mrb[0].mxu0
  %1421 = vmatprep.mubr.bf16.mxu0 0
  %1422 = vmatmul.mubr.bf16.gmra.mrb[0].mxu0 %v967
  %v1423 = vpop.f32.mrb[0].mxu0
  %v1424 = vadd.f32 %v287, %v1423
  %v1425 = vpop.f32.mrb[0].mxu0
  %v1426 = vpop.f32.mrb[0].mxu0
  %v1427 = vadd.f32 %v287, %v1426
  %v1428 = vpop.f32.mrb[0].mxu0
  %1429 = vmatprep.mubr.bf16.mxu0 0
  %1430 = vmatmul.mubr.bf16.gmra.mrb[0].mxu0 %v970
  %v1431 = vpop.f32.mrb[0].mxu0
  %v1432 = vadd.f32 %v287, %v1431
  %v1433 = vpop.f32.mrb[0].mxu0
  %v1434 = vpop.f32.mrb[0].mxu0
  %v1435 = vadd.f32 %v287, %v1434
  %v1436 = vpop.f32.mrb[0].mxu0
  %1437 = vmatprep.mubr.bf16.mxu0 0
  %1438 = vmatmul.mubr.bf16.gmra.mrb[0].mxu0 %v973
  %v1439 = vpop.f32.mrb[0].mxu0
  %v1440 = vadd.f32 %v287, %v1439
  %v1441 = vpop.f32.mrb[0].mxu0
  %v1442 = vpop.f32.mrb[0].mxu0
  %v1443 = vadd.f32 %v287, %v1442
  %v1444 = vpop.f32.mrb[0].mxu0
  %1445 = vmatprep.mubr.bf16.mxu0 0
  %1446 = vmatmul.mubr.bf16.gmra.mrb[0].mxu0 %v976
  %v1447 = vpop.f32.mrb[0].mxu0
  %v1448 = vadd.f32 %v287, %v1447
  %v1449 = vpop.f32.mrb[0].mxu0
  %v1450 = vpop.f32.mrb[0].mxu0
  %v1451 = vadd.f32 %v287, %v1450
  %v1452 = vpop.f32.mrb[0].mxu0
  %1453 = vmatprep.mubr.bf16.mxu0 0
  %1454 = vmatmul.mubr.bf16.gmra.mrb[0].mxu0 %v979
  %v1455 = vpop.f32.mrb[0].mxu0
  %v1456 = vadd.f32 %v287, %v1455
  %v1457 = vpop.f32.mrb[0].mxu0
  %v1458 = vpop.f32.mrb[0].mxu0
  %v1459 = vadd.f32 %v287, %v1458
  %v1460 = vpop.f32.mrb[0].mxu0
  %1461 = vmatprep.mubr.bf16.mxu0 0
  %1462 = vmatmul.mubr.bf16.gmra.mrb[0].mxu0 %v982
  %v1463 = vpop.f32.mrb[0].mxu0
  %v1464 = vadd.f32 %v287, %v1463
  %v1465 = vpop.f32.mrb[0].mxu0
  %v1466 = vpop.f32.mrb[0].mxu0
  %v1467 = vadd.f32 %v287, %v1466
  %v1468 = vpop.f32.mrb[0].mxu0
  %1469 = vmatprep.mubr.bf16.mxu0 0
  %1470 = vmatmul.mubr.bf16.gmra.mrb[0].mxu0 %v985
  %v1471 = vpop.f32.mrb[0].mxu0
  %v1472 = vadd.f32 %v287, %v1471
  %v1473 = vpop.f32.mrb[0].mxu0
  %v1474 = vpop.f32.mrb[0].mxu0
  %v1475 = vadd.f32 %v287, %v1474
  %v1476 = vpop.f32.mrb[0].mxu0
  %1477 = vmatprep.mubr.bf16.mxu0 0
  %1478 = vmatmul.mubr.bf16.gmra.mrb[0].mxu0 %v988
  %v1479 = vpop.f32.mrb[0].mxu0
  %v1480 = vadd.f32 %v287, %v1479
  %v1481 = vpop.f32.mrb[0].mxu0
  %v1482 = vpop.f32.mrb[0].mxu0
  %v1483 = vadd.f32 %v287, %v1482
  %v1484 = vpop.f32.mrb[0].mxu0
  %1485 = vmatprep.mubr.bf16.mxu0 0
  %1486 = vmatmul.mubr.bf16.gmra.mrb[0].mxu0 %v991
  %v1487 = vpop.f32.mrb[0].mxu0
  %v1488 = vadd.f32 %v287, %v1487
  %v1489 = vpop.f32.mrb[0].mxu0
  %v1490 = vpop.f32.mrb[0].mxu0
  %v1491 = vadd.f32 %v287, %v1490
  %v1492 = vpop.f32.mrb[0].mxu0
  %1493 = vmatprep.mubr.bf16.mxu0 0
  %1494 = vmatmul.mubr.bf16.gmra.mrb[0].mxu0 %v994
  %v1495 = vpop.f32.mrb[0].mxu0
  %v1496 = vadd.f32 %v287, %v1495
  %v1497 = vpop.f32.mrb[0].mxu0
  %v1498 = vpop.f32.mrb[0].mxu0
  %v1499 = vadd.f32 %v287, %v1498
  %v1500 = vpop.f32.mrb[0].mxu0
  %1501 = vmatprep.mubr.bf16.mxu0 0
  %1502 = vmatmul.mubr.bf16.gmra.mrb[0].mxu0 %v997
  %v1503 = vpop.f32.mrb[0].mxu0
  %v1504 = vadd.f32 %v287, %v1503
  %v1505 = vpop.f32.mrb[0].mxu0
  %v1506 = vpop.f32.mrb[0].mxu0
  %v1507 = vadd.f32 %v287, %v1506
  %v1508 = vpop.f32.mrb[0].mxu0
  %1509 = vmatprep.mubr.bf16.mxu0 0
  %1510 = vmatmul.mubr.bf16.gmra.mrb[0].mxu0 %v1000
  %v1511 = vpop.f32.mrb[0].mxu0
  %v1512 = vadd.f32 %v287, %v1511
  %v1513 = vpop.f32.mrb[0].mxu0
  %v1514 = vpop.f32.mrb[0].mxu0
  %v1515 = vadd.f32 %v287, %v1514
  %v1516 = vpop.f32.mrb[0].mxu0
  %1517 = vmatprep.mubr.bf16.mxu0 0
  %1518 = vmatmul.mubr.bf16.gmra.mrb[0].mxu0 %v1003
  %v1519 = vpop.f32.mrb[0].mxu0
  %v1520 = vadd.f32 %v287, %v1519
  %v1521 = vpop.f32.mrb[0].mxu0
  %v1522 = vpop.f32.mrb[0].mxu0
  %v1523 = vadd.f32 %v287, %v1522
  %v1524 = vpop.f32.mrb[0].mxu0
  %1525 = vmatprep.mubr.bf16.mxu0 0
  %1526 = vmatmul.mubr.bf16.gmra.mrb[0].mxu0 %v1006
  %v1527 = vpop.f32.mrb[0].mxu0
  %v1528 = vadd.f32 %v287, %v1527
  %v1529 = vpop.f32.mrb[0].mxu0
  %v1530 = vpop.f32.mrb[0].mxu0
  %v1531 = vadd.f32 %v287, %v1530
  %v1532 = vpop.f32.mrb[0].mxu0
  %1533 = vmatprep.mubr.bf16.mxu0 0
  %1534 = vmatmul.mubr.bf16.gmra.mrb[0].mxu0 %v1009
  %v1535 = vpop.f32.mrb[0].mxu0
  %v1536 = vadd.f32 %v287, %v1535
  %v1537 = vpop.f32.mrb[0].mxu0
  %v1538 = vpop.f32.mrb[0].mxu0
  %v1539 = vadd.f32 %v287, %v1538
  %v1540 = vpop.f32.mrb[0].mxu0
  %1541 = vmatprep.mubr.bf16.mxu0 0
  %1542 = vmatmul.mubr.bf16.gmra.mrb[0].mxu0 %v1012
  %v1543 = vpop.f32.mrb[0].mxu0
  %v1544 = vadd.f32 %v287, %v1543
  %v1545 = vpop.f32.mrb[0].mxu0
  %v1546 = vpop.f32.mrb[0].mxu0
  %v1547 = vadd.f32 %v287, %v1546
  %v1548 = vpop.f32.mrb[0].mxu0
  %1549 = vmatprep.mubr.bf16.mxu0 0
  %1550 = vmatmul.mubr.bf16.gmra.mrb[0].mxu0 %v1015
  %v1551 = vpop.f32.mrb[0].mxu0
  %v1552 = vadd.f32 %v287, %v1551
  %v1553 = vpop.f32.mrb[0].mxu0
  %v1554 = vpop.f32.mrb[0].mxu0
  %v1555 = vadd.f32 %v287, %v1554
  %v1556 = vpop.f32.mrb[0].mxu0
  %1557 = vmatprep.mubr.bf16.mxu0 0
  %1558 = vmatmul.mubr.bf16.gmra.mrb[0].mxu0 %v1018
  %v1559 = vpop.f32.mrb[0].mxu0
  %v1560 = vadd.f32 %v287, %v1559
  %v1561 = vpop.f32.mrb[0].mxu0
  %v1562 = vpop.f32.mrb[0].mxu0
  %v1563 = vadd.f32 %v287, %v1562
  %v1564 = vpop.f32.mrb[0].mxu0
  %1565 = vmatprep.mubr.bf16.mxu0 0
  %1566 = vmatmul.mubr.bf16.gmra.mrb[0].mxu0 %v1021
  %v1567 = vpop.f32.mrb[0].mxu0
  %v1568 = vadd.f32 %v287, %v1567
  %v1569 = vpop.f32.mrb[0].mxu0
  %v1570 = vpop.f32.mrb[0].mxu0
  %v1571 = vadd.f32 %v287, %v1570
  %v1572 = vpop.f32.mrb[0].mxu0
  %1573 = vmatprep.mubr.bf16.mxu0 0
  %1574 = vmatmul.mubr.bf16.gmra.mrb[0].mxu0 %v1024
  %v1575 = vpop.f32.mrb[0].mxu0
  %v1576 = vadd.f32 %v287, %v1575
  %v1577 = vpop.f32.mrb[0].mxu0
  %v1578 = vpop.f32.mrb[0].mxu0
  %v1579 = vadd.f32 %v287, %v1578
  %v1580 = vpop.f32.mrb[0].mxu0
  %1581 = vmatprep.mubr.bf16.mxu0 0
  %1582 = vmatmul.mubr.bf16.gmra.mrb[0].mxu0 %v1027
  %v1583 = vpop.f32.mrb[0].mxu0
  %v1584 = vadd.f32 %v287, %v1583
  %v1585 = vpop.f32.mrb[0].mxu0
  %v1586 = vpop.f32.mrb[0].mxu0
  %v1587 = vadd.f32 %v287, %v1586
  %v1588 = vpop.f32.mrb[0].mxu0
  %1589 = vmatprep.mubr.bf16.mxu0 0
  %1590 = vmatmul.mubr.bf16.gmra.mrb[0].mxu0 %v1030
  %v1591 = vpop.f32.mrb[0].mxu0
  %v1592 = vadd.f32 %v287, %v1591
  %v1593 = vpop.f32.mrb[0].mxu0
  %v1594 = vpop.f32.mrb[0].mxu0
  %v1595 = vadd.f32 %v287, %v1594
  %v1596 = vpop.f32.mrb[0].mxu0
  %1597 = vmatprep.mubr.bf16.mxu0 0
  %1598 = vmatmul.mubr.bf16.gmra.mrb[0].mxu0 %v1033
  %v1599 = vpop.f32.mrb[0].mxu0
  %v1600 = vadd.f32 %v287, %v1599
  %v1601 = vpop.f32.mrb[0].mxu0
  %v1602 = vpop.f32.mrb[0].mxu0
  %v1603 = vadd.f32 %v287, %v1602
  %v1604 = vpop.f32.mrb[0].mxu0
  %1605 = vmatprep.mubr.bf16.mxu0 0
  %1606 = vmatmul.mubr.bf16.gmra.mrb[0].mxu0 %v1036
  %v1607 = vpop.f32.mrb[0].mxu0
  %v1608 = vadd.f32 %v287, %v1607
  %v1609 = vpop.f32.mrb[0].mxu0
  %v1610 = vpop.f32.mrb[0].mxu0
  %v1611 = vadd.f32 %v287, %v1610
  %v1612 = vpop.f32.mrb[0].mxu0
  %1613 = vmatprep.mubr.bf16.mxu0 0
  %1614 = vmatmul.mubr.bf16.gmra.mrb[0].mxu0 %v1039
  %v1615 = vpop.f32.mrb[0].mxu0
  %v1616 = vadd.f32 %v287, %v1615
  %v1617 = vpop.f32.mrb[0].mxu0
  %v1618 = vpop.f32.mrb[0].mxu0
  %v1619 = vadd.f32 %v287, %v1618
  %v1620 = vpop.f32.mrb[0].mxu0
  %1621 = vmatprep.mubr.bf16.mxu0 0
  %1622 = vmatmul.mubr.bf16.gmra.mrb[0].mxu0 %v1042
  %v1623 = vpop.f32.mrb[0].mxu0
  %v1624 = vadd.f32 %v287, %v1623
  %v1625 = vpop.f32.mrb[0].mxu0
  %v1626 = vpop.f32.mrb[0].mxu0
  %v1627 = vadd.f32 %v287, %v1626
  %v1628 = vpop.f32.mrb[0].mxu0
  %1629 = vmatprep.mubr.bf16.mxu0 0
  %1630 = vmatmul.mubr.bf16.gmra.mrb[0].mxu0 %v1045
  %v1631 = vpop.f32.mrb[0].mxu0
  %v1632 = vadd.f32 %v287, %v1631
  %v1633 = vpop.f32.mrb[0].mxu0
  %v1634 = vpop.f32.mrb[0].mxu0
  %v1635 = vadd.f32 %v287, %v1634
  %v1636 = vpop.f32.mrb[0].mxu0
  %1637 = vmatprep.mubr.bf16.mxu0 0
  %1638 = vmatmul.mubr.bf16.gmra.mrb[0].mxu0 %v1048
  %v1639 = vpop.f32.mrb[0].mxu0
  %v1640 = vadd.f32 %v287, %v1639
  %v1641 = vpop.f32.mrb[0].mxu0
  %v1642 = vpop.f32.mrb[0].mxu0
  %v1643 = vadd.f32 %v287, %v1642
  %v1644 = vpop.f32.mrb[0].mxu0
  %1645 = vmatprep.mubr.bf16.mxu0 0
  %1646 = vmatmul.mubr.bf16.gmra.mrb[0].mxu0 %v1051
  %v1647 = vpop.f32.mrb[0].mxu0
  %v1648 = vadd.f32 %v287, %v1647
  %v1649 = vpop.f32.mrb[0].mxu0
  %v1650 = vpop.f32.mrb[0].mxu0
  %v1651 = vadd.f32 %v287, %v1650
  %v1652 = vpop.f32.mrb[0].mxu0
  %1653 = vmatprep.mubr.bf16.mxu0 0
  %1654 = vmatmul.mubr.bf16.gmra.mrb[0].mxu0 %v1054
  %v1655 = vpop.f32.mrb[0].mxu0
  %v1656 = vadd.f32 %v287, %v1655
  %v1657 = vpop.f32.mrb[0].mxu0
  %v1658 = vpop.f32.mrb[0].mxu0
  %v1659 = vadd.f32 %v287, %v1658
  %v1660 = vpop.f32.mrb[0].mxu0
  %1661 = vmatprep.mubr.bf16.mxu0 0
  %1662 = vmatmul.mubr.bf16.gmra.mrb[0].mxu0 %v1057
  %v1663 = vpop.f32.mrb[0].mxu0
  %v1664 = vadd.f32 %v287, %v1663
  %v1665 = vpop.f32.mrb[0].mxu0
  %v1666 = vpop.f32.mrb[0].mxu0
  %v1667 = vadd.f32 %v287, %v1666
  %v1668 = vpop.f32.mrb[0].mxu0
  %1669 = vmatprep.mubr.bf16.mxu0 0
  %1670 = vmatmul.mubr.bf16.gmra.mrb[0].mxu0 %v1060
  %v1671 = vpop.f32.mrb[0].mxu0
  %v1672 = vadd.f32 %v287, %v1671
  %v1673 = vpop.f32.mrb[0].mxu0
  %v1674 = vpop.f32.mrb[0].mxu0
  %v1675 = vadd.f32 %v287, %v1674
  %v1676 = vpop.f32.mrb[0].mxu0
  %1677 = vmatprep.mubr.bf16.mxu0 0
  %1678 = vmatmul.mubr.bf16.gmra.mrb[0].mxu0 %v1063
  %v1679 = vpop.f32.mrb[0].mxu0
  %v1680 = vadd.f32 %v287, %v1679
  %v1681 = vpop.f32.mrb[0].mxu0
  %v1682 = vpop.f32.mrb[0].mxu0
  %v1683 = vadd.f32 %v287, %v1682
  %v1684 = vpop.f32.mrb[0].mxu0
  %1685 = vmatprep.mubr.bf16.mxu0 0
  %1686 = vmatmul.mubr.bf16.gmra.mrb[0].mxu0 %v1066
  %v1687 = vpop.f32.mrb[0].mxu0
  %v1688 = vadd.f32 %v287, %v1687
  %v1689 = vpop.f32.mrb[0].mxu0
  %v1690 = vpop.f32.mrb[0].mxu0
  %v1691 = vadd.f32 %v287, %v1690
  %v1692 = vpop.f32.mrb[0].mxu0
  %1693 = vmatprep.mubr.bf16.mxu0 0
  %1694 = vmatmul.mubr.bf16.gmra.mrb[0].mxu0 %v1069
  %v1695 = vpop.f32.mrb[0].mxu0
  %v1696 = vadd.f32 %v287, %v1695
  %v1697 = vpop.f32.mrb[0].mxu0
  %v1698 = vpop.f32.mrb[0].mxu0
  %v1699 = vadd.f32 %v287, %v1698
  %v1700 = vpop.f32.mrb[0].mxu0
  %1701 = vmatprep.mubr.bf16.mxu0 0
  %1702 = vmatmul.mubr.bf16.gmra.mrb[0].mxu0 %v1072
  %v1703 = vpop.f32.mrb[0].mxu0
  %v1704 = vadd.f32 %v287, %v1703
  %v1705 = vpop.f32.mrb[0].mxu0
  %v1706 = vpop.f32.mrb[0].mxu0
  %v1707 = vadd.f32 %v287, %v1706
  %v1708 = vpop.f32.mrb[0].mxu0
  %1709 = vmatprep.mubr.bf16.mxu0 0
  %1710 = vmatmul.mubr.bf16.gmra.mrb[0].mxu0 %v1075
  %v1711 = vpop.f32.mrb[0].mxu0
  %v1712 = vadd.f32 %v287, %v1711
  %v1713 = vpop.f32.mrb[0].mxu0
  %v1714 = vpop.f32.mrb[0].mxu0
  %v1715 = vadd.f32 %v287, %v1714
  %v1716 = vpop.f32.mrb[0].mxu0
  %1717 = vmatprep.mubr.bf16.mxu0 0
  %1718 = vmatmul.mubr.bf16.gmra.mrb[0].mxu0 %v1078
  %v1719 = vpop.f32.mrb[0].mxu0
  %v1720 = vadd.f32 %v287, %v1719
  %v1721 = vpop.f32.mrb[0].mxu0
  %v1722 = vpop.f32.mrb[0].mxu0
  %v1723 = vadd.f32 %v287, %v1722
  %v1724 = vpop.f32.mrb[0].mxu0
  %1725 = vmatprep.mubr.bf16.mxu0 0
  %1726 = vmatmul.mubr.bf16.gmra.mrb[0].mxu0 %v1081
  %v1727 = vpop.f32.mrb[0].mxu0
  %v1728 = vadd.f32 %v287, %v1727
  %v1729 = vpop.f32.mrb[0].mxu0
  %v1730 = vpop.f32.mrb[0].mxu0
  %v1731 = vadd.f32 %v287, %v1730
  %v1732 = vpop.f32.mrb[0].mxu0
  %1733 = vmatprep.mubr.bf16.mxu0 0
  %1734 = vmatmul.mubr.bf16.gmra.mrb[0].mxu0 %v1084
  %v1735 = vpop.f32.mrb[0].mxu0
  %v1736 = vadd.f32 %v287, %v1735
  %v1737 = vpop.f32.mrb[0].mxu0
  %v1738 = vpop.f32.mrb[0].mxu0
  %v1739 = vadd.f32 %v287, %v1738
  %v1740 = vpop.f32.mrb[0].mxu0
  %1741 = vmatprep.mubr.bf16.mxu0 0
  %1742 = vmatmul.mubr.bf16.gmra.mrb[0].mxu0 %v1087
  %v1743 = vpop.f32.mrb[0].mxu0
  %v1744 = vadd.f32 %v287, %v1743
  %v1745 = vpop.f32.mrb[0].mxu0
  %v1746 = vpop.f32.mrb[0].mxu0
  %v1747 = vadd.f32 %v287, %v1746
  %v1748 = vpop.f32.mrb[0].mxu0
  %1749 = vmatprep.mubr.bf16.mxu0 0
  %1750 = vmatmul.mubr.bf16.gmra.mrb[0].mxu0 %v1090
  %v1751 = vpop.f32.mrb[0].mxu0
  %v1752 = vadd.f32 %v287, %v1751
  %v1753 = vpop.f32.mrb[0].mxu0
  %v1754 = vpop.f32.mrb[0].mxu0
  %v1755 = vadd.f32 %v287, %v1754
  %v1756 = vpop.f32.mrb[0].mxu0
  %1757 = vmatprep.mubr.bf16.mxu0 0
  %1758 = vmatmul.mubr.bf16.gmra.mrb[0].mxu0 %v1093
  %v1759 = vpop.f32.mrb[0].mxu0
  %v1760 = vadd.f32 %v287, %v1759
  %v1761 = vpop.f32.mrb[0].mxu0
  %v1762 = vpop.f32.mrb[0].mxu0
  %v1763 = vadd.f32 %v287, %v1762
  %v1764 = vpop.f32.mrb[0].mxu0
  %1765 = vmatprep.mubr.bf16.mxu0 0
  %1766 = vmatmul.mubr.bf16.gmra.mrb[0].mxu0 %v1096
  %v1767 = vpop.f32.mrb[0].mxu0
  %v1768 = vadd.f32 %v287, %v1767
  %v1769 = vpop.f32.mrb[0].mxu0
  %v1770 = vpop.f32.mrb[0].mxu0
  %v1771 = vadd.f32 %v287, %v1770
  %v1772 = vpop.f32.mrb[0].mxu0
  %1773 = vmatprep.mubr.bf16.mxu0 0
  %1774 = vmatmul.mubr.bf16.gmra.mrb[0].mxu0 %v1099
  %v1775 = vpop.f32.mrb[0].mxu0
  %v1776 = vadd.f32 %v287, %v1775
  %v1777 = vpop.f32.mrb[0].mxu0
  %v1778 = vpop.f32.mrb[0].mxu0
  %v1779 = vadd.f32 %v287, %v1778
  %v1780 = vpop.f32.mrb[0].mxu0
  %1781 = vmatprep.mubr.bf16.mxu0 0
  %1782 = vmatmul.mubr.bf16.gmra.mrb[0].mxu0 %v1102
  %v1783 = vpop.f32.mrb[0].mxu0
  %v1784 = vadd.f32 %v287, %v1783
  %v1785 = vpop.f32.mrb[0].mxu0
  %v1786 = vpop.f32.mrb[0].mxu0
  %v1787 = vadd.f32 %v287, %v1786
  %v1788 = vpop.f32.mrb[0].mxu0
  %1789 = vmatprep.mubr.bf16.mxu0 0
  %1790 = vmatmul.mubr.bf16.gmra.mrb[0].mxu0 %v1105
  %v1791 = vpop.f32.mrb[0].mxu0
  %v1792 = vadd.f32 %v287, %v1791
  %v1793 = vpop.f32.mrb[0].mxu0
  %v1794 = vpop.f32.mrb[0].mxu0
  %v1795 = vadd.f32 %v287, %v1794
  %v1796 = vpop.f32.mrb[0].mxu0
  %1797 = vmatprep.mubr.bf16.mxu0 0
  %1798 = vmatmul.mubr.bf16.gmra.mrb[0].mxu0 %v1108
  %v1799 = vpop.f32.mrb[0].mxu0
  %v1800 = vadd.f32 %v287, %v1799
  %v1801 = vpop.f32.mrb[0].mxu0
  %v1802 = vpop.f32.mrb[0].mxu0
  %v1803 = vadd.f32 %v287, %v1802
  %v1804 = vpop.f32.mrb[0].mxu0
  %1805 = vmatprep.mubr.bf16.mxu0 0
  %1806 = vmatmul.mubr.bf16.gmra.mrb[0].mxu0 %v1111
  %v1807 = vpop.f32.mrb[0].mxu0
  %v1808 = vadd.f32 %v287, %v1807
  %v1809 = vpop.f32.mrb[0].mxu0
  %v1810 = vpop.f32.mrb[0].mxu0
  %v1811 = vadd.f32 %v287, %v1810
  %v1812 = vpop.f32.mrb[0].mxu0
  %1813 = vmatprep.mubr.bf16.mxu0 0
  %1814 = vmatmul.mubr.bf16.gmra.mrb[0].mxu0 %v1114
  %v1815 = vpop.f32.mrb[0].mxu0
  %v1816 = vadd.f32 %v287, %v1815
  %v1817 = vpop.f32.mrb[0].mxu0
  %v1818 = vpop.f32.mrb[0].mxu0
  %v1819 = vadd.f32 %v287, %v1818
  %v1820 = vpop.f32.mrb[0].mxu0
  %1821 = vmatprep.mubr.bf16.mxu0 0
  %1822 = vmatmul.mubr.bf16.gmra.mrb[0].mxu0 %v1117
  %v1823 = vpop.f32.mrb[0].mxu0
  %v1824 = vadd.f32 %v287, %v1823
  %v1825 = vpop.f32.mrb[0].mxu0
  %v1826 = vpop.f32.mrb[0].mxu0
  %v1827 = vadd.f32 %v287, %v1826
  %v1828 = vpop.f32.mrb[0].mxu0
  %1829 = vmatprep.mubr.bf16.mxu0 0
  %1830 = vmatmul.mubr.bf16.gmra.mrb[0].mxu0 %v1120
  %v1831 = vpop.f32.mrb[0].mxu0
  %v1832 = vadd.f32 %v287, %v1831
  %v1833 = vpop.f32.mrb[0].mxu0
  %v1834 = vpop.f32.mrb[0].mxu0
  %v1835 = vadd.f32 %v287, %v1834
  %v1836 = vpop.f32.mrb[0].mxu0
  %1837 = vmatprep.mubr.bf16.mxu0 0
  %1838 = vmatmul.mubr.bf16.gmra.mrb[0].mxu0 %v1123
  %v1839 = vpop.f32.mrb[0].mxu0
  %v1840 = vadd.f32 %v287, %v1839
  %v1841 = vpop.f32.mrb[0].mxu0
  %v1842 = vpop.f32.mrb[0].mxu0
  %v1843 = vadd.f32 %v287, %v1842
  %v1844 = vpop.f32.mrb[0].mxu0
  %1845 = vmatprep.mubr.bf16.mxu0 0
  %1846 = vmatmul.mubr.bf16.gmra.mrb[0].mxu0 %v1126
  %v1847 = vpop.f32.mrb[0].mxu0
  %v1848 = vadd.f32 %v287, %v1847
  %v1849 = vpop.f32.mrb[0].mxu0
  %v1850 = vpop.f32.mrb[0].mxu0
  %v1851 = vadd.f32 %v287, %v1850
  %v1852 = vpop.f32.mrb[0].mxu0
  %1853 = vmatprep.mubr.bf16.mxu0 0
  %1854 = vmatmul.mubr.bf16.gmra.mrb[0].mxu0 %v1129
  %v1855 = vpop.f32.mrb[0].mxu0
  %v1856 = vadd.f32 %v287, %v1855
  %v1857 = vpop.f32.mrb[0].mxu0
  %v1858 = vpop.f32.mrb[0].mxu0
  %v1859 = vadd.f32 %v287, %v1858
  %v1860 = vpop.f32.mrb[0].mxu0
  %1861 = vmatprep.mubr.bf16.mxu0 0
  %1862 = vmatmul.mubr.bf16.gmra.mrb[0].mxu0 %v1132
  %v1863 = vpop.f32.mrb[0].mxu0
  %v1864 = vadd.f32 %v287, %v1863
  %v1865 = vpop.f32.mrb[0].mxu0
  %v1866 = vpop.f32.mrb[0].mxu0
  %v1867 = vadd.f32 %v287, %v1866
  %v1868 = vpop.f32.mrb[0].mxu0
  %1869 = vmatprep.mubr.bf16.mxu0 0
  %1870 = vmatmul.mubr.bf16.gmra.mrb[0].mxu0 %v1135
  %v1871 = vpop.f32.mrb[0].mxu0
  %v1872 = vadd.f32 %v287, %v1871
  %v1873 = vpop.f32.mrb[0].mxu0
  %v1874 = vpop.f32.mrb[0].mxu0
  %v1875 = vadd.f32 %v287, %v1874
  %v1876 = vpop.f32.mrb[0].mxu0
  %1877 = vmatprep.mubr.bf16.mxu0 0
  %1878 = vmatmul.mubr.bf16.gmra.mrb[0].mxu0 %v1138
  %v1879 = vpop.f32.mrb[0].mxu0
  %v1880 = vadd.f32 %v287, %v1879
  %v1881 = vpop.f32.mrb[0].mxu0
  %v1882 = vpop.f32.mrb[0].mxu0
  %v1883 = vadd.f32 %v287, %v1882
  %v1884 = vpop.f32.mrb[0].mxu0
  %1885 = vmatprep.mubr.bf16.mxu0 0
  %1886 = vmatmul.mubr.bf16.gmra.mrb[0].mxu0 %v1141
  %v1887 = vpop.f32.mrb[0].mxu0
  %v1888 = vadd.f32 %v287, %v1887
  %v1889 = vpop.f32.mrb[0].mxu0
  %v1890 = vpop.f32.mrb[0].mxu0
  %v1891 = vadd.f32 %v287, %v1890
  %v1892 = vpop.f32.mrb[0].mxu0
  %1893 = vmatprep.mubr.bf16.mxu0 0
  %1894 = vmatmul.mubr.bf16.gmra.mrb[0].mxu0 %v1144
  %v1895 = vpop.f32.mrb[0].mxu0
  %v1896 = vadd.f32 %v287, %v1895
  %v1897 = vpop.f32.mrb[0].mxu0
  %v1898 = vpop.f32.mrb[0].mxu0
  %v1899 = vadd.f32 %v287, %v1898
  %v1900 = vpop.f32.mrb[0].mxu0
  %1901 = vmatprep.mubr.bf16.mxu0 0
  %1902 = vmatmul.mubr.bf16.gmra.mrb[0].mxu0 %v1147
  %v1903 = vpop.f32.mrb[0].mxu0
  %v1904 = vadd.f32 %v287, %v1903
  %v1905 = vpop.f32.mrb[0].mxu0
  %v1906 = vpop.f32.mrb[0].mxu0
  %v1907 = vadd.f32 %v287, %v1906
  %v1908 = vpop.f32.mrb[0].mxu0
  %1909 = vmatprep.mubr.bf16.mxu0 0
  %1910 = vmatmul.mubr.bf16.gmra.mrb[0].mxu0 %v1150
  %v1911 = vpop.f32.mrb[0].mxu0
  %v1912 = vadd.f32 %v287, %v1911
  %v1913 = vpop.f32.mrb[0].mxu0
  %v1914 = vpop.f32.mrb[0].mxu0
  %v1915 = vadd.f32 %v287, %v1914
  %v1916 = vpop.f32.mrb[0].mxu0
  %1917 = vmatprep.mubr.bf16.mxu0 0
  %1918 = vmatmul.mubr.bf16.gmra.mrb[0].mxu0 %v1153
  %v1919 = vpop.f32.mrb[0].mxu0
  %v1920 = vadd.f32 %v287, %v1919
  %v1921 = vpop.f32.mrb[0].mxu0
  %v1922 = vpop.f32.mrb[0].mxu0
  %v1923 = vadd.f32 %v287, %v1922
  %v1924 = vpop.f32.mrb[0].mxu0
  %1925 = vmatprep.mubr.bf16.mxu0 0
  %1926 = vmatmul.mubr.bf16.gmra.mrb[0].mxu0 %v1156
  %v1927 = vpop.f32.mrb[0].mxu0
  %v1928 = vadd.f32 %v287, %v1927
  %v1929 = vpop.f32.mrb[0].mxu0
  %v1930 = vpop.f32.mrb[0].mxu0
  %v1931 = vadd.f32 %v287, %v1930
  %v1932 = vpop.f32.mrb[0].mxu0
  %1933 = vmatprep.mubr.bf16.mxu0 0
  %1934 = vmatmul.mubr.bf16.gmra.mrb[0].mxu0 %v1159
  %v1935 = vpop.f32.mrb[0].mxu0
  %v1936 = vadd.f32 %v287, %v1935
  %v1937 = vpop.f32.mrb[0].mxu0
  %v1938 = vpop.f32.mrb[0].mxu0
  %v1939 = vadd.f32 %v287, %v1938
  %v1940 = vpop.f32.mrb[0].mxu0
  %1941 = vmatprep.mubr.bf16.mxu0 0
  %1942 = vmatmul.mubr.bf16.gmra.mrb[0].mxu0 %v1162
  %v1943 = vpop.f32.mrb[0].mxu0
  %v1944 = vadd.f32 %v287, %v1943
  %v1945 = vpop.f32.mrb[0].mxu0
  %v1946 = vpop.f32.mrb[0].mxu0
  %v1947 = vadd.f32 %v287, %v1946
  %v1948 = vpop.f32.mrb[0].mxu0
  %1949 = vmatprep.mubr.bf16.mxu0 0
  %1950 = vmatmul.mubr.bf16.gmra.mrb[0].mxu0 %v1165
  %v1951 = vpop.f32.mrb[0].mxu0
  %v1952 = vadd.f32 %v287, %v1951
  %v1953 = vpop.f32.mrb[0].mxu0
  %v1954 = vpop.f32.mrb[0].mxu0
  %v1955 = vadd.f32 %v287, %v1954
  %v1956 = vpop.f32.mrb[0].mxu0
  %1957 = vmatprep.mubr.bf16.mxu0 0
  %1958 = vmatmul.mubr.bf16.gmra.mrb[0].mxu0 %v1168
  %v1959 = vpop.f32.mrb[0].mxu0
  %v1960 = vadd.f32 %v287, %v1959
  %v1961 = vpop.f32.mrb[0].mxu0
  %v1962 = vpop.f32.mrb[0].mxu0
  %v1963 = vadd.f32 %v287, %v1962
  %v1964 = vpop.f32.mrb[0].mxu0
  %1965 = vmatprep.mubr.bf16.mxu0 0
  %1966 = vmatmul.mubr.bf16.gmra.mrb[0].mxu0 %v1171
  %v1967 = vpop.f32.mrb[0].mxu0
  %v1968 = vadd.f32 %v287, %v1967
  %v1969 = vpop.f32.mrb[0].mxu0
  %v1970 = vpop.f32.mrb[0].mxu0
  %v1971 = vadd.f32 %v287, %v1970
  %v1972 = vpop.f32.mrb[0].mxu0
  %1973 = vmatprep.mubr.bf16.mxu0 0
  %1974 = vmatmul.mubr.bf16.gmra.mrb[0].mxu0 %v1174
  %v1975 = vpop.f32.mrb[0].mxu0
  %v1976 = vadd.f32 %v287, %v1975
  %v1977 = vpop.f32.mrb[0].mxu0
  %v1978 = vpop.f32.mrb[0].mxu0
  %v1979 = vadd.f32 %v287, %v1978
  %v1980 = vpop.f32.mrb[0].mxu0
  %1981 = vmatprep.mubr.bf16.mxu0 0
  %1982 = vmatmul.mubr.bf16.gmra.mrb[0].mxu0 %v1177
  %v1983 = vpop.f32.mrb[0].mxu0
  %v1984 = vadd.f32 %v287, %v1983
  %v1985 = vpop.f32.mrb[0].mxu0
  %v1986 = vpop.f32.mrb[0].mxu0
  %v1987 = vadd.f32 %v287, %v1986
  %v1988 = vpop.f32.mrb[0].mxu0
  %1989 = vmatprep.mubr.bf16.mxu0 0
  %1990 = vmatmul.mubr.bf16.gmra.mrb[0].mxu0 %v1180
  %v1991 = vpop.f32.mrb[0].mxu0
  %v1992 = vadd.f32 %v287, %v1991
  %v1993 = vpop.f32.mrb[0].mxu0
  %v1994 = vpop.f32.mrb[0].mxu0
  %v1995 = vadd.f32 %v287, %v1994
  %v1996 = vpop.f32.mrb[0].mxu0
  %1997 = vmatprep.mubr.bf16.mxu0 0
  %1998 = vmatmul.mubr.bf16.gmra.mrb[0].mxu0 %v1183
  %v1999 = vpop.f32.mrb[0].mxu0
  %v2000 = vadd.f32 %v287, %v1999
  %v2001 = vpop.f32.mrb[0].mxu0
  %v2002 = vpop.f32.mrb[0].mxu0
  %v2003 = vadd.f32 %v287, %v2002
  %v2004 = vpop.f32.mrb[0].mxu0
  %2005 = vmatprep.mubr.bf16.mxu0 0
  %2006 = vmatmul.mubr.bf16.gmra.mrb[0].mxu0 %v1186
  %v2007 = vpop.f32.mrb[0].mxu0
  %v2008 = vadd.f32 %v287, %v2007
  %v2009 = vpop.f32.mrb[0].mxu0
  %v2010 = vpop.f32.mrb[0].mxu0
  %v2011 = vadd.f32 %v287, %v2010
  %v2012 = vpop.f32.mrb[0].mxu0
  %2013 = vmatprep.mubr.bf16.mxu0 0
  %2014 = vmatmul.mubr.bf16.gmra.mrb[0].mxu0 %v1189
  %v2015 = vpop.f32.mrb[0].mxu0
  %v2016 = vadd.f32 %v287, %v2015
  %v2017 = vpop.f32.mrb[0].mxu0
  %v2018 = vpop.f32.mrb[0].mxu0
  %v2019 = vadd.f32 %v287, %v2018
  %v2020 = vpop.f32.mrb[0].mxu0
  %2021 = vmatprep.mubr.bf16.mxu0 0
  %2022 = vmatmul.mubr.bf16.gmra.mrb[0].mxu0 %v1192
  %v2023 = vpop.f32.mrb[0].mxu0
  %v2024 = vadd.f32 %v287, %v2023
  %v2025 = vpop.f32.mrb[0].mxu0
  %v2026 = vpop.f32.mrb[0].mxu0
  %v2027 = vadd.f32 %v287, %v2026
  %v2028 = vpop.f32.mrb[0].mxu0
  %2029 = vmatprep.mubr.bf16.mxu0 0
  %2030 = vmatmul.mubr.bf16.gmra.mrb[0].mxu0 %v1195
  %v2031 = vpop.f32.mrb[0].mxu0
  %v2032 = vadd.f32 %v287, %v2031
  %v2033 = vpop.f32.mrb[0].mxu0
  %v2034 = vpop.f32.mrb[0].mxu0
  %v2035 = vadd.f32 %v287, %v2034
  %v2036 = vpop.f32.mrb[0].mxu0
  %2037 = vmatprep.mubr.bf16.mxu0 0
  %2038 = vmatmul.mubr.bf16.gmra.mrb[0].mxu0 %v1198
  %v2039 = vpop.f32.mrb[0].mxu0
  %v2040 = vadd.f32 %v287, %v2039
  %v2041 = vpop.f32.mrb[0].mxu0
  %v2042 = vpop.f32.mrb[0].mxu0
  %v2043 = vadd.f32 %v287, %v2042
  %v2044 = vpop.f32.mrb[0].mxu0
  %2045 = vmatprep.mubr.bf16.mxu0 0
  %2046 = vmatmul.mubr.bf16.gmra.mrb[0].mxu0 %v1201
  %v2047 = vpop.f32.mrb[0].mxu0
  %v2048 = vadd.f32 %v287, %v2047
  %v2049 = vpop.f32.mrb[0].mxu0
  %v2050 = vpop.f32.mrb[0].mxu0
  %v2051 = vadd.f32 %v287, %v2050
  %v2052 = vpop.f32.mrb[0].mxu0
  %2053 = vmatprep.mubr.bf16.mxu0 0
  %2054 = vmatmul.mubr.bf16.gmra.mrb[0].mxu0 %v1204
  %v2055 = vpop.f32.mrb[0].mxu0
  %v2056 = vadd.f32 %v287, %v2055
  %v2057 = vpop.f32.mrb[0].mxu0
  %v2058 = vpop.f32.mrb[0].mxu0
  %v2059 = vadd.f32 %v287, %v2058
  %v2060 = vpop.f32.mrb[0].mxu0
  %2061 = vmatprep.mubr.bf16.mxu0 0
  %2062 = vmatmul.mubr.bf16.gmra.mrb[0].mxu0 %v1207
  %v2063 = vpop.f32.mrb[0].mxu0
  %v2064 = vadd.f32 %v287, %v2063
  %v2065 = vpop.f32.mrb[0].mxu0
  %v2066 = vpop.f32.mrb[0].mxu0
  %v2067 = vadd.f32 %v287, %v2066
  %v2068 = vpop.f32.mrb[0].mxu0
  %2069 = vmatprep.mubr.bf16.mxu0 0
  %2070 = vmatmul.mubr.bf16.gmra.mrb[0].mxu0 %v1210
  %v2071 = vpop.f32.mrb[0].mxu0
  %v2072 = vadd.f32 %v287, %v2071
  %v2073 = vpop.f32.mrb[0].mxu0
  %v2074 = vpop.f32.mrb[0].mxu0
  %v2075 = vadd.f32 %v287, %v2074
  %v2076 = vpop.f32.mrb[0].mxu0
  %2077 = vmatprep.mubr.bf16.mxu0 0
  %2078 = vmatmul.mubr.bf16.gmra.mrb[0].mxu0 %v1213
  %v2079 = vpop.f32.mrb[0].mxu0
  %v2080 = vadd.f32 %v287, %v2079
  %v2081 = vpop.f32.mrb[0].mxu0
  %v2082 = vpop.f32.mrb[0].mxu0
  %v2083 = vadd.f32 %v287, %v2082
  %v2084 = vpop.f32.mrb[0].mxu0
  %2085 = vmatprep.mubr.bf16.mxu0 0
  %2086 = vmatmul.mubr.bf16.gmra.mrb[0].mxu0 %v1216
  %v2087 = vpop.f32.mrb[0].mxu0
  %v2088 = vadd.f32 %v287, %v2087
  %v2089 = vpop.f32.mrb[0].mxu0
  %v2090 = vpop.f32.mrb[0].mxu0
  %v2091 = vadd.f32 %v287, %v2090
  %v2092 = vpop.f32.mrb[0].mxu0
  %2093 = vmatprep.mubr.bf16.mxu0 0
  %2094 = vmatmul.mubr.bf16.gmra.mrb[0].mxu0 %v1219
  %v2095 = vpop.f32.mrb[0].mxu0
  %v2096 = vadd.f32 %v287, %v2095
  %v2097 = vpop.f32.mrb[0].mxu0
  %v2098 = vpop.f32.mrb[0].mxu0
  %v2099 = vadd.f32 %v287, %v2098
  %v2100 = vpop.f32.mrb[0].mxu0
  %2101 = vmatprep.mubr.bf16.mxu0 0
  %2102 = vmatmul.mubr.bf16.gmra.mrb[0].mxu0 %v1222
  %v2103 = vpop.f32.mrb[0].mxu0
  %v2104 = vadd.f32 %v287, %v2103
  %v2105 = vpop.f32.mrb[0].mxu0
  %v2106 = vpop.f32.mrb[0].mxu0
  %v2107 = vadd.f32 %v287, %v2106
  %v2108 = vpop.f32.mrb[0].mxu0
  %2109 = vmatprep.mubr.bf16.mxu0 0
  %2110 = vmatmul.mubr.bf16.gmra.mrb[0].mxu0 %v1225
  %v2111 = vpop.f32.mrb[0].mxu0
  %v2112 = vadd.f32 %v287, %v2111
  %v2113 = vpop.f32.mrb[0].mxu0
  %v2114 = vpop.f32.mrb[0].mxu0
  %v2115 = vadd.f32 %v287, %v2114
  %v2116 = vpop.f32.mrb[0].mxu0
  %2117 = vmatprep.mubr.bf16.mxu0 0
  %2118 = vmatmul.mubr.bf16.gmra.mrb[0].mxu0 %v1228
  %v2119 = vpop.f32.mrb[0].mxu0
  %v2120 = vadd.f32 %v287, %v2119
  %v2121 = vpop.f32.mrb[0].mxu0
  %v2122 = vpop.f32.mrb[0].mxu0
  %v2123 = vadd.f32 %v287, %v2122
  %v2124 = vpop.f32.mrb[0].mxu0
  %2125 = vmatprep.mubr.bf16.mxu0 0
  %2126 = vmatmul.mubr.bf16.gmra.mrb[0].mxu0 %v1231
  %v2127 = vpop.f32.mrb[0].mxu0
  %v2128 = vadd.f32 %v287, %v2127
  %v2129 = vpop.f32.mrb[0].mxu0
  %v2130 = vpop.f32.mrb[0].mxu0
  %v2131 = vadd.f32 %v287, %v2130
  %v2132 = vpop.f32.mrb[0].mxu0
  %2133 = vmatprep.mubr.bf16.mxu0 0
  %2134 = vmatmul.mubr.bf16.gmra.mrb[0].mxu0 %v1234
  %v2135 = vpop.f32.mrb[0].mxu0
  %v2136 = vadd.f32 %v287, %v2135
  %v2137 = vpop.f32.mrb[0].mxu0
  %v2138 = vpop.f32.mrb[0].mxu0
  %v2139 = vadd.f32 %v287, %v2138
  %v2140 = vpop.f32.mrb[0].mxu0
  %2141 = vmatprep.mubr.bf16.mxu0 0
  %2142 = vmatmul.mubr.bf16.gmra.mrb[0].mxu0 %v1237
  %v2143 = vpop.f32.mrb[0].mxu0
  %v2144 = vadd.f32 %v287, %v2143
  %v2145 = vpop.f32.mrb[0].mxu0
  %v2146 = vpop.f32.mrb[0].mxu0
  %v2147 = vadd.f32 %v287, %v2146
  %v2148 = vpop.f32.mrb[0].mxu0
  %2149 = vmatprep.mubr.bf16.mxu0 0
  %2150 = vmatmul.mubr.bf16.gmra.mrb[0].mxu0 %v1240
  %v2151 = vpop.f32.mrb[0].mxu0
  %v2152 = vadd.f32 %v287, %v2151
  %v2153 = vpop.f32.mrb[0].mxu0
  %v2154 = vpop.f32.mrb[0].mxu0
  %v2155 = vadd.f32 %v287, %v2154
  %v2156 = vpop.f32.mrb[0].mxu0
  %2157 = vmatprep.mubr.bf16.mxu0 0
  %2158 = vmatmul.mubr.bf16.gmra.mrb[0].mxu0 %v1243
  %v2159 = vpop.f32.mrb[0].mxu0
  %v2160 = vadd.f32 %v287, %v2159
  %v2161 = vpop.f32.mrb[0].mxu0
  %v2162 = vpop.f32.mrb[0].mxu0
  %v2163 = vadd.f32 %v287, %v2162
  %v2164 = vpop.f32.mrb[0].mxu0
  %2165 = vmatprep.mubr.bf16.mxu0 0
  %2166 = vmatmul.mubr.bf16.gmra.mrb[0].mxu0 %v1246
  %v2167 = vpop.f32.mrb[0].mxu0
  %v2168 = vadd.f32 %v287, %v2167
  %v2169 = vpop.f32.mrb[0].mxu0
  %v2170 = vpop.f32.mrb[0].mxu0
  %v2171 = vadd.f32 %v287, %v2170
  %v2172 = vpop.f32.mrb[0].mxu0
  %2173 = vmatprep.mubr.bf16.mxu0 0
  %2174 = vmatmul.mubr.bf16.gmra.mrb[0].mxu0 %v1249
  %v2175 = vpop.f32.mrb[0].mxu0
  %v2176 = vadd.f32 %v287, %v2175
  %v2177 = vpop.f32.mrb[0].mxu0
  %v2178 = vpop.f32.mrb[0].mxu0
  %v2179 = vadd.f32 %v287, %v2178
  %v2180 = vpop.f32.mrb[0].mxu0
  %2181 = vmatprep.mubr.bf16.mxu0 0
  %2182 = vmatmul.mubr.bf16.gmra.mrb[0].mxu0 %v1252
  %v2183 = vpop.f32.mrb[0].mxu0
  %v2184 = vadd.f32 %v287, %v2183
  %v2185 = vpop.f32.mrb[0].mxu0
  %v2186 = vpop.f32.mrb[0].mxu0
  %v2187 = vadd.f32 %v287, %v2186
  %v2188 = vpop.f32.mrb[0].mxu0
  %2189 = vmatprep.mubr.bf16.mxu0 0
  %2190 = vmatmul.mubr.bf16.gmra.mrb[0].mxu0 %v1255
  %v2191 = vpop.f32.mrb[0].mxu0
  %v2192 = vadd.f32 %v287, %v2191
  %v2193 = vpop.f32.mrb[0].mxu0
  %v2194 = vpop.f32.mrb[0].mxu0
  %v2195 = vadd.f32 %v287, %v2194
  %v2196 = vpop.f32.mrb[0].mxu0
  %2197 = vmatprep.mubr.bf16.mxu0 0
  %2198 = vmatmul.mubr.bf16.gmra.mrb[0].mxu0 %v1258
  %v2199 = vpop.f32.mrb[0].mxu0
  %v2200 = vadd.f32 %v287, %v2199
  %v2201 = vpop.f32.mrb[0].mxu0
  %v2202 = vpop.f32.mrb[0].mxu0
  %v2203 = vadd.f32 %v287, %v2202
  %v2204 = vpop.f32.mrb[0].mxu0
  %2205 = vmatprep.mubr.bf16.mxu0 0
  %2206 = vmatmul.mubr.bf16.gmra.mrb[0].mxu0 %v1261
  %v2207 = vpop.f32.mrb[0].mxu0
  %v2208 = vadd.f32 %v287, %v2207
  %v2209 = vpop.f32.mrb[0].mxu0
  %v2210 = vpop.f32.mrb[0].mxu0
  %v2211 = vadd.f32 %v287, %v2210
  %v2212 = vpop.f32.mrb[0].mxu0
  %2213 = vmatprep.mubr.bf16.mxu0 0
  %2214 = vmatmul.mubr.bf16.gmra.mrb[0].mxu0 %v1264
  %v2215 = vpop.f32.mrb[0].mxu0
  %v2216 = vadd.f32 %v287, %v2215
  %v2217 = vpop.f32.mrb[0].mxu0
  %v2218 = vpop.f32.mrb[0].mxu0
  %v2219 = vadd.f32 %v287, %v2218
  %v2220 = vpop.f32.mrb[0].mxu0
  %2221 = vmatprep.mubr.bf16.mxu0 0
  %2222 = vmatmul.mubr.bf16.gmra.mrb[0].mxu0 %v1267
  %v2223 = vpop.f32.mrb[0].mxu0
  %v2224 = vadd.f32 %v287, %v2223
  %v2225 = vpop.f32.mrb[0].mxu0
  %v2226 = vpop.f32.mrb[0].mxu0
  %v2227 = vadd.f32 %v287, %v2226
  %v2228 = vpop.f32.mrb[0].mxu0
  %2229 = vmatprep.mubr.bf16.mxu0 0
  %2230 = vmatmul.mubr.bf16.gmra.mrb[0].mxu0 %v1270
  %v2231 = vpop.f32.mrb[0].mxu0
  %v2232 = vadd.f32 %v287, %v2231
  %v2233 = vpop.f32.mrb[0].mxu0
  %v2234 = vpop.f32.mrb[0].mxu0
  %v2235 = vadd.f32 %v287, %v2234
  %v2236 = vpop.f32.mrb[0].mxu0
  %2237 = vmatprep.mubr.bf16.mxu0 0
  %2238 = vmatmul.mubr.bf16.gmra.mrb[0].mxu0 %v1273
  %v2239 = vpop.f32.mrb[0].mxu0
  %v2240 = vadd.f32 %v287, %v2239
  %v2241 = vpop.f32.mrb[0].mxu0
  %v2242 = vpop.f32.mrb[0].mxu0
  %v2243 = vadd.f32 %v287, %v2242
  %v2244 = vpop.f32.mrb[0].mxu0
  %2245 = vmatprep.mubr.bf16.mxu0 0
  %2246 = vmatmul.mubr.bf16.gmra.mrb[0].mxu0 %v1276
  %v2247 = vpop.f32.mrb[0].mxu0
  %v2248 = vadd.f32 %v287, %v2247
  %v2249 = vpop.f32.mrb[0].mxu0
  %v2250 = vpop.f32.mrb[0].mxu0
  %v2251 = vadd.f32 %v287, %v2250
  %v2252 = vpop.f32.mrb[0].mxu0
  %2253 = vmatprep.mubr.bf16.mxu0 0
  %2254 = vmatmul.mubr.bf16.gmra.mrb[0].mxu0 %v1279
  %v2255 = vpop.f32.mrb[0].mxu0
  %v2256 = vadd.f32 %v287, %v2255
  %v2257 = vpop.f32.mrb[0].mxu0
  %v2258 = vpop.f32.mrb[0].mxu0
  %v2259 = vadd.f32 %v287, %v2258
  %v2260 = vpop.f32.mrb[0].mxu0
  %2261 = vmatprep.mubr.bf16.mxu0 0
  %2262 = vmatmul.mubr.bf16.gmra.mrb[0].mxu0 %v1282
  %v2263 = vpop.f32.mrb[0].mxu0
  %v2264 = vadd.f32 %v287, %v2263
  %v2265 = vpop.f32.mrb[0].mxu0
  %v2266 = vpop.f32.mrb[0].mxu0
  %v2267 = vadd.f32 %v287, %v2266
  %v2268 = vpop.f32.mrb[0].mxu0
  %2269 = vmatprep.mubr.bf16.mxu0 0
  %2270 = vmatmul.mubr.bf16.gmra.mrb[0].mxu0 %v1285
  %v2271 = vpop.f32.mrb[0].mxu0
  %v2272 = vadd.f32 %v287, %v2271
  %v2273 = vpop.f32.mrb[0].mxu0
  %v2274 = vpop.f32.mrb[0].mxu0
  %v2275 = vadd.f32 %v287, %v2274
  %v2276 = vpop.f32.mrb[0].mxu0
  %2277 = vmatprep.mubr.bf16.mxu0 0
  %2278 = vmatmul.mubr.bf16.gmra.mrb[0].mxu0 %v1288
  %v2279 = vpop.f32.mrb[0].mxu0
  %v2280 = vadd.f32 %v287, %v2279
  %v2281 = vpop.f32.mrb[0].mxu0
  %v2282 = vpop.f32.mrb[0].mxu0
  %v2283 = vadd.f32 %v287, %v2282
  %v2284 = vpop.f32.mrb[0].mxu0
  %2285 = vmatprep.mubr.bf16.mxu0 0
  %2286 = vmatmul.mubr.bf16.gmra.mrb[0].mxu0 %v1291
  %v2287 = vpop.f32.mrb[0].mxu0
  %v2288 = vadd.f32 %v287, %v2287
  %v2289 = vpop.f32.mrb[0].mxu0
  %v2290 = vpop.f32.mrb[0].mxu0
  %v2291 = vadd.f32 %v287, %v2290
  %v2292 = vpop.f32.mrb[0].mxu0
  %2293 = vmatprep.mubr.bf16.mxu0 0
  %2294 = vmatmul.mubr.bf16.gmra.mrb[0].mxu0 %v1294
  %v2295 = vpop.f32.mrb[0].mxu0
  %v2296 = vadd.f32 %v287, %v2295
  %v2297 = vpop.f32.mrb[0].mxu0
  %v2298 = vpop.f32.mrb[0].mxu0
  %v2299 = vadd.f32 %v287, %v2298
  %v2300 = vpop.f32.mrb[0].mxu0
  %2301 = vmatprep.mubr.bf16.mxu0 0
  %2302 = vmatmul.mubr.bf16.gmra.mrb[0].mxu0 %v1297
  %v2303 = vpop.f32.mrb[0].mxu0
  %v2304 = vadd.f32 %v287, %v2303
  %v2305 = vpop.f32.mrb[0].mxu0
  %v2306 = vpop.f32.mrb[0].mxu0
  %v2307 = vadd.f32 %v287, %v2306
  %v2308 = vpop.f32.mrb[0].mxu0
  %2309 = vmatprep.mubr.bf16.mxu0 0
  %2310 = vmatmul.mubr.bf16.gmra.mrb[0].mxu0 %v1300
  %v2311 = vpop.f32.mrb[0].mxu0
  %v2312 = vadd.f32 %v287, %v2311
  %v2313 = vpop.f32.mrb[0].mxu0
  %v2314 = vpop.f32.mrb[0].mxu0
  %v2315 = vadd.f32 %v287, %v2314
  %v2316 = vpop.f32.mrb[0].mxu0
  %2317 = vmatprep.mubr.bf16.mxu0 0
  %2318 = vmatmul.mubr.bf16.gmra.mrb[0].mxu0 %v1303
  %v2319 = vpop.f32.mrb[0].mxu0
  %v2320 = vadd.f32 %v287, %v2319
  %v2321 = vpop.f32.mrb[0].mxu0
  %v2322 = vpop.f32.mrb[0].mxu0
  %v2323 = vadd.f32 %v287, %v2322
  %v2324 = vpop.f32.mrb[0].mxu0
  %2325 = vmatprep.mubr.bf16.mxu0 0
  %2326 = vmatmul.mubr.bf16.gmra.mrb[0].mxu0 %v1306
  %v2327 = vpop.f32.mrb[0].mxu0
  %v2328 = vadd.f32 %v287, %v2327
  %v2329 = vpop.f32.mrb[0].mxu0
  %v2330 = vpop.f32.mrb[0].mxu0
  %v2331 = vadd.f32 %v287, %v2330
  %v2332 = vpop.f32.mrb[0].mxu0
  %2333 = vmatprep.mubr.bf16.mxu0 0
  %2334 = vmatmul.mubr.bf16.gmra.mrb[0].mxu0 %v1309
  %v2335 = vpop.f32.mrb[0].mxu0
  %v2336 = vadd.f32 %v287, %v2335
  %v2337 = vpop.f32.mrb[0].mxu0
  %v2338 = vpop.f32.mrb[0].mxu0
  %v2339 = vadd.f32 %v287, %v2338
  %v2340 = vpop.f32.mrb[0].mxu0
  %2341 = vmatprep.mubr.bf16.mxu0 0
  %2342 = vmatmul.mubr.bf16.gmra.mrb[0].mxu0 %v1312
  %v2343 = vpop.f32.mrb[0].mxu0
  %v2344 = vadd.f32 %v287, %v2343
  %v2345 = vpop.f32.mrb[0].mxu0
  %v2346 = vpop.f32.mrb[0].mxu0
  %v2347 = vadd.f32 %v287, %v2346
  %v2348 = vpop.f32.mrb[0].mxu0
  %2349 = vmatprep.mubr.bf16.mxu0 0
  %2350 = vmatmul.mubr.bf16.gmra.mrb[0].mxu0 %v1315
  %v2351 = vpop.f32.mrb[0].mxu0
  %v2352 = vadd.f32 %v287, %v2351
  %v2353 = vpop.f32.mrb[0].mxu0
  %v2354 = vpop.f32.mrb[0].mxu0
  %v2355 = vadd.f32 %v287, %v2354
  %v2356 = vpop.f32.mrb[0].mxu0
  %2357 = vmatprep.mubr.bf16.mxu0 0
  %2358 = vmatmul.mubr.bf16.gmra.mrb[0].mxu0 %v1318
  %v2359 = vpop.f32.mrb[0].mxu0
  %v2360 = vadd.f32 %v287, %v2359
  %v2361 = vpop.f32.mrb[0].mxu0
  %v2362 = vpop.f32.mrb[0].mxu0
  %v2363 = vadd.f32 %v287, %v2362
  %v2364 = vpop.f32.mrb[0].mxu0
  %2365 = vmatprep.mubr.bf16.mxu0 0
  %2366 = vmatmul.mubr.bf16.gmra.mrb[0].mxu0 %v1321
  %v2367 = vpop.f32.mrb[0].mxu0
  %v2368 = vadd.f32 %v287, %v2367
  %v2369 = vpop.f32.mrb[0].mxu0
  %v2370 = vpop.f32.mrb[0].mxu0
  %v2371 = vadd.f32 %v287, %v2370
  %v2372 = vpop.f32.mrb[0].mxu0
  %2373 = vmatprep.mubr.bf16.mxu0 0
  %2374 = vmatmul.mubr.bf16.gmra.mrb[0].mxu0 %v1324
  %v2375 = vpop.f32.mrb[0].mxu0
  %v2376 = vadd.f32 %v287, %v2375
  %v2377 = vpop.f32.mrb[0].mxu0
  %v2378 = vpop.f32.mrb[0].mxu0
  %v2379 = vadd.f32 %v287, %v2378
  %v2380 = vpop.f32.mrb[0].mxu0
  %2381 = vmatprep.mubr.bf16.mxu0 0
  %2382 = vmatmul.mubr.bf16.gmra.mrb[0].mxu0 %v1327
  %v2383 = vpop.f32.mrb[0].mxu0
  %v2384 = vadd.f32 %v287, %v2383
  %v2385 = vpop.f32.mrb[0].mxu0
  %v2386 = vpop.f32.mrb[0].mxu0
  %v2387 = vadd.f32 %v287, %v2386
  %v2388 = vpop.f32.mrb[0].mxu0
  %2389 = vdwg.mxu0
  %v2390 = vmax.f32 %v1368, 0.0
  %v2391 = vmax.f32 %v1371, 0.0
  %v2392 = vmax.f32 %v1376, 0.0
  %v2393 = vmax.f32 %v1379, 0.0
  %v2394 = vmax.f32 %v1384, 0.0
  %v2395 = vmax.f32 %v1387, 0.0
  %v2396 = vmax.f32 %v1392, 0.0
  %v2397 = vmax.f32 %v1395, 0.0
  %v2398 = vmax.f32 %v1400, 0.0
  %v2399 = vmax.f32 %v1403, 0.0
  %v2400 = vmax.f32 %v1408, 0.0
  %v2401 = vmax.f32 %v1411, 0.0
  %v2402 = vmax.f32 %v1416, 0.0
  %v2403 = vmax.f32 %v1419, 0.0
  %v2404 = vmax.f32 %v1424, 0.0
  %v2405 = vmax.f32 %v1427, 0.0
  %v2406 = vmax.f32 %v1432, 0.0
  %v2407 = vmax.f32 %v1435, 0.0
  %v2408 = vmax.f32 %v1440, 0.0
  %v2409 = vmax.f32 %v1443, 0.0
  %v2410 = vmax.f32 %v1448, 0.0
  %v2411 = vmax.f32 %v1451, 0.0
  %v2412 = vmax.f32 %v1456, 0.0
  %v2413 = vmax.f32 %v1459, 0.0
  %v2414 = vmax.f32 %v1464, 0.0
  %v2415 = vmax.f32 %v1467, 0.0
  %v2416 = vmax.f32 %v1472, 0.0
  %v2417 = vmax.f32 %v1475, 0.0
  %v2418 = vmax.f32 %v1480, 0.0
  %v2419 = vmax.f32 %v1483, 0.0
  %v2420 = vmax.f32 %v1488, 0.0
  %v2421 = vmax.f32 %v1491, 0.0
  %v2422 = vmax.f32 %v1496, 0.0
  %v2423 = vmax.f32 %v1499, 0.0
  %v2424 = vmax.f32 %v1504, 0.0
  %v2425 = vmax.f32 %v1507, 0.0
  %v2426 = vmax.f32 %v1512, 0.0
  %v2427 = vmax.f32 %v1515, 0.0
  %v2428 = vmax.f32 %v1520, 0.0
  %v2429 = vmax.f32 %v1523, 0.0
  %v2430 = vmax.f32 %v1528, 0.0
  %v2431 = vmax.f32 %v1531, 0.0
  %v2432 = vmax.f32 %v1536, 0.0
  %v2433 = vmax.f32 %v1539, 0.0
  %v2434 = vmax.f32 %v1544, 0.0
  %v2435 = vmax.f32 %v1547, 0.0
  %v2436 = vmax.f32 %v1552, 0.0
  %v2437 = vmax.f32 %v1555, 0.0
  %v2438 = vmax.f32 %v1560, 0.0
  %v2439 = vmax.f32 %v1563, 0.0
  %v2440 = vmax.f32 %v1568, 0.0
  %v2441 = vmax.f32 %v1571, 0.0
  %v2442 = vmax.f32 %v1576, 0.0
  %v2443 = vmax.f32 %v1579, 0.0
  %v2444 = vmax.f32 %v1584, 0.0
  %v2445 = vmax.f32 %v1587, 0.0
  %v2446 = vmax.f32 %v1592, 0.0
  %v2447 = vmax.f32 %v1595, 0.0
  %v2448 = vmax.f32 %v1600, 0.0
  %v2449 = vmax.f32 %v1603, 0.0
  %v2450 = vmax.f32 %v1608, 0.0
  %v2451 = vmax.f32 %v1611, 0.0
  %v2452 = vmax.f32 %v1616, 0.0
  %v2453 = vmax.f32 %v1619, 0.0
  %v2454 = vmax.f32 %v1624, 0.0
  %v2455 = vmax.f32 %v1627, 0.0
  %v2456 = vmax.f32 %v1632, 0.0
  %v2457 = vmax.f32 %v1635, 0.0
  %v2458 = vmax.f32 %v1640, 0.0
  %v2459 = vmax.f32 %v1643, 0.0
  %v2460 = vmax.f32 %v1648, 0.0
  %v2461 = vmax.f32 %v1651, 0.0
  %v2462 = vmax.f32 %v1656, 0.0
  %v2463 = vmax.f32 %v1659, 0.0
  %v2464 = vmax.f32 %v1664, 0.0
  %v2465 = vmax.f32 %v1667, 0.0
  %v2466 = vmax.f32 %v1672, 0.0
  %v2467 = vmax.f32 %v1675, 0.0
  %v2468 = vmax.f32 %v1680, 0.0
  %v2469 = vmax.f32 %v1683, 0.0
  %v2470 = vmax.f32 %v1688, 0.0
  %v2471 = vmax.f32 %v1691, 0.0
  %v2472 = vmax.f32 %v1696, 0.0
  %v2473 = vmax.f32 %v1699, 0.0
  %v2474 = vmax.f32 %v1704, 0.0
  %v2475 = vmax.f32 %v1707, 0.0
  %v2476 = vmax.f32 %v1712, 0.0
  %v2477 = vmax.f32 %v1715, 0.0
  %v2478 = vmax.f32 %v1720, 0.0
  %v2479 = vmax.f32 %v1723, 0.0
  %v2480 = vmax.f32 %v1728, 0.0
  %v2481 = vmax.f32 %v1731, 0.0
  %v2482 = vmax.f32 %v1736, 0.0
  %v2483 = vmax.f32 %v1739, 0.0
  %v2484 = vmax.f32 %v1744, 0.0
  %v2485 = vmax.f32 %v1747, 0.0
  %v2486 = vmax.f32 %v1752, 0.0
  %v2487 = vmax.f32 %v1755, 0.0
  %v2488 = vmax.f32 %v1760, 0.0
  %v2489 = vmax.f32 %v1763, 0.0
  %v2490 = vmax.f32 %v1768, 0.0
  %v2491 = vmax.f32 %v1771, 0.0
  %v2492 = vmax.f32 %v1776, 0.0
  %v2493 = vmax.f32 %v1779, 0.0
  %v2494 = vmax.f32 %v1784, 0.0
  %v2495 = vmax.f32 %v1787, 0.0
  %v2496 = vmax.f32 %v1792, 0.0
  %v2497 = vmax.f32 %v1795, 0.0
  %v2498 = vmax.f32 %v1800, 0.0
  %v2499 = vmax.f32 %v1803, 0.0
  %v2500 = vmax.f32 %v1808, 0.0
  %v2501 = vmax.f32 %v1811, 0.0
  %v2502 = vmax.f32 %v1816, 0.0
  %v2503 = vmax.f32 %v1819, 0.0
  %v2504 = vmax.f32 %v1824, 0.0
  %v2505 = vmax.f32 %v1827, 0.0
  %v2506 = vmax.f32 %v1832, 0.0
  %v2507 = vmax.f32 %v1835, 0.0
  %v2508 = vmax.f32 %v1840, 0.0
  %v2509 = vmax.f32 %v1843, 0.0
  %v2510 = vmax.f32 %v1848, 0.0
  %v2511 = vmax.f32 %v1851, 0.0
  %v2512 = vmax.f32 %v1856, 0.0
  %v2513 = vmax.f32 %v1859, 0.0
  %v2514 = vmax.f32 %v1864, 0.0
  %v2515 = vmax.f32 %v1867, 0.0
  %v2516 = vmax.f32 %v1872, 0.0
  %v2517 = vmax.f32 %v1875, 0.0
  %v2518 = vmax.f32 %v1880, 0.0
  %v2519 = vmax.f32 %v1883, 0.0
  %v2520 = vmax.f32 %v1888, 0.0
  %v2521 = vmax.f32 %v1891, 0.0
  %v2522 = vmax.f32 %v1896, 0.0
  %v2523 = vmax.f32 %v1899, 0.0
  %v2524 = vmax.f32 %v1904, 0.0
  %v2525 = vmax.f32 %v1907, 0.0
  %v2526 = vmax.f32 %v1912, 0.0
  %v2527 = vmax.f32 %v1915, 0.0
  %v2528 = vmax.f32 %v1920, 0.0
  %v2529 = vmax.f32 %v1923, 0.0
  %v2530 = vmax.f32 %v1928, 0.0
  %v2531 = vmax.f32 %v1931, 0.0
  %v2532 = vmax.f32 %v1936, 0.0
  %v2533 = vmax.f32 %v1939, 0.0
  %v2534 = vmax.f32 %v1944, 0.0
  %v2535 = vmax.f32 %v1947, 0.0
  %v2536 = vmax.f32 %v1952, 0.0
  %v2537 = vmax.f32 %v1955, 0.0
  %v2538 = vmax.f32 %v1960, 0.0
  %v2539 = vmax.f32 %v1963, 0.0
  %v2540 = vmax.f32 %v1968, 0.0
  %v2541 = vmax.f32 %v1971, 0.0
  %v2542 = vmax.f32 %v1976, 0.0
  %v2543 = vmax.f32 %v1979, 0.0
  %v2544 = vmax.f32 %v1984, 0.0
  %v2545 = vmax.f32 %v1987, 0.0
  %v2546 = vmax.f32 %v1992, 0.0
  %v2547 = vmax.f32 %v1995, 0.0
  %v2548 = vmax.f32 %v2000, 0.0
  %v2549 = vmax.f32 %v2003, 0.0
  %v2550 = vmax.f32 %v2008, 0.0
  %v2551 = vmax.f32 %v2011, 0.0
  %v2552 = vmax.f32 %v2016, 0.0
  %v2553 = vmax.f32 %v2019, 0.0
  %v2554 = vmax.f32 %v2024, 0.0
  %v2555 = vmax.f32 %v2027, 0.0
  %v2556 = vmax.f32 %v2032, 0.0
  %v2557 = vmax.f32 %v2035, 0.0
  %v2558 = vmax.f32 %v2040, 0.0
  %v2559 = vmax.f32 %v2043, 0.0
  %v2560 = vmax.f32 %v2048, 0.0
  %v2561 = vmax.f32 %v2051, 0.0
  %v2562 = vmax.f32 %v2056, 0.0
  %v2563 = vmax.f32 %v2059, 0.0
  %v2564 = vmax.f32 %v2064, 0.0
  %v2565 = vmax.f32 %v2067, 0.0
  %v2566 = vmax.f32 %v2072, 0.0
  %v2567 = vmax.f32 %v2075, 0.0
  %v2568 = vmax.f32 %v2080, 0.0
  %v2569 = vmax.f32 %v2083, 0.0
  %v2570 = vmax.f32 %v2088, 0.0
  %v2571 = vmax.f32 %v2091, 0.0
  %v2572 = vmax.f32 %v2096, 0.0
  %v2573 = vmax.f32 %v2099, 0.0
  %v2574 = vmax.f32 %v2104, 0.0
  %v2575 = vmax.f32 %v2107, 0.0
  %v2576 = vmax.f32 %v2112, 0.0
  %v2577 = vmax.f32 %v2115, 0.0
  %v2578 = vmax.f32 %v2120, 0.0
  %v2579 = vmax.f32 %v2123, 0.0
  %v2580 = vmax.f32 %v2128, 0.0
  %v2581 = vmax.f32 %v2131, 0.0
  %v2582 = vmax.f32 %v2136, 0.0
  %v2583 = vmax.f32 %v2139, 0.0
  %v2584 = vmax.f32 %v2144, 0.0
  %v2585 = vmax.f32 %v2147, 0.0
  %v2586 = vmax.f32 %v2152, 0.0
  %v2587 = vmax.f32 %v2155, 0.0
  %v2588 = vmax.f32 %v2160, 0.0
  %v2589 = vmax.f32 %v2163, 0.0
  %v2590 = vmax.f32 %v2168, 0.0
  %v2591 = vmax.f32 %v2171, 0.0
  %v2592 = vmax.f32 %v2176, 0.0
  %v2593 = vmax.f32 %v2179, 0.0
  %v2594 = vmax.f32 %v2184, 0.0
  %v2595 = vmax.f32 %v2187, 0.0
  %v2596 = vmax.f32 %v2192, 0.0
  %v2597 = vmax.f32 %v2195, 0.0
  %v2598 = vmax.f32 %v2200, 0.0
  %v2599 = vmax.f32 %v2203, 0.0
  %v2600 = vmax.f32 %v2208, 0.0
  %v2601 = vmax.f32 %v2211, 0.0
  %v2602 = vmax.f32 %v2216, 0.0
  %v2603 = vmax.f32 %v2219, 0.0
  %v2604 = vmax.f32 %v2224, 0.0
  %v2605 = vmax.f32 %v2227, 0.0
  %v2606 = vmax.f32 %v2232, 0.0
  %v2607 = vmax.f32 %v2235, 0.0
  %v2608 = vmax.f32 %v2240, 0.0
  %v2609 = vmax.f32 %v2243, 0.0
  %v2610 = vmax.f32 %v2248, 0.0
  %v2611 = vmax.f32 %v2251, 0.0
  %v2612 = vmax.f32 %v2256, 0.0
  %v2613 = vmax.f32 %v2259, 0.0
  %v2614 = vmax.f32 %v2264, 0.0
  %v2615 = vmax.f32 %v2267, 0.0
  %v2616 = vmax.f32 %v2272, 0.0
  %v2617 = vmax.f32 %v2275, 0.0
  %v2618 = vmax.f32 %v2280, 0.0
  %v2619 = vmax.f32 %v2283, 0.0
  %v2620 = vmax.f32 %v2288, 0.0
  %v2621 = vmax.f32 %v2291, 0.0
  %v2622 = vmax.f32 %v2296, 0.0
  %v2623 = vmax.f32 %v2299, 0.0
  %v2624 = vmax.f32 %v2304, 0.0
  %v2625 = vmax.f32 %v2307, 0.0
  %v2626 = vmax.f32 %v2312, 0.0
  %v2627 = vmax.f32 %v2315, 0.0
  %v2628 = vmax.f32 %v2320, 0.0
  %v2629 = vmax.f32 %v2323, 0.0
  %v2630 = vmax.f32 %v2328, 0.0
  %v2631 = vmax.f32 %v2331, 0.0
  %v2632 = vmax.f32 %v2336, 0.0
  %v2633 = vmax.f32 %v2339, 0.0
  %v2634 = vmax.f32 %v2344, 0.0
  %v2635 = vmax.f32 %v2347, 0.0
  %v2636 = vmax.f32 %v2352, 0.0
  %v2637 = vmax.f32 %v2355, 0.0
  %v2638 = vmax.f32 %v2360, 0.0
  %v2639 = vmax.f32 %v2363, 0.0
  %v2640 = vmax.f32 %v2368, 0.0
  %v2641 = vmax.f32 %v2371, 0.0
  %v2642 = vmax.f32 %v2376, 0.0
  %v2643 = vmax.f32 %v2379, 0.0
  %v2644 = vmax.f32 %v2384, 0.0
  %v2645 = vmax.f32 %v2387, 0.0
  %vm2646 = vcmask 261120
  %v2647 = vsel %vm2646, %v2390, 0.0
  %v2648 = vsel %vm2646, %v2391, 0.0
  %v2649 = vadd.f32 %v2647, %v2648
  %v2650 = vsel %vm2646, %v2392, 0.0
  %v2651 = vadd.f32 %v2649, %v2650
  %v2652 = vsel %vm2646, %v2393, 0.0
  %v2653 = vadd.f32 %v2651, %v2652
  %v2654 = vsel %vm2646, %v2394, 0.0
  %v2655 = vadd.f32 %v2653, %v2654
  %v2656 = vsel %vm2646, %v2395, 0.0
  %v2657 = vadd.f32 %v2655, %v2656
  %v2658 = vsel %vm2646, %v2396, 0.0
  %v2659 = vadd.f32 %v2657, %v2658
  %v2660 = vsel %vm2646, %v2397, 0.0
  %v2661 = vadd.f32 %v2659, %v2660
  %v2662 = vsel %vm2646, %v2398, 0.0
  %v2663 = vadd.f32 %v2661, %v2662
  %v2664 = vsel %vm2646, %v2399, 0.0
  %v2665 = vadd.f32 %v2663, %v2664
  %v2666 = vsel %vm2646, %v2400, 0.0
  %v2667 = vadd.f32 %v2665, %v2666
  %v2668 = vsel %vm2646, %v2401, 0.0
  %v2669 = vadd.f32 %v2667, %v2668
  %v2670 = vsel %vm2646, %v2402, 0.0
  %v2671 = vadd.f32 %v2669, %v2670
  %v2672 = vsel %vm2646, %v2403, 0.0
  %v2673 = vadd.f32 %v2671, %v2672
  %v2674 = vsel %vm2646, %v2404, 0.0
  %v2675 = vadd.f32 %v2673, %v2674
  %v2676 = vsel %vm2646, %v2405, 0.0
  %v2677 = vadd.f32 %v2675, %v2676
  %v2678 = vsel %vm2646, %v2406, 0.0
  %v2679 = vadd.f32 %v2677, %v2678
  %v2680 = vsel %vm2646, %v2407, 0.0
  %v2681 = vadd.f32 %v2679, %v2680
  %v2682 = vsel %vm2646, %v2408, 0.0
  %v2683 = vadd.f32 %v2681, %v2682
  %v2684 = vsel %vm2646, %v2409, 0.0
  %v2685 = vadd.f32 %v2683, %v2684
  %v2686 = vsel %vm2646, %v2410, 0.0
  %v2687 = vadd.f32 %v2685, %v2686
  %v2688 = vsel %vm2646, %v2411, 0.0
  %v2689 = vadd.f32 %v2687, %v2688
  %v2690 = vsel %vm2646, %v2412, 0.0
  %v2691 = vadd.f32 %v2689, %v2690
  %v2692 = vsel %vm2646, %v2413, 0.0
  %v2693 = vadd.f32 %v2691, %v2692
  %v2694 = vsel %vm2646, %v2414, 0.0
  %v2695 = vadd.f32 %v2693, %v2694
  %v2696 = vsel %vm2646, %v2415, 0.0
  %v2697 = vadd.f32 %v2695, %v2696
  %v2698 = vsel %vm2646, %v2416, 0.0
  %v2699 = vadd.f32 %v2697, %v2698
  %v2700 = vsel %vm2646, %v2417, 0.0
  %v2701 = vadd.f32 %v2699, %v2700
  %v2702 = vsel %vm2646, %v2418, 0.0
  %v2703 = vadd.f32 %v2701, %v2702
  %v2704 = vsel %vm2646, %v2419, 0.0
  %v2705 = vadd.f32 %v2703, %v2704
  %v2706 = vsel %vm2646, %v2420, 0.0
  %v2707 = vadd.f32 %v2705, %v2706
  %v2708 = vsel %vm2646, %v2421, 0.0
  %v2709 = vadd.f32 %v2707, %v2708
  %v2710 = vrot.slane %v2709, 4
  %v2711 = vadd.f32 %v2709, %v2710
  %v2712 = vrot.slane %v2711, 2
  %v2713 = vadd.f32 %v2711, %v2712
  %v2714 = vrot.slane %v2713, 1
  %v2715 = vadd.f32 %v2713, %v2714
  %v2716 = vsel %vm2646, %v2422, 0.0
  %v2717 = vsel %vm2646, %v2423, 0.0
  %v2718 = vadd.f32 %v2716, %v2717
  %v2719 = vsel %vm2646, %v2424, 0.0
  %v2720 = vadd.f32 %v2718, %v2719
  %v2721 = vsel %vm2646, %v2425, 0.0
  %v2722 = vadd.f32 %v2720, %v2721
  %v2723 = vsel %vm2646, %v2426, 0.0
  %v2724 = vadd.f32 %v2722, %v2723
  %v2725 = vsel %vm2646, %v2427, 0.0
  %v2726 = vadd.f32 %v2724, %v2725
  %v2727 = vsel %vm2646, %v2428, 0.0
  %v2728 = vadd.f32 %v2726, %v2727
  %v2729 = vsel %vm2646, %v2429, 0.0
  %v2730 = vadd.f32 %v2728, %v2729
  %v2731 = vsel %vm2646, %v2430, 0.0
  %v2732 = vadd.f32 %v2730, %v2731
  %v2733 = vsel %vm2646, %v2431, 0.0
  %v2734 = vadd.f32 %v2732, %v2733
  %v2735 = vsel %vm2646, %v2432, 0.0
  %v2736 = vadd.f32 %v2734, %v2735
  %v2737 = vsel %vm2646, %v2433, 0.0
  %v2738 = vadd.f32 %v2736, %v2737
  %v2739 = vsel %vm2646, %v2434, 0.0
  %v2740 = vadd.f32 %v2738, %v2739
  %v2741 = vsel %vm2646, %v2435, 0.0
  %v2742 = vadd.f32 %v2740, %v2741
  %v2743 = vsel %vm2646, %v2436, 0.0
  %v2744 = vadd.f32 %v2742, %v2743
  %v2745 = vsel %vm2646, %v2437, 0.0
  %v2746 = vadd.f32 %v2744, %v2745
  %v2747 = vsel %vm2646, %v2438, 0.0
  %v2748 = vadd.f32 %v2746, %v2747
  %v2749 = vsel %vm2646, %v2439, 0.0
  %v2750 = vadd.f32 %v2748, %v2749
  %v2751 = vsel %vm2646, %v2440, 0.0
  %v2752 = vadd.f32 %v2750, %v2751
  %v2753 = vsel %vm2646, %v2441, 0.0
  %v2754 = vadd.f32 %v2752, %v2753
  %v2755 = vsel %vm2646, %v2442, 0.0
  %v2756 = vadd.f32 %v2754, %v2755
  %v2757 = vsel %vm2646, %v2443, 0.0
  %v2758 = vadd.f32 %v2756, %v2757
  %v2759 = vsel %vm2646, %v2444, 0.0
  %v2760 = vadd.f32 %v2758, %v2759
  %v2761 = vsel %vm2646, %v2445, 0.0
  %v2762 = vadd.f32 %v2760, %v2761
  %v2763 = vsel %vm2646, %v2446, 0.0
  %v2764 = vadd.f32 %v2762, %v2763
  %v2765 = vsel %vm2646, %v2447, 0.0
  %v2766 = vadd.f32 %v2764, %v2765
  %v2767 = vsel %vm2646, %v2448, 0.0
  %v2768 = vadd.f32 %v2766, %v2767
  %v2769 = vsel %vm2646, %v2449, 0.0
  %v2770 = vadd.f32 %v2768, %v2769
  %v2771 = vsel %vm2646, %v2450, 0.0
  %v2772 = vadd.f32 %v2770, %v2771
  %v2773 = vsel %vm2646, %v2451, 0.0
  %v2774 = vadd.f32 %v2772, %v2773
  %v2775 = vsel %vm2646, %v2452, 0.0
  %v2776 = vadd.f32 %v2774, %v2775
  %v2777 = vsel %vm2646, %v2453, 0.0
  %v2778 = vadd.f32 %v2776, %v2777
  %v2779 = vrot.slane %v2778, 4
  %v2780 = vadd.f32 %v2778, %v2779
  %v2781 = vrot.slane %v2780, 2
  %v2782 = vadd.f32 %v2780, %v2781
  %v2783 = vrot.slane %v2782, 1
  %v2784 = vadd.f32 %v2782, %v2783
  %v2785 = vsel %vm2646, %v2454, 0.0
  %v2786 = vsel %vm2646, %v2455, 0.0
  %v2787 = vadd.f32 %v2785, %v2786
  %v2788 = vsel %vm2646, %v2456, 0.0
  %v2789 = vadd.f32 %v2787, %v2788
  %v2790 = vsel %vm2646, %v2457, 0.0
  %v2791 = vadd.f32 %v2789, %v2790
  %v2792 = vsel %vm2646, %v2458, 0.0
  %v2793 = vadd.f32 %v2791, %v2792
  %v2794 = vsel %vm2646, %v2459, 0.0
  %v2795 = vadd.f32 %v2793, %v2794
  %v2796 = vsel %vm2646, %v2460, 0.0
  %v2797 = vadd.f32 %v2795, %v2796
  %v2798 = vsel %vm2646, %v2461, 0.0
  %v2799 = vadd.f32 %v2797, %v2798
  %v2800 = vsel %vm2646, %v2462, 0.0
  %v2801 = vadd.f32 %v2799, %v2800
  %v2802 = vsel %vm2646, %v2463, 0.0
  %v2803 = vadd.f32 %v2801, %v2802
  %v2804 = vsel %vm2646, %v2464, 0.0
  %v2805 = vadd.f32 %v2803, %v2804
  %v2806 = vsel %vm2646, %v2465, 0.0
  %v2807 = vadd.f32 %v2805, %v2806
  %v2808 = vsel %vm2646, %v2466, 0.0
  %v2809 = vadd.f32 %v2807, %v2808
  %v2810 = vsel %vm2646, %v2467, 0.0
  %v2811 = vadd.f32 %v2809, %v2810
  %v2812 = vsel %vm2646, %v2468, 0.0
  %v2813 = vadd.f32 %v2811, %v2812
  %v2814 = vsel %vm2646, %v2469, 0.0
  %v2815 = vadd.f32 %v2813, %v2814
  %v2816 = vsel %vm2646, %v2470, 0.0
  %v2817 = vadd.f32 %v2815, %v2816
  %v2818 = vsel %vm2646, %v2471, 0.0
  %v2819 = vadd.f32 %v2817, %v2818
  %v2820 = vsel %vm2646, %v2472, 0.0
  %v2821 = vadd.f32 %v2819, %v2820
  %v2822 = vsel %vm2646, %v2473, 0.0
  %v2823 = vadd.f32 %v2821, %v2822
  %v2824 = vsel %vm2646, %v2474, 0.0
  %v2825 = vadd.f32 %v2823, %v2824
  %v2826 = vsel %vm2646, %v2475, 0.0
  %v2827 = vadd.f32 %v2825, %v2826
  %v2828 = vsel %vm2646, %v2476, 0.0
  %v2829 = vadd.f32 %v2827, %v2828
  %v2830 = vsel %vm2646, %v2477, 0.0
  %v2831 = vadd.f32 %v2829, %v2830
  %v2832 = vsel %vm2646, %v2478, 0.0
  %v2833 = vadd.f32 %v2831, %v2832
  %v2834 = vsel %vm2646, %v2479, 0.0
  %v2835 = vadd.f32 %v2833, %v2834
  %v2836 = vsel %vm2646, %v2480, 0.0
  %v2837 = vadd.f32 %v2835, %v2836
  %v2838 = vsel %vm2646, %v2481, 0.0
  %v2839 = vadd.f32 %v2837, %v2838
  %v2840 = vsel %vm2646, %v2482, 0.0
  %v2841 = vadd.f32 %v2839, %v2840
  %v2842 = vsel %vm2646, %v2483, 0.0
  %v2843 = vadd.f32 %v2841, %v2842
  %v2844 = vsel %vm2646, %v2484, 0.0
  %v2845 = vadd.f32 %v2843, %v2844
  %v2846 = vsel %vm2646, %v2485, 0.0
  %v2847 = vadd.f32 %v2845, %v2846
  %v2848 = vrot.slane %v2847, 4
  %v2849 = vadd.f32 %v2847, %v2848
  %v2850 = vrot.slane %v2849, 2
  %v2851 = vadd.f32 %v2849, %v2850
  %v2852 = vrot.slane %v2851, 1
  %v2853 = vadd.f32 %v2851, %v2852
  %v2854 = vsel %vm2646, %v2486, 0.0
  %v2855 = vsel %vm2646, %v2487, 0.0
  %v2856 = vadd.f32 %v2854, %v2855
  %v2857 = vsel %vm2646, %v2488, 0.0
  %v2858 = vadd.f32 %v2856, %v2857
  %v2859 = vsel %vm2646, %v2489, 0.0
  %v2860 = vadd.f32 %v2858, %v2859
  %v2861 = vsel %vm2646, %v2490, 0.0
  %v2862 = vadd.f32 %v2860, %v2861
  %v2863 = vsel %vm2646, %v2491, 0.0
  %v2864 = vadd.f32 %v2862, %v2863
  %v2865 = vsel %vm2646, %v2492, 0.0
  %v2866 = vadd.f32 %v2864, %v2865
  %v2867 = vsel %vm2646, %v2493, 0.0
  %v2868 = vadd.f32 %v2866, %v2867
  %v2869 = vsel %vm2646, %v2494, 0.0
  %v2870 = vadd.f32 %v2868, %v2869
  %v2871 = vsel %vm2646, %v2495, 0.0
  %v2872 = vadd.f32 %v2870, %v2871
  %v2873 = vsel %vm2646, %v2496, 0.0
  %v2874 = vadd.f32 %v2872, %v2873
  %v2875 = vsel %vm2646, %v2497, 0.0
  %v2876 = vadd.f32 %v2874, %v2875
  %v2877 = vsel %vm2646, %v2498, 0.0
  %v2878 = vadd.f32 %v2876, %v2877
  %v2879 = vsel %vm2646, %v2499, 0.0
  %v2880 = vadd.f32 %v2878, %v2879
  %v2881 = vsel %vm2646, %v2500, 0.0
  %v2882 = vadd.f32 %v2880, %v2881
  %v2883 = vsel %vm2646, %v2501, 0.0
  %v2884 = vadd.f32 %v2882, %v2883
  %v2885 = vsel %vm2646, %v2502, 0.0
  %v2886 = vadd.f32 %v2884, %v2885
  %v2887 = vsel %vm2646, %v2503, 0.0
  %v2888 = vadd.f32 %v2886, %v2887
  %v2889 = vsel %vm2646, %v2504, 0.0
  %v2890 = vadd.f32 %v2888, %v2889
  %v2891 = vsel %vm2646, %v2505, 0.0
  %v2892 = vadd.f32 %v2890, %v2891
  %v2893 = vsel %vm2646, %v2506, 0.0
  %v2894 = vadd.f32 %v2892, %v2893
  %v2895 = vsel %vm2646, %v2507, 0.0
  %v2896 = vadd.f32 %v2894, %v2895
  %v2897 = vsel %vm2646, %v2508, 0.0
  %v2898 = vadd.f32 %v2896, %v2897
  %v2899 = vsel %vm2646, %v2509, 0.0
  %v2900 = vadd.f32 %v2898, %v2899
  %v2901 = vsel %vm2646, %v2510, 0.0
  %v2902 = vadd.f32 %v2900, %v2901
  %v2903 = vsel %vm2646, %v2511, 0.0
  %v2904 = vadd.f32 %v2902, %v2903
  %v2905 = vsel %vm2646, %v2512, 0.0
  %v2906 = vadd.f32 %v2904, %v2905
  %v2907 = vsel %vm2646, %v2513, 0.0
  %v2908 = vadd.f32 %v2906, %v2907
  %v2909 = vsel %vm2646, %v2514, 0.0
  %v2910 = vadd.f32 %v2908, %v2909
  %v2911 = vsel %vm2646, %v2515, 0.0
  %v2912 = vadd.f32 %v2910, %v2911
  %v2913 = vsel %vm2646, %v2516, 0.0
  %v2914 = vadd.f32 %v2912, %v2913
  %v2915 = vsel %vm2646, %v2517, 0.0
  %v2916 = vadd.f32 %v2914, %v2915
  %v2917 = vrot.slane %v2916, 4
  %v2918 = vadd.f32 %v2916, %v2917
  %v2919 = vrot.slane %v2918, 2
  %v2920 = vadd.f32 %v2918, %v2919
  %v2921 = vrot.slane %v2920, 1
  %v2922 = vadd.f32 %v2920, %v2921
  %v2923 = vsel %vm2646, %v2518, 0.0
  %v2924 = vsel %vm2646, %v2519, 0.0
  %v2925 = vadd.f32 %v2923, %v2924
  %v2926 = vsel %vm2646, %v2520, 0.0
  %v2927 = vadd.f32 %v2925, %v2926
  %v2928 = vsel %vm2646, %v2521, 0.0
  %v2929 = vadd.f32 %v2927, %v2928
  %v2930 = vsel %vm2646, %v2522, 0.0
  %v2931 = vadd.f32 %v2929, %v2930
  %v2932 = vsel %vm2646, %v2523, 0.0
  %v2933 = vadd.f32 %v2931, %v2932
  %v2934 = vsel %vm2646, %v2524, 0.0
  %v2935 = vadd.f32 %v2933, %v2934
  %v2936 = vsel %vm2646, %v2525, 0.0
  %v2937 = vadd.f32 %v2935, %v2936
  %v2938 = vsel %vm2646, %v2526, 0.0
  %v2939 = vadd.f32 %v2937, %v2938
  %v2940 = vsel %vm2646, %v2527, 0.0
  %v2941 = vadd.f32 %v2939, %v2940
  %v2942 = vsel %vm2646, %v2528, 0.0
  %v2943 = vadd.f32 %v2941, %v2942
  %v2944 = vsel %vm2646, %v2529, 0.0
  %v2945 = vadd.f32 %v2943, %v2944
  %v2946 = vsel %vm2646, %v2530, 0.0
  %v2947 = vadd.f32 %v2945, %v2946
  %v2948 = vsel %vm2646, %v2531, 0.0
  %v2949 = vadd.f32 %v2947, %v2948
  %v2950 = vsel %vm2646, %v2532, 0.0
  %v2951 = vadd.f32 %v2949, %v2950
  %v2952 = vsel %vm2646, %v2533, 0.0
  %v2953 = vadd.f32 %v2951, %v2952
  %v2954 = vsel %vm2646, %v2534, 0.0
  %v2955 = vadd.f32 %v2953, %v2954
  %v2956 = vsel %vm2646, %v2535, 0.0
  %v2957 = vadd.f32 %v2955, %v2956
  %v2958 = vsel %vm2646, %v2536, 0.0
  %v2959 = vadd.f32 %v2957, %v2958
  %v2960 = vsel %vm2646, %v2537, 0.0
  %v2961 = vadd.f32 %v2959, %v2960
  %v2962 = vsel %vm2646, %v2538, 0.0
  %v2963 = vadd.f32 %v2961, %v2962
  %v2964 = vsel %vm2646, %v2539, 0.0
  %v2965 = vadd.f32 %v2963, %v2964
  %v2966 = vsel %vm2646, %v2540, 0.0
  %v2967 = vadd.f32 %v2965, %v2966
  %v2968 = vsel %vm2646, %v2541, 0.0
  %v2969 = vadd.f32 %v2967, %v2968
  %v2970 = vsel %vm2646, %v2542, 0.0
  %v2971 = vadd.f32 %v2969, %v2970
  %v2972 = vsel %vm2646, %v2543, 0.0
  %v2973 = vadd.f32 %v2971, %v2972
  %v2974 = vsel %vm2646, %v2544, 0.0
  %v2975 = vadd.f32 %v2973, %v2974
  %v2976 = vsel %vm2646, %v2545, 0.0
  %v2977 = vadd.f32 %v2975, %v2976
  %v2978 = vsel %vm2646, %v2546, 0.0
  %v2979 = vadd.f32 %v2977, %v2978
  %v2980 = vsel %vm2646, %v2547, 0.0
  %v2981 = vadd.f32 %v2979, %v2980
  %v2982 = vsel %vm2646, %v2548, 0.0
  %v2983 = vadd.f32 %v2981, %v2982
  %v2984 = vsel %vm2646, %v2549, 0.0
  %v2985 = vadd.f32 %v2983, %v2984
  %v2986 = vrot.slane %v2985, 4
  %v2987 = vadd.f32 %v2985, %v2986
  %v2988 = vrot.slane %v2987, 2
  %v2989 = vadd.f32 %v2987, %v2988
  %v2990 = vrot.slane %v2989, 1
  %v2991 = vadd.f32 %v2989, %v2990
  %v2992 = vsel %vm2646, %v2550, 0.0
  %v2993 = vsel %vm2646, %v2551, 0.0
  %v2994 = vadd.f32 %v2992, %v2993
  %v2995 = vsel %vm2646, %v2552, 0.0
  %v2996 = vadd.f32 %v2994, %v2995
  %v2997 = vsel %vm2646, %v2553, 0.0
  %v2998 = vadd.f32 %v2996, %v2997
  %v2999 = vsel %vm2646, %v2554, 0.0
  %v3000 = vadd.f32 %v2998, %v2999
  %v3001 = vsel %vm2646, %v2555, 0.0
  %v3002 = vadd.f32 %v3000, %v3001
  %v3003 = vsel %vm2646, %v2556, 0.0
  %v3004 = vadd.f32 %v3002, %v3003
  %v3005 = vsel %vm2646, %v2557, 0.0
  %v3006 = vadd.f32 %v3004, %v3005
  %v3007 = vsel %vm2646, %v2558, 0.0
  %v3008 = vadd.f32 %v3006, %v3007
  %v3009 = vsel %vm2646, %v2559, 0.0
  %v3010 = vadd.f32 %v3008, %v3009
  %v3011 = vsel %vm2646, %v2560, 0.0
  %v3012 = vadd.f32 %v3010, %v3011
  %v3013 = vsel %vm2646, %v2561, 0.0
  %v3014 = vadd.f32 %v3012, %v3013
  %v3015 = vsel %vm2646, %v2562, 0.0
  %v3016 = vadd.f32 %v3014, %v3015
  %v3017 = vsel %vm2646, %v2563, 0.0
  %v3018 = vadd.f32 %v3016, %v3017
  %v3019 = vsel %vm2646, %v2564, 0.0
  %v3020 = vadd.f32 %v3018, %v3019
  %v3021 = vsel %vm2646, %v2565, 0.0
  %v3022 = vadd.f32 %v3020, %v3021
  %v3023 = vsel %vm2646, %v2566, 0.0
  %v3024 = vadd.f32 %v3022, %v3023
  %v3025 = vsel %vm2646, %v2567, 0.0
  %v3026 = vadd.f32 %v3024, %v3025
  %v3027 = vsel %vm2646, %v2568, 0.0
  %v3028 = vadd.f32 %v3026, %v3027
  %v3029 = vsel %vm2646, %v2569, 0.0
  %v3030 = vadd.f32 %v3028, %v3029
  %v3031 = vsel %vm2646, %v2570, 0.0
  %v3032 = vadd.f32 %v3030, %v3031
  %v3033 = vsel %vm2646, %v2571, 0.0
  %v3034 = vadd.f32 %v3032, %v3033
  %v3035 = vsel %vm2646, %v2572, 0.0
  %v3036 = vadd.f32 %v3034, %v3035
  %v3037 = vsel %vm2646, %v2573, 0.0
  %v3038 = vadd.f32 %v3036, %v3037
  %v3039 = vsel %vm2646, %v2574, 0.0
  %v3040 = vadd.f32 %v3038, %v3039
  %v3041 = vsel %vm2646, %v2575, 0.0
  %v3042 = vadd.f32 %v3040, %v3041
  %v3043 = vsel %vm2646, %v2576, 0.0
  %v3044 = vadd.f32 %v3042, %v3043
  %v3045 = vsel %vm2646, %v2577, 0.0
  %v3046 = vadd.f32 %v3044, %v3045
  %v3047 = vsel %vm2646, %v2578, 0.0
  %v3048 = vadd.f32 %v3046, %v3047
  %v3049 = vsel %vm2646, %v2579, 0.0
  %v3050 = vadd.f32 %v3048, %v3049
  %v3051 = vsel %vm2646, %v2580, 0.0
  %v3052 = vadd.f32 %v3050, %v3051
  %v3053 = vsel %vm2646, %v2581, 0.0
  %v3054 = vadd.f32 %v3052, %v3053
  %v3055 = vrot.slane %v3054, 4
  %v3056 = vadd.f32 %v3054, %v3055
  %v3057 = vrot.slane %v3056, 2
  %v3058 = vadd.f32 %v3056, %v3057
  %v3059 = vrot.slane %v3058, 1
  %v3060 = vadd.f32 %v3058, %v3059
  %v3061 = vsel %vm2646, %v2582, 0.0
  %v3062 = vsel %vm2646, %v2583, 0.0
  %v3063 = vadd.f32 %v3061, %v3062
  %v3064 = vsel %vm2646, %v2584, 0.0
  %v3065 = vadd.f32 %v3063, %v3064
  %v3066 = vsel %vm2646, %v2585, 0.0
  %v3067 = vadd.f32 %v3065, %v3066
  %v3068 = vsel %vm2646, %v2586, 0.0
  %v3069 = vadd.f32 %v3067, %v3068
  %v3070 = vsel %vm2646, %v2587, 0.0
  %v3071 = vadd.f32 %v3069, %v3070
  %v3072 = vsel %vm2646, %v2588, 0.0
  %v3073 = vadd.f32 %v3071, %v3072
  %v3074 = vsel %vm2646, %v2589, 0.0
  %v3075 = vadd.f32 %v3073, %v3074
  %v3076 = vsel %vm2646, %v2590, 0.0
  %v3077 = vadd.f32 %v3075, %v3076
  %v3078 = vsel %vm2646, %v2591, 0.0
  %v3079 = vadd.f32 %v3077, %v3078
  %v3080 = vsel %vm2646, %v2592, 0.0
  %v3081 = vadd.f32 %v3079, %v3080
  %v3082 = vsel %vm2646, %v2593, 0.0
  %v3083 = vadd.f32 %v3081, %v3082
  %v3084 = vsel %vm2646, %v2594, 0.0
  %v3085 = vadd.f32 %v3083, %v3084
  %v3086 = vsel %vm2646, %v2595, 0.0
  %v3087 = vadd.f32 %v3085, %v3086
  %v3088 = vsel %vm2646, %v2596, 0.0
  %v3089 = vadd.f32 %v3087, %v3088
  %v3090 = vsel %vm2646, %v2597, 0.0
  %v3091 = vadd.f32 %v3089, %v3090
  %v3092 = vsel %vm2646, %v2598, 0.0
  %v3093 = vadd.f32 %v3091, %v3092
  %v3094 = vsel %vm2646, %v2599, 0.0
  %v3095 = vadd.f32 %v3093, %v3094
  %v3096 = vsel %vm2646, %v2600, 0.0
  %v3097 = vadd.f32 %v3095, %v3096
  %v3098 = vsel %vm2646, %v2601, 0.0
  %v3099 = vadd.f32 %v3097, %v3098
  %v3100 = vsel %vm2646, %v2602, 0.0
  %v3101 = vadd.f32 %v3099, %v3100
  %v3102 = vsel %vm2646, %v2603, 0.0
  %v3103 = vadd.f32 %v3101, %v3102
  %v3104 = vsel %vm2646, %v2604, 0.0
  %v3105 = vadd.f32 %v3103, %v3104
  %v3106 = vsel %vm2646, %v2605, 0.0
  %v3107 = vadd.f32 %v3105, %v3106
  %v3108 = vsel %vm2646, %v2606, 0.0
  %v3109 = vadd.f32 %v3107, %v3108
  %v3110 = vsel %vm2646, %v2607, 0.0
  %v3111 = vadd.f32 %v3109, %v3110
  %v3112 = vsel %vm2646, %v2608, 0.0
  %v3113 = vadd.f32 %v3111, %v3112
  %v3114 = vsel %vm2646, %v2609, 0.0
  %v3115 = vadd.f32 %v3113, %v3114
  %v3116 = vsel %vm2646, %v2610, 0.0
  %v3117 = vadd.f32 %v3115, %v3116
  %v3118 = vsel %vm2646, %v2611, 0.0
  %v3119 = vadd.f32 %v3117, %v3118
  %v3120 = vsel %vm2646, %v2612, 0.0
  %v3121 = vadd.f32 %v3119, %v3120
  %v3122 = vsel %vm2646, %v2613, 0.0
  %v3123 = vadd.f32 %v3121, %v3122
  %v3124 = vrot.slane %v3123, 4
  %v3125 = vadd.f32 %v3123, %v3124
  %v3126 = vrot.slane %v3125, 2
  %v3127 = vadd.f32 %v3125, %v3126
  %v3128 = vrot.slane %v3127, 1
  %v3129 = vadd.f32 %v3127, %v3128
  %v3130 = vsel %vm2646, %v2614, 0.0
  %v3131 = vsel %vm2646, %v2615, 0.0
  %v3132 = vadd.f32 %v3130, %v3131
  %v3133 = vsel %vm2646, %v2616, 0.0
  %v3134 = vadd.f32 %v3132, %v3133
  %v3135 = vsel %vm2646, %v2617, 0.0
  %v3136 = vadd.f32 %v3134, %v3135
  %v3137 = vsel %vm2646, %v2618, 0.0
  %v3138 = vadd.f32 %v3136, %v3137
  %v3139 = vsel %vm2646, %v2619, 0.0
  %v3140 = vadd.f32 %v3138, %v3139
  %v3141 = vsel %vm2646, %v2620, 0.0
  %v3142 = vadd.f32 %v3140, %v3141
  %v3143 = vsel %vm2646, %v2621, 0.0
  %v3144 = vadd.f32 %v3142, %v3143
  %v3145 = vsel %vm2646, %v2622, 0.0
  %v3146 = vadd.f32 %v3144, %v3145
  %v3147 = vsel %vm2646, %v2623, 0.0
  %v3148 = vadd.f32 %v3146, %v3147
  %v3149 = vsel %vm2646, %v2624, 0.0
  %v3150 = vadd.f32 %v3148, %v3149
  %v3151 = vsel %vm2646, %v2625, 0.0
  %v3152 = vadd.f32 %v3150, %v3151
  %v3153 = vsel %vm2646, %v2626, 0.0
  %v3154 = vadd.f32 %v3152, %v3153
  %v3155 = vsel %vm2646, %v2627, 0.0
  %v3156 = vadd.f32 %v3154, %v3155
  %v3157 = vsel %vm2646, %v2628, 0.0
  %v3158 = vadd.f32 %v3156, %v3157
  %v3159 = vsel %vm2646, %v2629, 0.0
  %v3160 = vadd.f32 %v3158, %v3159
  %v3161 = vsel %vm2646, %v2630, 0.0
  %v3162 = vadd.f32 %v3160, %v3161
  %v3163 = vsel %vm2646, %v2631, 0.0
  %v3164 = vadd.f32 %v3162, %v3163
  %v3165 = vsel %vm2646, %v2632, 0.0
  %v3166 = vadd.f32 %v3164, %v3165
  %v3167 = vsel %vm2646, %v2633, 0.0
  %v3168 = vadd.f32 %v3166, %v3167
  %v3169 = vsel %vm2646, %v2634, 0.0
  %v3170 = vadd.f32 %v3168, %v3169
  %v3171 = vsel %vm2646, %v2635, 0.0
  %v3172 = vadd.f32 %v3170, %v3171
  %v3173 = vsel %vm2646, %v2636, 0.0
  %v3174 = vadd.f32 %v3172, %v3173
  %v3175 = vsel %vm2646, %v2637, 0.0
  %v3176 = vadd.f32 %v3174, %v3175
  %v3177 = vsel %vm2646, %v2638, 0.0
  %v3178 = vadd.f32 %v3176, %v3177
  %v3179 = vsel %vm2646, %v2639, 0.0
  %v3180 = vadd.f32 %v3178, %v3179
  %v3181 = vsel %vm2646, %v2640, 0.0
  %v3182 = vadd.f32 %v3180, %v3181
  %v3183 = vsel %vm2646, %v2641, 0.0
  %v3184 = vadd.f32 %v3182, %v3183
  %v3185 = vsel %vm2646, %v2642, 0.0
  %v3186 = vadd.f32 %v3184, %v3185
  %v3187 = vsel %vm2646, %v2643, 0.0
  %v3188 = vadd.f32 %v3186, %v3187
  %v3189 = vsel %vm2646, %v2644, 0.0
  %v3190 = vadd.f32 %v3188, %v3189
  %v3191 = vsel %vm2646, %v2645, 0.0
  %v3192 = vadd.f32 %v3190, %v3191
  %v3193 = vrot.slane %v3192, 4
  %v3194 = vadd.f32 %v3192, %v3193
  %v3195 = vrot.slane %v3194, 2
  %v3196 = vadd.f32 %v3194, %v3195
  %v3197 = vrot.slane %v3196, 1
  %v3198 = vadd.f32 %v3196, %v3197
  %v3199 = vrcp.pop 256.0
  %v3200 = vmul.f32 %v2715, %v3199
  %v3201 = vmul.f32 %v2784, %v3199
  %v3202 = vmul.f32 %v2853, %v3199
  %v3203 = vmul.f32 %v2922, %v3199
  %v3204 = vmul.f32 %v2991, %v3199
  %v3205 = vmul.f32 %v3060, %v3199
  %v3206 = vmul.f32 %v3129, %v3199
  %v3207 = vmul.f32 %v3198, %v3199
  %v3208 = vsel %vm2646, %v2390, -inf
  %v3209 = vsel %vm2646, %v2391, -inf
  %v3210 = vmax.f32 %v3208, %v3209
  %v3211 = vsel %vm2646, %v2392, -inf
  %v3212 = vmax.f32 %v3210, %v3211
  %v3213 = vsel %vm2646, %v2393, -inf
  %v3214 = vmax.f32 %v3212, %v3213
  %v3215 = vsel %vm2646, %v2394, -inf
  %v3216 = vmax.f32 %v3214, %v3215
  %v3217 = vsel %vm2646, %v2395, -inf
  %v3218 = vmax.f32 %v3216, %v3217
  %v3219 = vsel %vm2646, %v2396, -inf
  %v3220 = vmax.f32 %v3218, %v3219
  %v3221 = vsel %vm2646, %v2397, -inf
  %v3222 = vmax.f32 %v3220, %v3221
  %v3223 = vsel %vm2646, %v2398, -inf
  %v3224 = vmax.f32 %v3222, %v3223
  %v3225 = vsel %vm2646, %v2399, -inf
  %v3226 = vmax.f32 %v3224, %v3225
  %v3227 = vsel %vm2646, %v2400, -inf
  %v3228 = vmax.f32 %v3226, %v3227
  %v3229 = vsel %vm2646, %v2401, -inf
  %v3230 = vmax.f32 %v3228, %v3229
  %v3231 = vsel %vm2646, %v2402, -inf
  %v3232 = vmax.f32 %v3230, %v3231
  %v3233 = vsel %vm2646, %v2403, -inf
  %v3234 = vmax.f32 %v3232, %v3233
  %v3235 = vsel %vm2646, %v2404, -inf
  %v3236 = vmax.f32 %v3234, %v3235
  %v3237 = vsel %vm2646, %v2405, -inf
  %v3238 = vmax.f32 %v3236, %v3237
  %v3239 = vsel %vm2646, %v2406, -inf
  %v3240 = vmax.f32 %v3238, %v3239
  %v3241 = vsel %vm2646, %v2407, -inf
  %v3242 = vmax.f32 %v3240, %v3241
  %v3243 = vsel %vm2646, %v2408, -inf
  %v3244 = vmax.f32 %v3242, %v3243
  %v3245 = vsel %vm2646, %v2409, -inf
  %v3246 = vmax.f32 %v3244, %v3245
  %v3247 = vsel %vm2646, %v2410, -inf
  %v3248 = vmax.f32 %v3246, %v3247
  %v3249 = vsel %vm2646, %v2411, -inf
  %v3250 = vmax.f32 %v3248, %v3249
  %v3251 = vsel %vm2646, %v2412, -inf
  %v3252 = vmax.f32 %v3250, %v3251
  %v3253 = vsel %vm2646, %v2413, -inf
  %v3254 = vmax.f32 %v3252, %v3253
  %v3255 = vsel %vm2646, %v2414, -inf
  %v3256 = vmax.f32 %v3254, %v3255
  %v3257 = vsel %vm2646, %v2415, -inf
  %v3258 = vmax.f32 %v3256, %v3257
  %v3259 = vsel %vm2646, %v2416, -inf
  %v3260 = vmax.f32 %v3258, %v3259
  %v3261 = vsel %vm2646, %v2417, -inf
  %v3262 = vmax.f32 %v3260, %v3261
  %v3263 = vsel %vm2646, %v2418, -inf
  %v3264 = vmax.f32 %v3262, %v3263
  %v3265 = vsel %vm2646, %v2419, -inf
  %v3266 = vmax.f32 %v3264, %v3265
  %v3267 = vsel %vm2646, %v2420, -inf
  %v3268 = vmax.f32 %v3266, %v3267
  %v3269 = vsel %vm2646, %v2421, -inf
  %v3270 = vmax.f32 %v3268, %v3269
  %v3271 = vrot.slane %v3270, 4
  %v3272 = vmax.f32 %v3270, %v3271
  %v3273 = vrot.slane %v3272, 2
  %v3274 = vmax.f32 %v3272, %v3273
  %v3275 = vrot.slane %v3274, 1
  %v3276 = vmax.f32 %v3274, %v3275
  %v3277 = vsel %vm2646, %v2422, -inf
  %v3278 = vsel %vm2646, %v2423, -inf
  %v3279 = vmax.f32 %v3277, %v3278
  %v3280 = vsel %vm2646, %v2424, -inf
  %v3281 = vmax.f32 %v3279, %v3280
  %v3282 = vsel %vm2646, %v2425, -inf
  %v3283 = vmax.f32 %v3281, %v3282
  %v3284 = vsel %vm2646, %v2426, -inf
  %v3285 = vmax.f32 %v3283, %v3284
  %v3286 = vsel %vm2646, %v2427, -inf
  %v3287 = vmax.f32 %v3285, %v3286
  %v3288 = vsel %vm2646, %v2428, -inf
  %v3289 = vmax.f32 %v3287, %v3288
  %v3290 = vsel %vm2646, %v2429, -inf
  %v3291 = vmax.f32 %v3289, %v3290
  %v3292 = vsel %vm2646, %v2430, -inf
  %v3293 = vmax.f32 %v3291, %v3292
  %v3294 = vsel %vm2646, %v2431, -inf
  %v3295 = vmax.f32 %v3293, %v3294
  %v3296 = vsel %vm2646, %v2432, -inf
  %v3297 = vmax.f32 %v3295, %v3296
  %v3298 = vsel %vm2646, %v2433, -inf
  %v3299 = vmax.f32 %v3297, %v3298
  %v3300 = vsel %vm2646, %v2434, -inf
  %v3301 = vmax.f32 %v3299, %v3300
  %v3302 = vsel %vm2646, %v2435, -inf
  %v3303 = vmax.f32 %v3301, %v3302
  %v3304 = vsel %vm2646, %v2436, -inf
  %v3305 = vmax.f32 %v3303, %v3304
  %v3306 = vsel %vm2646, %v2437, -inf
  %v3307 = vmax.f32 %v3305, %v3306
  %v3308 = vsel %vm2646, %v2438, -inf
  %v3309 = vmax.f32 %v3307, %v3308
  %v3310 = vsel %vm2646, %v2439, -inf
  %v3311 = vmax.f32 %v3309, %v3310
  %v3312 = vsel %vm2646, %v2440, -inf
  %v3313 = vmax.f32 %v3311, %v3312
  %v3314 = vsel %vm2646, %v2441, -inf
  %v3315 = vmax.f32 %v3313, %v3314
  %v3316 = vsel %vm2646, %v2442, -inf
  %v3317 = vmax.f32 %v3315, %v3316
  %v3318 = vsel %vm2646, %v2443, -inf
  %v3319 = vmax.f32 %v3317, %v3318
  %v3320 = vsel %vm2646, %v2444, -inf
  %v3321 = vmax.f32 %v3319, %v3320
  %v3322 = vsel %vm2646, %v2445, -inf
  %v3323 = vmax.f32 %v3321, %v3322
  %v3324 = vsel %vm2646, %v2446, -inf
  %v3325 = vmax.f32 %v3323, %v3324
  %v3326 = vsel %vm2646, %v2447, -inf
  %v3327 = vmax.f32 %v3325, %v3326
  %v3328 = vsel %vm2646, %v2448, -inf
  %v3329 = vmax.f32 %v3327, %v3328
  %v3330 = vsel %vm2646, %v2449, -inf
  %v3331 = vmax.f32 %v3329, %v3330
  %v3332 = vsel %vm2646, %v2450, -inf
  %v3333 = vmax.f32 %v3331, %v3332
  %v3334 = vsel %vm2646, %v2451, -inf
  %v3335 = vmax.f32 %v3333, %v3334
  %v3336 = vsel %vm2646, %v2452, -inf
  %v3337 = vmax.f32 %v3335, %v3336
  %v3338 = vsel %vm2646, %v2453, -inf
  %v3339 = vmax.f32 %v3337, %v3338
  %v3340 = vrot.slane %v3339, 4
  %v3341 = vmax.f32 %v3339, %v3340
  %v3342 = vrot.slane %v3341, 2
  %v3343 = vmax.f32 %v3341, %v3342
  %v3344 = vrot.slane %v3343, 1
  %v3345 = vmax.f32 %v3343, %v3344
  %v3346 = vsel %vm2646, %v2454, -inf
  %v3347 = vsel %vm2646, %v2455, -inf
  %v3348 = vmax.f32 %v3346, %v3347
  %v3349 = vsel %vm2646, %v2456, -inf
  %v3350 = vmax.f32 %v3348, %v3349
  %v3351 = vsel %vm2646, %v2457, -inf
  %v3352 = vmax.f32 %v3350, %v3351
  %v3353 = vsel %vm2646, %v2458, -inf
  %v3354 = vmax.f32 %v3352, %v3353
  %v3355 = vsel %vm2646, %v2459, -inf
  %v3356 = vmax.f32 %v3354, %v3355
  %v3357 = vsel %vm2646, %v2460, -inf
  %v3358 = vmax.f32 %v3356, %v3357
  %v3359 = vsel %vm2646, %v2461, -inf
  %v3360 = vmax.f32 %v3358, %v3359
  %v3361 = vsel %vm2646, %v2462, -inf
  %v3362 = vmax.f32 %v3360, %v3361
  %v3363 = vsel %vm2646, %v2463, -inf
  %v3364 = vmax.f32 %v3362, %v3363
  %v3365 = vsel %vm2646, %v2464, -inf
  %v3366 = vmax.f32 %v3364, %v3365
  %v3367 = vsel %vm2646, %v2465, -inf
  %v3368 = vmax.f32 %v3366, %v3367
  %v3369 = vsel %vm2646, %v2466, -inf
  %v3370 = vmax.f32 %v3368, %v3369
  %v3371 = vsel %vm2646, %v2467, -inf
  %v3372 = vmax.f32 %v3370, %v3371
  %v3373 = vsel %vm2646, %v2468, -inf
  %v3374 = vmax.f32 %v3372, %v3373
  %v3375 = vsel %vm2646, %v2469, -inf
  %v3376 = vmax.f32 %v3374, %v3375
  %v3377 = vsel %vm2646, %v2470, -inf
  %v3378 = vmax.f32 %v3376, %v3377
  %v3379 = vsel %vm2646, %v2471, -inf
  %v3380 = vmax.f32 %v3378, %v3379
  %v3381 = vsel %vm2646, %v2472, -inf
  %v3382 = vmax.f32 %v3380, %v3381
  %v3383 = vsel %vm2646, %v2473, -inf
  %v3384 = vmax.f32 %v3382, %v3383
  %v3385 = vsel %vm2646, %v2474, -inf
  %v3386 = vmax.f32 %v3384, %v3385
  %v3387 = vsel %vm2646, %v2475, -inf
  %v3388 = vmax.f32 %v3386, %v3387
  %v3389 = vsel %vm2646, %v2476, -inf
  %v3390 = vmax.f32 %v3388, %v3389
  %v3391 = vsel %vm2646, %v2477, -inf
  %v3392 = vmax.f32 %v3390, %v3391
  %v3393 = vsel %vm2646, %v2478, -inf
  %v3394 = vmax.f32 %v3392, %v3393
  %v3395 = vsel %vm2646, %v2479, -inf
  %v3396 = vmax.f32 %v3394, %v3395
  %v3397 = vsel %vm2646, %v2480, -inf
  %v3398 = vmax.f32 %v3396, %v3397
  %v3399 = vsel %vm2646, %v2481, -inf
  %v3400 = vmax.f32 %v3398, %v3399
  %v3401 = vsel %vm2646, %v2482, -inf
  %v3402 = vmax.f32 %v3400, %v3401
  %v3403 = vsel %vm2646, %v2483, -inf
  %v3404 = vmax.f32 %v3402, %v3403
  %v3405 = vsel %vm2646, %v2484, -inf
  %v3406 = vmax.f32 %v3404, %v3405
  %v3407 = vsel %vm2646, %v2485, -inf
  %v3408 = vmax.f32 %v3406, %v3407
  %v3409 = vrot.slane %v3408, 4
  %v3410 = vmax.f32 %v3408, %v3409
  %v3411 = vrot.slane %v3410, 2
  %v3412 = vmax.f32 %v3410, %v3411
  %v3413 = vrot.slane %v3412, 1
  %v3414 = vmax.f32 %v3412, %v3413
  %v3415 = vsel %vm2646, %v2486, -inf
  %v3416 = vsel %vm2646, %v2487, -inf
  %v3417 = vmax.f32 %v3415, %v3416
  %v3418 = vsel %vm2646, %v2488, -inf
  %v3419 = vmax.f32 %v3417, %v3418
  %v3420 = vsel %vm2646, %v2489, -inf
  %v3421 = vmax.f32 %v3419, %v3420
  %v3422 = vsel %vm2646, %v2490, -inf
  %v3423 = vmax.f32 %v3421, %v3422
  %v3424 = vsel %vm2646, %v2491, -inf
  %v3425 = vmax.f32 %v3423, %v3424
  %v3426 = vsel %vm2646, %v2492, -inf
  %v3427 = vmax.f32 %v3425, %v3426
  %v3428 = vsel %vm2646, %v2493, -inf
  %v3429 = vmax.f32 %v3427, %v3428
  %v3430 = vsel %vm2646, %v2494, -inf
  %v3431 = vmax.f32 %v3429, %v3430
  %v3432 = vsel %vm2646, %v2495, -inf
  %v3433 = vmax.f32 %v3431, %v3432
  %v3434 = vsel %vm2646, %v2496, -inf
  %v3435 = vmax.f32 %v3433, %v3434
  %v3436 = vsel %vm2646, %v2497, -inf
  %v3437 = vmax.f32 %v3435, %v3436
  %v3438 = vsel %vm2646, %v2498, -inf
  %v3439 = vmax.f32 %v3437, %v3438
  %v3440 = vsel %vm2646, %v2499, -inf
  %v3441 = vmax.f32 %v3439, %v3440
  %v3442 = vsel %vm2646, %v2500, -inf
  %v3443 = vmax.f32 %v3441, %v3442
  %v3444 = vsel %vm2646, %v2501, -inf
  %v3445 = vmax.f32 %v3443, %v3444
  %v3446 = vsel %vm2646, %v2502, -inf
  %v3447 = vmax.f32 %v3445, %v3446
  %v3448 = vsel %vm2646, %v2503, -inf
  %v3449 = vmax.f32 %v3447, %v3448
  %v3450 = vsel %vm2646, %v2504, -inf
  %v3451 = vmax.f32 %v3449, %v3450
  %v3452 = vsel %vm2646, %v2505, -inf
  %v3453 = vmax.f32 %v3451, %v3452
  %v3454 = vsel %vm2646, %v2506, -inf
  %v3455 = vmax.f32 %v3453, %v3454
  %v3456 = vsel %vm2646, %v2507, -inf
  %v3457 = vmax.f32 %v3455, %v3456
  %v3458 = vsel %vm2646, %v2508, -inf
  %v3459 = vmax.f32 %v3457, %v3458
  %v3460 = vsel %vm2646, %v2509, -inf
  %v3461 = vmax.f32 %v3459, %v3460
  %v3462 = vsel %vm2646, %v2510, -inf
  %v3463 = vmax.f32 %v3461, %v3462
  %v3464 = vsel %vm2646, %v2511, -inf
  %v3465 = vmax.f32 %v3463, %v3464
  %v3466 = vsel %vm2646, %v2512, -inf
  %v3467 = vmax.f32 %v3465, %v3466
  %v3468 = vsel %vm2646, %v2513, -inf
  %v3469 = vmax.f32 %v3467, %v3468
  %v3470 = vsel %vm2646, %v2514, -inf
  %v3471 = vmax.f32 %v3469, %v3470
  %v3472 = vsel %vm2646, %v2515, -inf
  %v3473 = vmax.f32 %v3471, %v3472
  %v3474 = vsel %vm2646, %v2516, -inf
  %v3475 = vmax.f32 %v3473, %v3474
  %v3476 = vsel %vm2646, %v2517, -inf
  %v3477 = vmax.f32 %v3475, %v3476
  %v3478 = vrot.slane %v3477, 4
  %v3479 = vmax.f32 %v3477, %v3478
  %v3480 = vrot.slane %v3479, 2
  %v3481 = vmax.f32 %v3479, %v3480
  %v3482 = vrot.slane %v3481, 1
  %v3483 = vmax.f32 %v3481, %v3482
  %v3484 = vsel %vm2646, %v2518, -inf
  %v3485 = vsel %vm2646, %v2519, -inf
  %v3486 = vmax.f32 %v3484, %v3485
  %v3487 = vsel %vm2646, %v2520, -inf
  %v3488 = vmax.f32 %v3486, %v3487
  %v3489 = vsel %vm2646, %v2521, -inf
  %v3490 = vmax.f32 %v3488, %v3489
  %v3491 = vsel %vm2646, %v2522, -inf
  %v3492 = vmax.f32 %v3490, %v3491
  %v3493 = vsel %vm2646, %v2523, -inf
  %v3494 = vmax.f32 %v3492, %v3493
  %v3495 = vsel %vm2646, %v2524, -inf
  %v3496 = vmax.f32 %v3494, %v3495
  %v3497 = vsel %vm2646, %v2525, -inf
  %v3498 = vmax.f32 %v3496, %v3497
  %v3499 = vsel %vm2646, %v2526, -inf
  %v3500 = vmax.f32 %v3498, %v3499
  %v3501 = vsel %vm2646, %v2527, -inf
  %v3502 = vmax.f32 %v3500, %v3501
  %v3503 = vsel %vm2646, %v2528, -inf
  %v3504 = vmax.f32 %v3502, %v3503
  %v3505 = vsel %vm2646, %v2529, -inf
  %v3506 = vmax.f32 %v3504, %v3505
  %v3507 = vsel %vm2646, %v2530, -inf
  %v3508 = vmax.f32 %v3506, %v3507
  %v3509 = vsel %vm2646, %v2531, -inf
  %v3510 = vmax.f32 %v3508, %v3509
  %v3511 = vsel %vm2646, %v2532, -inf
  %v3512 = vmax.f32 %v3510, %v3511
  %v3513 = vsel %vm2646, %v2533, -inf
  %v3514 = vmax.f32 %v3512, %v3513
  %v3515 = vsel %vm2646, %v2534, -inf
  %v3516 = vmax.f32 %v3514, %v3515
  %v3517 = vsel %vm2646, %v2535, -inf
  %v3518 = vmax.f32 %v3516, %v3517
  %v3519 = vsel %vm2646, %v2536, -inf
  %v3520 = vmax.f32 %v3518, %v3519
  %v3521 = vsel %vm2646, %v2537, -inf
  %v3522 = vmax.f32 %v3520, %v3521
  %v3523 = vsel %vm2646, %v2538, -inf
  %v3524 = vmax.f32 %v3522, %v3523
  %v3525 = vsel %vm2646, %v2539, -inf
  %v3526 = vmax.f32 %v3524, %v3525
  %v3527 = vsel %vm2646, %v2540, -inf
  %v3528 = vmax.f32 %v3526, %v3527
  %v3529 = vsel %vm2646, %v2541, -inf
  %v3530 = vmax.f32 %v3528, %v3529
  %v3531 = vsel %vm2646, %v2542, -inf
  %v3532 = vmax.f32 %v3530, %v3531
  %v3533 = vsel %vm2646, %v2543, -inf
  %v3534 = vmax.f32 %v3532, %v3533
  %v3535 = vsel %vm2646, %v2544, -inf
  %v3536 = vmax.f32 %v3534, %v3535
  %v3537 = vsel %vm2646, %v2545, -inf
  %v3538 = vmax.f32 %v3536, %v3537
  %v3539 = vsel %vm2646, %v2546, -inf
  %v3540 = vmax.f32 %v3538, %v3539
  %v3541 = vsel %vm2646, %v2547, -inf
  %v3542 = vmax.f32 %v3540, %v3541
  %v3543 = vsel %vm2646, %v2548, -inf
  %v3544 = vmax.f32 %v3542, %v3543
  %v3545 = vsel %vm2646, %v2549, -inf
  %v3546 = vmax.f32 %v3544, %v3545
  %v3547 = vrot.slane %v3546, 4
  %v3548 = vmax.f32 %v3546, %v3547
  %v3549 = vrot.slane %v3548, 2
  %v3550 = vmax.f32 %v3548, %v3549
  %v3551 = vrot.slane %v3550, 1
  %v3552 = vmax.f32 %v3550, %v3551
  %v3553 = vsel %vm2646, %v2550, -inf
  %v3554 = vsel %vm2646, %v2551, -inf
  %v3555 = vmax.f32 %v3553, %v3554
  %v3556 = vsel %vm2646, %v2552, -inf
  %v3557 = vmax.f32 %v3555, %v3556
  %v3558 = vsel %vm2646, %v2553, -inf
  %v3559 = vmax.f32 %v3557, %v3558
  %v3560 = vsel %vm2646, %v2554, -inf
  %v3561 = vmax.f32 %v3559, %v3560
  %v3562 = vsel %vm2646, %v2555, -inf
  %v3563 = vmax.f32 %v3561, %v3562
  %v3564 = vsel %vm2646, %v2556, -inf
  %v3565 = vmax.f32 %v3563, %v3564
  %v3566 = vsel %vm2646, %v2557, -inf
  %v3567 = vmax.f32 %v3565, %v3566
  %v3568 = vsel %vm2646, %v2558, -inf
  %v3569 = vmax.f32 %v3567, %v3568
  %v3570 = vsel %vm2646, %v2559, -inf
  %v3571 = vmax.f32 %v3569, %v3570
  %v3572 = vsel %vm2646, %v2560, -inf
  %v3573 = vmax.f32 %v3571, %v3572
  %v3574 = vsel %vm2646, %v2561, -inf
  %v3575 = vmax.f32 %v3573, %v3574
  %v3576 = vsel %vm2646, %v2562, -inf
  %v3577 = vmax.f32 %v3575, %v3576
  %v3578 = vsel %vm2646, %v2563, -inf
  %v3579 = vmax.f32 %v3577, %v3578
  %v3580 = vsel %vm2646, %v2564, -inf
  %v3581 = vmax.f32 %v3579, %v3580
  %v3582 = vsel %vm2646, %v2565, -inf
  %v3583 = vmax.f32 %v3581, %v3582
  %v3584 = vsel %vm2646, %v2566, -inf
  %v3585 = vmax.f32 %v3583, %v3584
  %v3586 = vsel %vm2646, %v2567, -inf
  %v3587 = vmax.f32 %v3585, %v3586
  %v3588 = vsel %vm2646, %v2568, -inf
  %v3589 = vmax.f32 %v3587, %v3588
  %v3590 = vsel %vm2646, %v2569, -inf
  %v3591 = vmax.f32 %v3589, %v3590
  %v3592 = vsel %vm2646, %v2570, -inf
  %v3593 = vmax.f32 %v3591, %v3592
  %v3594 = vsel %vm2646, %v2571, -inf
  %v3595 = vmax.f32 %v3593, %v3594
  %v3596 = vsel %vm2646, %v2572, -inf
  %v3597 = vmax.f32 %v3595, %v3596
  %v3598 = vsel %vm2646, %v2573, -inf
  %v3599 = vmax.f32 %v3597, %v3598
  %v3600 = vsel %vm2646, %v2574, -inf
  %v3601 = vmax.f32 %v3599, %v3600
  %v3602 = vsel %vm2646, %v2575, -inf
  %v3603 = vmax.f32 %v3601, %v3602
  %v3604 = vsel %vm2646, %v2576, -inf
  %v3605 = vmax.f32 %v3603, %v3604
  %v3606 = vsel %vm2646, %v2577, -inf
  %v3607 = vmax.f32 %v3605, %v3606
  %v3608 = vsel %vm2646, %v2578, -inf
  %v3609 = vmax.f32 %v3607, %v3608
  %v3610 = vsel %vm2646, %v2579, -inf
  %v3611 = vmax.f32 %v3609, %v3610
  %v3612 = vsel %vm2646, %v2580, -inf
  %v3613 = vmax.f32 %v3611, %v3612
  %v3614 = vsel %vm2646, %v2581, -inf
  %v3615 = vmax.f32 %v3613, %v3614
  %v3616 = vrot.slane %v3615, 4
  %v3617 = vmax.f32 %v3615, %v3616
  %v3618 = vrot.slane %v3617, 2
  %v3619 = vmax.f32 %v3617, %v3618
  %v3620 = vrot.slane %v3619, 1
  %v3621 = vmax.f32 %v3619, %v3620
  %v3622 = vsel %vm2646, %v2582, -inf
  %v3623 = vsel %vm2646, %v2583, -inf
  %v3624 = vmax.f32 %v3622, %v3623
  %v3625 = vsel %vm2646, %v2584, -inf
  %v3626 = vmax.f32 %v3624, %v3625
  %v3627 = vsel %vm2646, %v2585, -inf
  %v3628 = vmax.f32 %v3626, %v3627
  %v3629 = vsel %vm2646, %v2586, -inf
  %v3630 = vmax.f32 %v3628, %v3629
  %v3631 = vsel %vm2646, %v2587, -inf
  %v3632 = vmax.f32 %v3630, %v3631
  %v3633 = vsel %vm2646, %v2588, -inf
  %v3634 = vmax.f32 %v3632, %v3633
  %v3635 = vsel %vm2646, %v2589, -inf
  %v3636 = vmax.f32 %v3634, %v3635
  %v3637 = vsel %vm2646, %v2590, -inf
  %v3638 = vmax.f32 %v3636, %v3637
  %v3639 = vsel %vm2646, %v2591, -inf
  %v3640 = vmax.f32 %v3638, %v3639
  %v3641 = vsel %vm2646, %v2592, -inf
  %v3642 = vmax.f32 %v3640, %v3641
  %v3643 = vsel %vm2646, %v2593, -inf
  %v3644 = vmax.f32 %v3642, %v3643
  %v3645 = vsel %vm2646, %v2594, -inf
  %v3646 = vmax.f32 %v3644, %v3645
  %v3647 = vsel %vm2646, %v2595, -inf
  %v3648 = vmax.f32 %v3646, %v3647
  %v3649 = vsel %vm2646, %v2596, -inf
  %v3650 = vmax.f32 %v3648, %v3649
  %v3651 = vsel %vm2646, %v2597, -inf
  %v3652 = vmax.f32 %v3650, %v3651
  %v3653 = vsel %vm2646, %v2598, -inf
  %v3654 = vmax.f32 %v3652, %v3653
  %v3655 = vsel %vm2646, %v2599, -inf
  %v3656 = vmax.f32 %v3654, %v3655
  %v3657 = vsel %vm2646, %v2600, -inf
  %v3658 = vmax.f32 %v3656, %v3657
  %v3659 = vsel %vm2646, %v2601, -inf
  %v3660 = vmax.f32 %v3658, %v3659
  %v3661 = vsel %vm2646, %v2602, -inf
  %v3662 = vmax.f32 %v3660, %v3661
  %v3663 = vsel %vm2646, %v2603, -inf
  %v3664 = vmax.f32 %v3662, %v3663
  %v3665 = vsel %vm2646, %v2604, -inf
  %v3666 = vmax.f32 %v3664, %v3665
  %v3667 = vsel %vm2646, %v2605, -inf
  %v3668 = vmax.f32 %v3666, %v3667
  %v3669 = vsel %vm2646, %v2606, -inf
  %v3670 = vmax.f32 %v3668, %v3669
  %v3671 = vsel %vm2646, %v2607, -inf
  %v3672 = vmax.f32 %v3670, %v3671
  %v3673 = vsel %vm2646, %v2608, -inf
  %v3674 = vmax.f32 %v3672, %v3673
  %v3675 = vsel %vm2646, %v2609, -inf
  %v3676 = vmax.f32 %v3674, %v3675
  %v3677 = vsel %vm2646, %v2610, -inf
  %v3678 = vmax.f32 %v3676, %v3677
  %v3679 = vsel %vm2646, %v2611, -inf
  %v3680 = vmax.f32 %v3678, %v3679
  %v3681 = vsel %vm2646, %v2612, -inf
  %v3682 = vmax.f32 %v3680, %v3681
  %v3683 = vsel %vm2646, %v2613, -inf
  %v3684 = vmax.f32 %v3682, %v3683
  %v3685 = vrot.slane %v3684, 4
  %v3686 = vmax.f32 %v3684, %v3685
  %v3687 = vrot.slane %v3686, 2
  %v3688 = vmax.f32 %v3686, %v3687
  %v3689 = vrot.slane %v3688, 1
  %v3690 = vmax.f32 %v3688, %v3689
  %v3691 = vsel %vm2646, %v2614, -inf
  %v3692 = vsel %vm2646, %v2615, -inf
  %v3693 = vmax.f32 %v3691, %v3692
  %v3694 = vsel %vm2646, %v2616, -inf
  %v3695 = vmax.f32 %v3693, %v3694
  %v3696 = vsel %vm2646, %v2617, -inf
  %v3697 = vmax.f32 %v3695, %v3696
  %v3698 = vsel %vm2646, %v2618, -inf
  %v3699 = vmax.f32 %v3697, %v3698
  %v3700 = vsel %vm2646, %v2619, -inf
  %v3701 = vmax.f32 %v3699, %v3700
  %v3702 = vsel %vm2646, %v2620, -inf
  %v3703 = vmax.f32 %v3701, %v3702
  %v3704 = vsel %vm2646, %v2621, -inf
  %v3705 = vmax.f32 %v3703, %v3704
  %v3706 = vsel %vm2646, %v2622, -inf
  %v3707 = vmax.f32 %v3705, %v3706
  %v3708 = vsel %vm2646, %v2623, -inf
  %v3709 = vmax.f32 %v3707, %v3708
  %v3710 = vsel %vm2646, %v2624, -inf
  %v3711 = vmax.f32 %v3709, %v3710
  %v3712 = vsel %vm2646, %v2625, -inf
  %v3713 = vmax.f32 %v3711, %v3712
  %v3714 = vsel %vm2646, %v2626, -inf
  %v3715 = vmax.f32 %v3713, %v3714
  %v3716 = vsel %vm2646, %v2627, -inf
  %v3717 = vmax.f32 %v3715, %v3716
  %v3718 = vsel %vm2646, %v2628, -inf
  %v3719 = vmax.f32 %v3717, %v3718
  %v3720 = vsel %vm2646, %v2629, -inf
  %v3721 = vmax.f32 %v3719, %v3720
  %v3722 = vsel %vm2646, %v2630, -inf
  %v3723 = vmax.f32 %v3721, %v3722
  %v3724 = vsel %vm2646, %v2631, -inf
  %v3725 = vmax.f32 %v3723, %v3724
  %v3726 = vsel %vm2646, %v2632, -inf
  %v3727 = vmax.f32 %v3725, %v3726
  %v3728 = vsel %vm2646, %v2633, -inf
  %v3729 = vmax.f32 %v3727, %v3728
  %v3730 = vsel %vm2646, %v2634, -inf
  %v3731 = vmax.f32 %v3729, %v3730
  %v3732 = vsel %vm2646, %v2635, -inf
  %v3733 = vmax.f32 %v3731, %v3732
  %v3734 = vsel %vm2646, %v2636, -inf
  %v3735 = vmax.f32 %v3733, %v3734
  %v3736 = vsel %vm2646, %v2637, -inf
  %v3737 = vmax.f32 %v3735, %v3736
  %v3738 = vsel %vm2646, %v2638, -inf
  %v3739 = vmax.f32 %v3737, %v3738
  %v3740 = vsel %vm2646, %v2639, -inf
  %v3741 = vmax.f32 %v3739, %v3740
  %v3742 = vsel %vm2646, %v2640, -inf
  %v3743 = vmax.f32 %v3741, %v3742
  %v3744 = vsel %vm2646, %v2641, -inf
  %v3745 = vmax.f32 %v3743, %v3744
  %v3746 = vsel %vm2646, %v2642, -inf
  %v3747 = vmax.f32 %v3745, %v3746
  %v3748 = vsel %vm2646, %v2643, -inf
  %v3749 = vmax.f32 %v3747, %v3748
  %v3750 = vsel %vm2646, %v2644, -inf
  %v3751 = vmax.f32 %v3749, %v3750
  %v3752 = vsel %vm2646, %v2645, -inf
  %v3753 = vmax.f32 %v3751, %v3752
  %v3754 = vrot.slane %v3753, 4
  %v3755 = vmax.f32 %v3753, %v3754
  %v3756 = vrot.slane %v3755, 2
  %v3757 = vmax.f32 %v3755, %v3756
  %v3758 = vrot.slane %v3757, 1
  %v3759 = vmax.f32 %v3757, %v3758
  %v3760 = vadd.f32 %v3200, %v3276
  %v3761 = vadd.f32 %v3201, %v3345
  %v3762 = vadd.f32 %v3202, %v3414
  %v3763 = vadd.f32 %v3203, %v3483
  %v3764 = vadd.f32 %v3204, %v3552
  %v3765 = vadd.f32 %v3205, %v3621
  %v3766 = vadd.f32 %v3206, %v3690
  %v3767 = vadd.f32 %v3207, %v3759
  %v3768 = vmul.f32 %v3760, 0.5
  %v3769 = vmul.f32 %v3761, 0.5
  %v3770 = vmul.f32 %v3762, 0.5
  %v3771 = vmul.f32 %v3763, 0.5
  %v3772 = vmul.f32 %v3764, 0.5
  %v3773 = vmul.f32 %v3765, 0.5
  %v3774 = vmul.f32 %v3766, 0.5
  %v3775 = vmul.f32 %v3767, 0.5
  %v3776 = vld [vmem:[%s3] sm:$0xff]
  %v3777 = vld [vmem:[%s3 + $0x8] sm:$0xff]
  %v3778 = vld [vmem:[%s3 + $0x10] sm:$0xff]
  %v3779 = vld [vmem:[%s3 + $0x18] sm:$0xff]
  %v3780 = vld [vmem:[%s4] sm:$0x1]
  %v3782 = vlaneseq
  %v3783 = vshrl.u32 %v3782, 7
  %v3784 = vsub.s32 0, %v3783
  %v3785 = vrot.slane %v3780, %v3784
  %vm3795 = vcmask 1041409
  %v3796 = vsel %vm3795, %v3769, %v3768
  %vm3797 = vcmask 1042434
  %v3798 = vsel %vm3797, %v3770, %v3796
  %vm3799 = vcmask 1043459
  %v3800 = vsel %vm3799, %v3771, %v3798
  %vm3801 = vcmask 1044484
  %v3802 = vsel %vm3801, %v3772, %v3800
  %vm3803 = vcmask 1045509
  %v3804 = vsel %vm3803, %v3773, %v3802
  %vm3805 = vcmask 1046534
  %v3806 = vsel %vm3805, %v3774, %v3804
  %vm3807 = vcmask 1047559
  %v3808 = vsel %vm3807, %v3775, %v3806
  %v3809 = vsel %vm2646, %v3808, 0
  %3811 = vmatprep.subr.mxu0 0.0
  %3812 = vmatpush1.msra.mxu0 %v3776
  %3813 = vmatprep.subr.mxu0 0.0
  %3814 = vmatpush1.msra.mxu0 %v3777
  %3815 = vmatprep.subr.mxu0 0.0
  %3816 = vmatpush1.msra.mxu0 %v3778
  %3817 = vmatprep.subr.mxu0 0.0
  %3818 = vmatpush1.msra.mxu0 %v3779
  %3819 = vmatprep.subr.mxu0 0.0
  %3820 = vmatpush1.msra.mxu0 0.0
  %3821 = vmatprep.subr.mxu0 0.0
  %3822 = vmatpush1.msra.mxu0 0.0
  %3823 = vmatprep.subr.mxu0 0.0
  %3824 = vmatpush1.msra.mxu0 0.0
  %3825 = vmatprep.subr.mxu0 0.0
  %3826 = vmatpush1.msra.mxu0 0.0
  %3827 = vmatprep.subr.mxu0 0.0
  %3828 = vmatpush1.msra.mxu0 0.0
  %3829 = vmatprep.subr.mxu0 0.0
  %3830 = vmatpush1.msra.mxu0 0.0
  %3831 = vmatprep.subr.mxu0 0.0
  %3832 = vmatpush1.msra.mxu0 0.0
  %3833 = vmatprep.subr.mxu0 0.0
  %3834 = vmatpush1.msra.mxu0 0.0
  %3835 = vmatprep.subr.mxu0 0.0
  %3836 = vmatpush1.msra.mxu0 0.0
  %3837 = vmatprep.subr.mxu0 0.0
  %3838 = vmatpush1.msra.mxu0 0.0
  %3839 = vmatprep.subr.mxu0 0.0
  %3840 = vmatpush1.msra.mxu0 0.0
  %3841 = vmatprep.subr.mxu0 0.0
  %3842 = vmatpush1.msra.mxu0 0.0
  %3843 = vmatprep.subr.mxu0 0.0
  %3844 = vmatpush1.msra.mxu0 0.0
  %3845 = vmatprep.subr.mxu0 0.0
  %3846 = vmatpush1.msra.mxu0 0.0
  %3847 = vmatprep.subr.mxu0 0.0
  %3848 = vmatpush1.msra.mxu0 0.0
  %3849 = vmatprep.subr.mxu0 0.0
  %3850 = vmatpush1.msra.mxu0 0.0
  %3851 = vmatprep.subr.mxu0 0.0
  %3852 = vmatpush1.msra.mxu0 0.0
  %3853 = vmatprep.subr.mxu0 0.0
  %3854 = vmatpush1.msra.mxu0 0.0
  %3855 = vmatprep.subr.mxu0 0.0
  %3856 = vmatpush1.msra.mxu0 0.0
  %3857 = vmatprep.subr.mxu0 0.0
  %3858 = vmatpush1.msra.mxu0 0.0
  %3859 = vmatprep.subr.mxu0 0.0
  %3860 = vmatpush1.msra.mxu0 0.0
  %3861 = vmatprep.subr.mxu0 0.0
  %3862 = vmatpush1.msra.mxu0 0.0
  %3863 = vmatprep.subr.mxu0 0.0
  %3864 = vmatpush1.msra.mxu0 0.0
  %3865 = vmatprep.subr.mxu0 0.0
  %3866 = vmatpush1.msra.mxu0 0.0
  %3867 = vmatprep.subr.mxu0 0.0
  %3868 = vmatpush1.msra.mxu0 0.0
  %3869 = vmatprep.subr.mxu0 0.0
  %3870 = vmatpush1.msra.mxu0 0.0
  %3871 = vmatprep.subr.mxu0 0.0
  %3872 = vmatpush1.msra.mxu0 0.0
  %3873 = vmatprep.subr.mxu0 0.0
  %3874 = vmatpush1.msra.mxu0 0.0
  %3875 = vmatprep.mubr.f32.mxu0 0.0
  %3876 = vmatmul.mubr.f32.gmra.mrb[0].mxu0 %v3809
  %v3877 = vpop.f32.mrb[0].mxu0
  %v3878 = vadd.f32 %v3785, %v3877
  %v3879 = vpop.f32.mrb[0].mxu0
  %3880 = vdwg.mxu0
  %3881 = vst [vmem:[%s5] sm:$0xff] %v3878
  // Predicated region
  $region22: #{network_forward.1} parent=0 // pred_check
    _
  $region23: #{network_forward.1} parent=0 // pred_check_branch
    %3883 = sbr.rel (0) target = $region25
  $region24: #{network_forward.1} parent=0 // pred_region
    _
  $region25: #{network_forward.1} parent=0 // pred_fallthru
    _
  // Predicated region
  $region26: #{network_forward.1} parent=0 // pred_check
    _
  $region27: #{network_forward.1} parent=0 // pred_check_branch
    %3885 = sbr.rel (0) target = $region29
  $region28: #{network_forward.1} parent=0 // pred_region
    _
  $region29: #{network_forward.1} parent=0 // pred_fallthru
    _

</llo_original>
